<compile_context>
chip_gen: v6e
topology: v6e:2x2x1
jax: 0.10.0
libtpu: 0.0.40
codegen_flags: <defaults>
</compile_context>

<pallas_src>
import jax
import jax.numpy as jnp
from jax.experimental import pallas as pl
from jax.experimental.pallas import tpu as pltpu

L1, L2, L3 = 400, 400, 300
LN_EPS = 1e-5


def _round_up(n, m):
    return ((n + m - 1) // m) * m


# Lane-aligned (padded) feature widths.
L1P, L2P, L3P = (_round_up(v, 128) for v in (L1, L2, L3))


def _elu(x):
    # ELU with alpha = 1.0 (PyTorch F.elu default). Discarded positive branch
    # of exp is select-masked, so any overflow there is benign.
    return jnp.where(x > 0, x, jnp.exp(x) - 1.0)


def _layernorm_padded(x, gamma, beta, n_true):
    """One-pass LayerNorm over the (zero-padded) last axis.

    Padded lanes of `x` are exactly zero, so sums over the padded width equal
    sums over the true width; dividing by `n_true` gives the correct biased
    mean/variance (matches PyTorch LayerNorm, eps=1e-5).
    """
    inv_n = 1.0 / float(n_true)
    mean = jnp.sum(x, axis=-1, keepdims=True) * inv_n
    ex2 = jnp.sum(x * x, axis=-1, keepdims=True) * inv_n
    var = jnp.maximum(ex2 - mean * mean, 0.0)   # guard f32 cancellation
    inv = jax.lax.rsqrt(var + LN_EPS)
    # Padded lanes: (0 - mean) * inv * gamma(=0) + beta(=0) == 0, so padding
    # stays exactly zero for the next layer.
    return (x - mean) * inv * gamma + beta


def value_func_kernel(
    x_ref,
    w1_ref, b1_ref, g1_ref, be1_ref,
    w2_ref, b2_ref, g2_ref, be2_ref,
    w3_ref, b3_ref, g3_ref, be3_ref,
    wo_ref, bo_ref,
    out_ref,
):
    # Layer 1: Linear -> ELU -> LayerNorm   (true width 400, padded 512)
    # bf16 MXU matmul (native rate on v5e/v6e/v7x), f32 accumulation + epilogue.
    x = x_ref[...].astype(jnp.bfloat16)
    h = jnp.dot(x, w1_ref[...], preferred_element_type=jnp.float32) + b1_ref[...]
    h = _layernorm_padded(_elu(h), g1_ref[...], be1_ref[...], L1)

    # Layer 2: Linear -> ELU -> LayerNorm   (true width 400, padded 512)
    h = jnp.dot(h.astype(jnp.bfloat16), w2_ref[...],
                preferred_element_type=jnp.float32) + b2_ref[...]
    h = _layernorm_padded(_elu(h), g2_ref[...], be2_ref[...], L2)

    # Layer 3: Linear -> ELU -> LayerNorm   (true width 300, padded 384)
    h = jnp.dot(h.astype(jnp.bfloat16), w3_ref[...],
                preferred_element_type=jnp.float32) + b3_ref[...]
    h = _layernorm_padded(_elu(h), g3_ref[...], be3_ref[...], L3)

    # Output head: Linear(300 -> 1). Contract h's feature axis directly against
    # wo's feature axis (no explicit h.T / XLU transpose); result is the
    # lane-dense (1, batch_tile) row, batch on the lane axis -> unmasked store.
    out = jax.lax.dot_general(
        wo_ref[...], h,
        dimension_numbers=(((1,), (1,)), ((), ())),
        preferred_element_type=jnp.float32,
    ) + bo_ref[...]
    out_ref[...] = out.astype(out_ref.dtype)


def _pick_batch_tile(B, batch_tile):
    """Choose the batch tile.

    - multiple of 8 always;
    - if the grid would have >1 step, the tile is a multiple of 128 so the
      lane-dense output blocks stay (8,128)-aligned;
    - for batches >= 256, cap the tile so the grid has >= 2 steps
      (dimension_semantics=('parallel',) can then shard across v7x's 2 TCs).
    """
    B8 = _round_up(max(B, 1), 8)
    if B8 < 256:
        return B8                                   # single grid step, full-extent blocks
    bt_cap = max(128, ((B8 // 2) // 128) * 128)     # guarantees >= 2 grid steps
    bt = min(_round_up(batch_tile, 128), bt_cap)
    return max(128, (bt // 128) * 128)


def value_func(x, padded_params, *, batch_tile=512):
    """Run the fused critic forward pass.

    x:             (B, state_dim) float32.
    padded_params: dict from prepare_params() (lane-padded, bf16 weights).
    Returns (B, 1) float32.
    """
    B, D = x.shape

    bt = _pick_batch_tile(B, batch_tile)
    B_pad = _round_up(B, bt)
    if B_pad != B:
        x = jnp.pad(x, ((0, B_pad - B), (0, 0)))

    p = padded_params

    def resident(a):
        # Parameters are fully VMEM-resident with a constant block index;
        # single-buffer them (never re-fetched, no point double-buffering).
        return pl.BlockSpec(a.shape, lambda i: (0, 0),
                            pipeline_mode=pl.Buffered(1))

    in_specs = [
        pl.BlockSpec((bt, D), lambda i: (i, 0)),      # x: batch tiled
        resident(p["w1"]), resident(p["b1"]), resident(p["g1"]), resident(p["be1"]),
        resident(p["w2"]), resident(p["b2"]), resident(p["g2"]), resident(p["be2"]),
        resident(p["w3"]), resident(p["b3"]), resident(p["g3"]), resident(p["be3"]),
        resident(p["wo"]), resident(p["bo"]),
    ]

    # Lane-dense output: one (1, bt) row per grid step, batch on the lane axis.
    out_specs = pl.BlockSpec((1, bt), lambda i: (0, i))

    out = pl.pallas_call(
        value_func_kernel,
        out_shape=jax.ShapeDtypeStruct((1, B_pad), jnp.float32),
        grid_spec=pltpu.PrefetchScalarGridSpec(
            num_scalar_prefetch=0,
            grid=(B_pad // bt,),
            in_specs=in_specs,
            out_specs=out_specs,
        ),
        compiler_params=pltpu.CompilerParams(
            dimension_semantics=("parallel",),
        ),
    )(
        x,
        p["w1"], p["b1"], p["g1"], p["be1"],
        p["w2"], p["b2"], p["g2"], p["be2"],
        p["w3"], p["b3"], p["g3"], p["be3"],
        p["wo"], p["bo"],
    )

    return out.reshape(B_pad, 1)[:B]


def init_params(key, state_dim):
    """Deterministic synthetic parameters at the TRUE (PyTorch) shapes, f32."""
    ks = jax.random.split(key, 8)
    scale = 0.05

    def lin(k, fan_in, fan_out):
        kw, kb = jax.random.split(k)
        w = jax.random.normal(kw, (fan_in, fan_out), jnp.float32) * scale
        b = jax.random.normal(kb, (1, fan_out), jnp.float32) * scale
        return w, b

    w1, b1 = lin(ks[0], state_dim, L1)
    w2, b2 = lin(ks[1], L1, L2)
    w3, b3 = lin(ks[2], L2, L3)
    wo, bo = lin(ks[3], L3, 1)

    def ln(k, dim):
        kg, kb = jax.random.split(k)
        g = 1.0 + jax.random.normal(kg, (1, dim), jnp.float32) * scale
        b = jax.random.normal(kb, (1, dim), jnp.float32) * scale
        return g, b

    g1, be1 = ln(ks[4], L1)
    g2, be2 = ln(ks[5], L2)
    g3, be3 = ln(ks[6], L3)

    return dict(
        w1=w1, b1=b1, g1=g1, be1=be1,
        w2=w2, b2=b2, g2=g2, be2=be2,
        w3=w3, b3=b3, g3=g3, be3=be3,
        wo=wo, bo=bo,
    )


def prepare_params(p, state_dim):
    """Zero-pad feature dims to lane multiples of 128; hidden-layer weights bf16."""
    def pad2(a, rows, cols, dtype=jnp.float32):
        r, c = a.shape
        return jnp.pad(a, ((0, rows - r), (0, cols - c))).astype(dtype)

    return dict(
        # Hidden-layer matmul weights in bf16 (native MXU rate; padded cols are 0).
        w1=pad2(p["w1"], state_dim, L1P, jnp.bfloat16), b1=pad2(p["b1"], 1, L1P),
        g1=pad2(p["g1"], 1, L1P), be1=pad2(p["be1"], 1, L1P),
        w2=pad2(p["w2"], L1P, L2P, jnp.bfloat16), b2=pad2(p["b2"], 1, L2P),
        g2=pad2(p["g2"], 1, L2P), be2=pad2(p["be2"], 1, L2P),
        w3=pad2(p["w3"], L2P, L3P, jnp.bfloat16), b3=pad2(p["b3"], 1, L3P),
        g3=pad2(p["g3"], 1, L3P), be3=pad2(p["be3"], 1, L3P),
        # Output head stays f32 (tiny contraction, preserves head precision).
        wo=pad2(p["wo"].T, 1, L3P),   # (L3, 1) -> (1, L3) -> (1, L3P) row
        bo=p["bo"],                   # (1, 1) scalar bias
    )


def value_func_ref(x, p):
    """Pure-JAX f32 reference at the true widths (mirrors the PyTorch forward)."""
    def ln(h, g, b):
        mean = jnp.mean(h, axis=-1, keepdims=True)
        var = jnp.mean((h - mean) ** 2, axis=-1, keepdims=True)
        return (h - mean) * jax.lax.rsqrt(var + LN_EPS) * g + b

    h = ln(_elu(x @ p["w1"] + p["b1"]), p["g1"], p["be1"])
    h = ln(_elu(h @ p["w2"] + p["b2"]), p["g2"], p["be2"])
    h = ln(_elu(h @ p["w3"] + p["b3"]), p["g3"], p["be3"])
    return h @ p["wo"] + p["bo"]


if __name__ == "__main__":
    B = 256        # batch of states -> bt=128, 2 "parallel" grid steps
    STATE_DIM = 32 # args.state_dim

    key = jax.random.PRNGKey(0)
    kx, kp = jax.random.split(key)
    x = jax.random.normal(kx, (B, STATE_DIM), jnp.float32)

    raw_params = init_params(kp, STATE_DIM)
    padded_params = prepare_params(raw_params, STATE_DIM)

    out = jax.block_until_ready(value_func(x, padded_params))
    ref = value_func_ref(x, raw_params)
    assert out.shape == (B, 1)
    err = float(jnp.max(jnp.abs(out - ref)))
    # bf16 matmul operands -> looser tolerance vs the pure-f32 reference.
    assert jnp.allclose(out, ref, atol=5e-2, rtol=5e-2), f"mismatch: max abs err {err}"

    # Exercise the batch-padding / single-step path (B not a tile multiple).
    x_small = x[:9]
    out_small = jax.block_until_ready(value_func(x_small, padded_params))
    ref_small = value_func_ref(x_small, raw_params)
    assert out_small.shape == (9, 1)
    err2 = float(jnp.max(jnp.abs(out_small - ref_small)))
    assert jnp.allclose(out_small, ref_small, atol=5e-2, rtol=5e-2), (
        f"mismatch (padded batch): max abs err {err2}"
    )

    print("KERNEL_OK")
</pallas_src>

<mosaic_0001>
module attributes {stable_mosaic.version = 11 : i64} {
  func.func @value_func_kernel(%arg0: i32, %arg1: memref<128x32xf32, #tpu.memory_space<vmem>>, %arg2: memref<32x512xbf16, #tpu.memory_space<vmem>>, %arg3: memref<1x512xf32, #tpu.memory_space<vmem>>, %arg4: memref<1x512xf32, #tpu.memory_space<vmem>>, %arg5: memref<1x512xf32, #tpu.memory_space<vmem>>, %arg6: memref<512x512xbf16, #tpu.memory_space<vmem>>, %arg7: memref<1x512xf32, #tpu.memory_space<vmem>>, %arg8: memref<1x512xf32, #tpu.memory_space<vmem>>, %arg9: memref<1x512xf32, #tpu.memory_space<vmem>>, %arg10: memref<512x384xbf16, #tpu.memory_space<vmem>>, %arg11: memref<1x384xf32, #tpu.memory_space<vmem>>, %arg12: memref<1x384xf32, #tpu.memory_space<vmem>>, %arg13: memref<1x384xf32, #tpu.memory_space<vmem>>, %arg14: memref<1x384xf32, #tpu.memory_space<vmem>>, %arg15: memref<1x1xf32, #tpu.memory_space<vmem>>, %arg16: memref<1x128xf32, #tpu.memory_space<vmem>>) attributes {dimension_semantics = [#tpu.dimension_semantics<parallel>], iteration_bounds = array<i64: 2>, scalar_prefetch = 0 : i64, scratch_operands = 0 : i64, tpu.core_type = #tpu.core_type<tc>, window_params = [{transform_indices = @transform_0, window_bounds = array<i64: 128, 32>}, {pipeline_mode = #tpu.pipeline_mode<synchronous>, transform_indices = @transform_1, window_bounds = array<i64: 32, 512>}, {pipeline_mode = #tpu.pipeline_mode<synchronous>, transform_indices = @transform_2, window_bounds = array<i64: 1, 512>}, {pipeline_mode = #tpu.pipeline_mode<synchronous>, transform_indices = @transform_3, window_bounds = array<i64: 1, 512>}, {pipeline_mode = #tpu.pipeline_mode<synchronous>, transform_indices = @transform_4, window_bounds = array<i64: 1, 512>}, {pipeline_mode = #tpu.pipeline_mode<synchronous>, transform_indices = @transform_5, window_bounds = array<i64: 512, 512>}, {pipeline_mode = #tpu.pipeline_mode<synchronous>, transform_indices = @transform_6, window_bounds = array<i64: 1, 512>}, {pipeline_mode = #tpu.pipeline_mode<synchronous>, transform_indices = @transform_7, window_bounds = array<i64: 1, 512>}, {pipeline_mode = #tpu.pipeline_mode<synchronous>, transform_indices = @transform_8, window_bounds = array<i64: 1, 512>}, {pipeline_mode = #tpu.pipeline_mode<synchronous>, transform_indices = @transform_9, window_bounds = array<i64: 512, 384>}, {pipeline_mode = #tpu.pipeline_mode<synchronous>, transform_indices = @transform_10, window_bounds = array<i64: 1, 384>}, {pipeline_mode = #tpu.pipeline_mode<synchronous>, transform_indices = @transform_11, window_bounds = array<i64: 1, 384>}, {pipeline_mode = #tpu.pipeline_mode<synchronous>, transform_indices = @transform_12, window_bounds = array<i64: 1, 384>}, {pipeline_mode = #tpu.pipeline_mode<synchronous>, transform_indices = @transform_13, window_bounds = array<i64: 1, 384>}, {pipeline_mode = #tpu.pipeline_mode<synchronous>, transform_indices = @transform_14, window_bounds = array<i64: 1, 1>}, {transform_indices = @transform_15, window_bounds = array<i64: 1, 128>}]} {
    %c0 = arith.constant 0 : index
    %c0_0 = arith.constant 0 : index
    %0 = vector.load %arg1[%c0, %c0_0] : memref<128x32xf32, #tpu.memory_space<vmem>>, vector<128x32xf32>
    %1 = arith.truncf %0 : vector<128x32xf32> to vector<128x32xbf16>
    %c0_1 = arith.constant 0 : index
    %c0_2 = arith.constant 0 : index
    %2 = vector.load %arg2[%c0_1, %c0_2] : memref<32x512xbf16, #tpu.memory_space<vmem>>, vector<32x512xbf16>
    %cst = arith.constant dense<0.000000e+00> : vector<128x512xf32>
    %3 = tpu.matmul %1, %2, %cst {dimension_numbers = #tpu.dot_dimension_numbers<[1], [0], [0], [1], [0, 0, 1, 1], [], []>} : vector<128x32xbf16>, vector<32x512xbf16>, vector<128x512xf32> -> vector<128x512xf32>
    %c0_3 = arith.constant 0 : index
    %c0_4 = arith.constant 0 : index
    %4 = vector.load %arg3[%c0_3, %c0_4] : memref<1x512xf32, #tpu.memory_space<vmem>>, vector<1x512xf32>
    %5 = vector.broadcast %4 : vector<1x512xf32> to vector<128x512xf32>
    %6 = arith.addf %3, %5 : vector<128x512xf32>
    %cst_5 = arith.constant 0.000000e+00 : f32
    %7 = vector.broadcast %cst_5 : f32 to vector<128x512xf32>
    %8 = arith.cmpf ogt, %6, %7 : vector<128x512xf32>
    %9 = math.exp %6 : vector<128x512xf32>
    %cst_6 = arith.constant 1.000000e+00 : f32
    %10 = vector.broadcast %cst_6 : f32 to vector<128x512xf32>
    %11 = arith.subf %9, %10 : vector<128x512xf32>
    %12 = arith.select %8, %6, %11 : vector<128x512xi1>, vector<128x512xf32>
    %c0_7 = arith.constant 0 : index
    %c0_8 = arith.constant 0 : index
    %13 = vector.load %arg4[%c0_7, %c0_8] : memref<1x512xf32, #tpu.memory_space<vmem>>, vector<1x512xf32>
    %c0_9 = arith.constant 0 : index
    %c0_10 = arith.constant 0 : index
    %14 = vector.load %arg5[%c0_9, %c0_10] : memref<1x512xf32, #tpu.memory_space<vmem>>, vector<1x512xf32>
    %cst_11 = arith.constant dense<0.000000e+00> : vector<128xf32>
    %15 = vector.multi_reduction <add>, %12, %cst_11 [1] : vector<128x512xf32> to vector<128xf32>
    %16 = vector.shape_cast %15 : vector<128xf32> to vector<128x1xf32>
    %cst_12 = arith.constant 2.500000e-03 : f32
    %17 = vector.broadcast %cst_12 : f32 to vector<128x1xf32>
    %18 = arith.mulf %16, %17 : vector<128x1xf32>
    %19 = arith.mulf %12, %12 : vector<128x512xf32>
    %cst_13 = arith.constant dense<0.000000e+00> : vector<128xf32>
    %20 = vector.multi_reduction <add>, %19, %cst_13 [1] : vector<128x512xf32> to vector<128xf32>
    %21 = vector.shape_cast %20 : vector<128xf32> to vector<128x1xf32>
    %cst_14 = arith.constant 2.500000e-03 : f32
    %22 = vector.broadcast %cst_14 : f32 to vector<128x1xf32>
    %23 = arith.mulf %21, %22 : vector<128x1xf32>
    %24 = arith.mulf %18, %18 : vector<128x1xf32>
    %25 = arith.subf %23, %24 : vector<128x1xf32>
    %cst_15 = arith.constant 0.000000e+00 : f32
    %26 = vector.broadcast %cst_15 : f32 to vector<128x1xf32>
    %27 = arith.maximumf %25, %26 : vector<128x1xf32>
    %cst_16 = arith.constant 9.99999974E-6 : f32
    %28 = vector.broadcast %cst_16 : f32 to vector<128x1xf32>
    %29 = arith.addf %27, %28 : vector<128x1xf32>
    %30 = math.rsqrt %29 : vector<128x1xf32>
    %31 = vector.broadcast %18 : vector<128x1xf32> to vector<128x512xf32>
    %32 = arith.subf %12, %31 : vector<128x512xf32>
    %33 = vector.broadcast %30 : vector<128x1xf32> to vector<128x512xf32>
    %34 = arith.mulf %32, %33 : vector<128x512xf32>
    %35 = vector.broadcast %13 : vector<1x512xf32> to vector<128x512xf32>
    %36 = arith.mulf %34, %35 : vector<128x512xf32>
    %37 = vector.broadcast %14 : vector<1x512xf32> to vector<128x512xf32>
    %38 = arith.addf %36, %37 : vector<128x512xf32>
    %39 = arith.truncf %38 : vector<128x512xf32> to vector<128x512xbf16>
    %c0_17 = arith.constant 0 : index
    %c0_18 = arith.constant 0 : index
    %40 = vector.load %arg6[%c0_17, %c0_18] : memref<512x512xbf16, #tpu.memory_space<vmem>>, vector<512x512xbf16>
    %cst_19 = arith.constant dense<0.000000e+00> : vector<128x512xf32>
    %41 = tpu.matmul %39, %40, %cst_19 {dimension_numbers = #tpu.dot_dimension_numbers<[1], [0], [0], [1], [0, 0, 1, 1], [], []>} : vector<128x512xbf16>, vector<512x512xbf16>, vector<128x512xf32> -> vector<128x512xf32>
    %c0_20 = arith.constant 0 : index
    %c0_21 = arith.constant 0 : index
    %42 = vector.load %arg7[%c0_20, %c0_21] : memref<1x512xf32, #tpu.memory_space<vmem>>, vector<1x512xf32>
    %43 = vector.broadcast %42 : vector<1x512xf32> to vector<128x512xf32>
    %44 = arith.addf %41, %43 : vector<128x512xf32>
    %cst_22 = arith.constant 0.000000e+00 : f32
    %45 = vector.broadcast %cst_22 : f32 to vector<128x512xf32>
    %46 = arith.cmpf ogt, %44, %45 : vector<128x512xf32>
    %47 = math.exp %44 : vector<128x512xf32>
    %cst_23 = arith.constant 1.000000e+00 : f32
    %48 = vector.broadcast %cst_23 : f32 to vector<128x512xf32>
    %49 = arith.subf %47, %48 : vector<128x512xf32>
    %50 = arith.select %46, %44, %49 : vector<128x512xi1>, vector<128x512xf32>
    %c0_24 = arith.constant 0 : index
    %c0_25 = arith.constant 0 : index
    %51 = vector.load %arg8[%c0_24, %c0_25] : memref<1x512xf32, #tpu.memory_space<vmem>>, vector<1x512xf32>
    %c0_26 = arith.constant 0 : index
    %c0_27 = arith.constant 0 : index
    %52 = vector.load %arg9[%c0_26, %c0_27] : memref<1x512xf32, #tpu.memory_space<vmem>>, vector<1x512xf32>
    %cst_28 = arith.constant dense<0.000000e+00> : vector<128xf32>
    %53 = vector.multi_reduction <add>, %50, %cst_28 [1] : vector<128x512xf32> to vector<128xf32>
    %54 = vector.shape_cast %53 : vector<128xf32> to vector<128x1xf32>
    %cst_29 = arith.constant 2.500000e-03 : f32
    %55 = vector.broadcast %cst_29 : f32 to vector<128x1xf32>
    %56 = arith.mulf %54, %55 : vector<128x1xf32>
    %57 = arith.mulf %50, %50 : vector<128x512xf32>
    %cst_30 = arith.constant dense<0.000000e+00> : vector<128xf32>
    %58 = vector.multi_reduction <add>, %57, %cst_30 [1] : vector<128x512xf32> to vector<128xf32>
    %59 = vector.shape_cast %58 : vector<128xf32> to vector<128x1xf32>
    %cst_31 = arith.constant 2.500000e-03 : f32
    %60 = vector.broadcast %cst_31 : f32 to vector<128x1xf32>
    %61 = arith.mulf %59, %60 : vector<128x1xf32>
    %62 = arith.mulf %56, %56 : vector<128x1xf32>
    %63 = arith.subf %61, %62 : vector<128x1xf32>
    %cst_32 = arith.constant 0.000000e+00 : f32
    %64 = vector.broadcast %cst_32 : f32 to vector<128x1xf32>
    %65 = arith.maximumf %63, %64 : vector<128x1xf32>
    %cst_33 = arith.constant 9.99999974E-6 : f32
    %66 = vector.broadcast %cst_33 : f32 to vector<128x1xf32>
    %67 = arith.addf %65, %66 : vector<128x1xf32>
    %68 = math.rsqrt %67 : vector<128x1xf32>
    %69 = vector.broadcast %56 : vector<128x1xf32> to vector<128x512xf32>
    %70 = arith.subf %50, %69 : vector<128x512xf32>
    %71 = vector.broadcast %68 : vector<128x1xf32> to vector<128x512xf32>
    %72 = arith.mulf %70, %71 : vector<128x512xf32>
    %73 = vector.broadcast %51 : vector<1x512xf32> to vector<128x512xf32>
    %74 = arith.mulf %72, %73 : vector<128x512xf32>
    %75 = vector.broadcast %52 : vector<1x512xf32> to vector<128x512xf32>
    %76 = arith.addf %74, %75 : vector<128x512xf32>
    %77 = arith.truncf %76 : vector<128x512xf32> to vector<128x512xbf16>
    %c0_34 = arith.constant 0 : index
    %c0_35 = arith.constant 0 : index
    %78 = vector.load %arg10[%c0_34, %c0_35] : memref<512x384xbf16, #tpu.memory_space<vmem>>, vector<512x384xbf16>
    %cst_36 = arith.constant dense<0.000000e+00> : vector<128x384xf32>
    %79 = tpu.matmul %77, %78, %cst_36 {dimension_numbers = #tpu.dot_dimension_numbers<[1], [0], [0], [1], [0, 0, 1, 1], [], []>} : vector<128x512xbf16>, vector<512x384xbf16>, vector<128x384xf32> -> vector<128x384xf32>
    %c0_37 = arith.constant 0 : index
    %c0_38 = arith.constant 0 : index
    %80 = vector.load %arg11[%c0_37, %c0_38] : memref<1x384xf32, #tpu.memory_space<vmem>>, vector<1x384xf32>
    %81 = vector.broadcast %80 : vector<1x384xf32> to vector<128x384xf32>
    %82 = arith.addf %79, %81 : vector<128x384xf32>
    %cst_39 = arith.constant 0.000000e+00 : f32
    %83 = vector.broadcast %cst_39 : f32 to vector<128x384xf32>
    %84 = arith.cmpf ogt, %82, %83 : vector<128x384xf32>
    %85 = math.exp %82 : vector<128x384xf32>
    %cst_40 = arith.constant 1.000000e+00 : f32
    %86 = vector.broadcast %cst_40 : f32 to vector<128x384xf32>
    %87 = arith.subf %85, %86 : vector<128x384xf32>
    %88 = arith.select %84, %82, %87 : vector<128x384xi1>, vector<128x384xf32>
    %c0_41 = arith.constant 0 : index
    %c0_42 = arith.constant 0 : index
    %89 = vector.load %arg12[%c0_41, %c0_42] : memref<1x384xf32, #tpu.memory_space<vmem>>, vector<1x384xf32>
    %c0_43 = arith.constant 0 : index
    %c0_44 = arith.constant 0 : index
    %90 = vector.load %arg13[%c0_43, %c0_44] : memref<1x384xf32, #tpu.memory_space<vmem>>, vector<1x384xf32>
    %cst_45 = arith.constant dense<0.000000e+00> : vector<128xf32>
    %91 = vector.multi_reduction <add>, %88, %cst_45 [1] : vector<128x384xf32> to vector<128xf32>
    %92 = vector.shape_cast %91 : vector<128xf32> to vector<128x1xf32>
    %cst_46 = arith.constant 0.00333333341 : f32
    %93 = vector.broadcast %cst_46 : f32 to vector<128x1xf32>
    %94 = arith.mulf %92, %93 : vector<128x1xf32>
    %95 = arith.mulf %88, %88 : vector<128x384xf32>
    %cst_47 = arith.constant dense<0.000000e+00> : vector<128xf32>
    %96 = vector.multi_reduction <add>, %95, %cst_47 [1] : vector<128x384xf32> to vector<128xf32>
    %97 = vector.shape_cast %96 : vector<128xf32> to vector<128x1xf32>
    %cst_48 = arith.constant 0.00333333341 : f32
    %98 = vector.broadcast %cst_48 : f32 to vector<128x1xf32>
    %99 = arith.mulf %97, %98 : vector<128x1xf32>
    %100 = arith.mulf %94, %94 : vector<128x1xf32>
    %101 = arith.subf %99, %100 : vector<128x1xf32>
    %cst_49 = arith.constant 0.000000e+00 : f32
    %102 = vector.broadcast %cst_49 : f32 to vector<128x1xf32>
    %103 = arith.maximumf %101, %102 : vector<128x1xf32>
    %cst_50 = arith.constant 9.99999974E-6 : f32
    %104 = vector.broadcast %cst_50 : f32 to vector<128x1xf32>
    %105 = arith.addf %103, %104 : vector<128x1xf32>
    %106 = math.rsqrt %105 : vector<128x1xf32>
    %107 = vector.broadcast %94 : vector<128x1xf32> to vector<128x384xf32>
    %108 = arith.subf %88, %107 : vector<128x384xf32>
    %109 = vector.broadcast %106 : vector<128x1xf32> to vector<128x384xf32>
    %110 = arith.mulf %108, %109 : vector<128x384xf32>
    %111 = vector.broadcast %89 : vector<1x384xf32> to vector<128x384xf32>
    %112 = arith.mulf %110, %111 : vector<128x384xf32>
    %113 = vector.broadcast %90 : vector<1x384xf32> to vector<128x384xf32>
    %114 = arith.addf %112, %113 : vector<128x384xf32>
    %c0_51 = arith.constant 0 : index
    %c0_52 = arith.constant 0 : index
    %115 = vector.load %arg14[%c0_51, %c0_52] : memref<1x384xf32, #tpu.memory_space<vmem>>, vector<1x384xf32>
    %cst_53 = arith.constant dense<0.000000e+00> : vector<1x128xf32>
    %116 = tpu.matmul %115, %114, %cst_53 {dimension_numbers = #tpu.dot_dimension_numbers<[1], [1], [0], [0], [0, 0, 1, 0], [], []>} : vector<1x384xf32>, vector<128x384xf32>, vector<1x128xf32> -> vector<1x128xf32>
    %c0_54 = arith.constant 0 : index
    %c0_55 = arith.constant 0 : index
    %117 = vector.load %arg15[%c0_54, %c0_55] : memref<1x1xf32, #tpu.memory_space<vmem>>, vector<1x1xf32>
    %118 = vector.broadcast %117 : vector<1x1xf32> to vector<1x128xf32>
    %119 = arith.addf %116, %118 : vector<1x128xf32>
    %c0_56 = arith.constant 0 : index
    %c0_57 = arith.constant 0 : index
    %120 = vector.load %arg16[%c0_56, %c0_57] : memref<1x128xf32, #tpu.memory_space<vmem>>, vector<1x128xf32>
    tpu.vector_store %arg16[%c0_56, %c0_57], %119 {strides = array<i32>} : memref<1x128xf32, #tpu.memory_space<vmem>>, vector<1x128xf32>,
    return
  }
  func.func @transform_0(%arg0: i32) -> (i32, i32) {
    %c0_i32 = arith.constant 0 : i32
    %c0_i32_0 = arith.constant 0 : i32
    return %arg0, %c0_i32 : i32, i32
  }
  func.func @transform_1(%arg0: i32) -> (i32, i32) {
    %c0_i32 = arith.constant 0 : i32
    %c0_i32_0 = arith.constant 0 : i32
    %c0_i32_1 = arith.constant 0 : i32
    return %c0_i32, %c0_i32_0 : i32, i32
  }
  func.func @transform_2(%arg0: i32) -> (i32, i32) {
    %c0_i32 = arith.constant 0 : i32
    %c0_i32_0 = arith.constant 0 : i32
    %c0_i32_1 = arith.constant 0 : i32
    return %c0_i32, %c0_i32_0 : i32, i32
  }
  func.func @transform_3(%arg0: i32) -> (i32, i32) {
    %c0_i32 = arith.constant 0 : i32
    %c0_i32_0 = arith.constant 0 : i32
    %c0_i32_1 = arith.constant 0 : i32
    return %c0_i32, %c0_i32_0 : i32, i32
  }
  func.func @transform_4(%arg0: i32) -> (i32, i32) {
    %c0_i32 = arith.constant 0 : i32
    %c0_i32_0 = arith.constant 0 : i32
    %c0_i32_1 = arith.constant 0 : i32
    return %c0_i32, %c0_i32_0 : i32, i32
  }
  func.func @transform_5(%arg0: i32) -> (i32, i32) {
    %c0_i32 = arith.constant 0 : i32
    %c0_i32_0 = arith.constant 0 : i32
    %c0_i32_1 = arith.constant 0 : i32
    return %c0_i32, %c0_i32_0 : i32, i32
  }
  func.func @transform_6(%arg0: i32) -> (i32, i32) {
    %c0_i32 = arith.constant 0 : i32
    %c0_i32_0 = arith.constant 0 : i32
    %c0_i32_1 = arith.constant 0 : i32
    return %c0_i32, %c0_i32_0 : i32, i32
  }
  func.func @transform_7(%arg0: i32) -> (i32, i32) {
    %c0_i32 = arith.constant 0 : i32
    %c0_i32_0 = arith.constant 0 : i32
    %c0_i32_1 = arith.constant 0 : i32
    return %c0_i32, %c0_i32_0 : i32, i32
  }
  func.func @transform_8(%arg0: i32) -> (i32, i32) {
    %c0_i32 = arith.constant 0 : i32
    %c0_i32_0 = arith.constant 0 : i32
    %c0_i32_1 = arith.constant 0 : i32
    return %c0_i32, %c0_i32_0 : i32, i32
  }
  func.func @transform_9(%arg0: i32) -> (i32, i32) {
    %c0_i32 = arith.constant 0 : i32
    %c0_i32_0 = arith.constant 0 : i32
    %c0_i32_1 = arith.constant 0 : i32
    return %c0_i32, %c0_i32_0 : i32, i32
  }
  func.func @transform_10(%arg0: i32) -> (i32, i32) {
    %c0_i32 = arith.constant 0 : i32
    %c0_i32_0 = arith.constant 0 : i32
    %c0_i32_1 = arith.constant 0 : i32
    return %c0_i32, %c0_i32_0 : i32, i32
  }
  func.func @transform_11(%arg0: i32) -> (i32, i32) {
    %c0_i32 = arith.constant 0 : i32
    %c0_i32_0 = arith.constant 0 : i32
    %c0_i32_1 = arith.constant 0 : i32
    return %c0_i32, %c0_i32_0 : i32, i32
  }
  func.func @transform_12(%arg0: i32) -> (i32, i32) {
    %c0_i32 = arith.constant 0 : i32
    %c0_i32_0 = arith.constant 0 : i32
    %c0_i32_1 = arith.constant 0 : i32
    return %c0_i32, %c0_i32_0 : i32, i32
  }
  func.func @transform_13(%arg0: i32) -> (i32, i32) {
    %c0_i32 = arith.constant 0 : i32
    %c0_i32_0 = arith.constant 0 : i32
    %c0_i32_1 = arith.constant 0 : i32
    return %c0_i32, %c0_i32_0 : i32, i32
  }
  func.func @transform_14(%arg0: i32) -> (i32, i32) {
    %c0_i32 = arith.constant 0 : i32
    %c0_i32_0 = arith.constant 0 : i32
    %c0_i32_1 = arith.constant 0 : i32
    return %c0_i32, %c0_i32_0 : i32, i32
  }
  func.func @transform_15(%arg0: i32) -> (i32, i32) {
    %c0_i32 = arith.constant 0 : i32
    %c0_i32_0 = arith.constant 0 : i32
    return %c0_i32, %arg0 : i32, i32
  }
}

</mosaic_0001>

<llo_original>
// kernel: tpu_custom_call.1
$region0: #{tpu_custom_call.1}
  #allocation0 [shape = 'u32[]', space=smem, size = 0x4, offset = 0x4, fixed_abs, tag = 'smem constant byte address 0x4 - core index']
  #allocation1 [shape = 'u32[144,128]{1,0:T(1,128)}', space=vmem, size = 0x12000, scoped, tag = 'internal scratch']
  #allocation2 [shape = 'f32[1,1]{1,0:T(1,128)S(1)}', space=vmem, size = 0x200, scoped, tag = 'scoped memory for tpu_custom_call.1']
  %s0 = inlined_call_operand.vmem [shape: f32[256,32], index: 0, kind: input, shape index: {}]
  %s1 = inlined_call_operand.vmem [shape: bf16[32,512], index: 1, kind: input, shape index: {}]
  %s2 = inlined_call_operand.vmem [shape: f32[1,512], index: 2, kind: input, shape index: {}]
  %s3 = inlined_call_operand.vmem [shape: f32[1,512], index: 3, kind: input, shape index: {}]
  %s4 = inlined_call_operand.vmem [shape: f32[1,512], index: 4, kind: input, shape index: {}]
  %s5 = inlined_call_operand.hbm [shape: bf16[512,512], index: 5, kind: input, shape index: {}]
  %s6 = inlined_call_operand.vmem [shape: f32[1,512], index: 6, kind: input, shape index: {}]
  %s7 = inlined_call_operand.vmem [shape: f32[1,512], index: 7, kind: input, shape index: {}]
  %s8 = inlined_call_operand.vmem [shape: f32[1,512], index: 8, kind: input, shape index: {}]
  %s9 = inlined_call_operand.hbm [shape: bf16[512,384], index: 9, kind: input, shape index: {}]
  %s10 = inlined_call_operand.vmem [shape: f32[1,384], index: 10, kind: input, shape index: {}]
  %s11 = inlined_call_operand.vmem [shape: f32[1,384], index: 11, kind: input, shape index: {}]
  %s12 = inlined_call_operand.vmem [shape: f32[1,384], index: 12, kind: input, shape index: {}]
  %s13 = inlined_call_operand.vmem [shape: f32[1,384], index: 13, kind: input, shape index: {}]
  %s14 = inlined_call_operand.<no memory space> [shape: f32[1,1], index: 14, kind: input, shape index: {}]
  %s15 = inlined_call_operand.hbm [shape: f32[1,256], index: 15, kind: output, shape index: {}]
  %s16 = sld [smem:[#allocation0]]
  $region101: #{tpu_custom_call.1} parent=0
    _
  %s18 = ssub.s32 1, %s16
  %s19 = scalar_select 0, %s18, %s16
  %v20 = vstv %s14
  %21 = vst [vmem:[#allocation2] sm:$0x1] %v20
  $region1: #{tpu_custom_call.1} parent=0
    #allocation3 [shape = 'u8[524288]{0}', space=vmem, size = 0x80000, scoped, tag = 'input window, operand 5, single buffered']
    #allocation4 [shape = 's32[2]{0}', space=sflag, size = 0x8, scoped, tag = 'scoped memory for tpu_custom_call.1']
    #allocation5 [shape = 's32[2]{0}', space=sflag, size = 0x8, scoped, tag = 'scoped memory for tpu_custom_call.1']
    #allocation6 [shape = 'u8[393216]{0}', space=vmem, size = 0x60000, scoped, tag = 'input window, operand 9, single buffered']
    #allocation7 [shape = 's32[1]{0}', space=sflag, size = 0x4, scoped, tag = 'scoped memory for tpu_custom_call.1']
    #allocation8 [shape = 'u8[1024]{0}', space=vmem, size = 0x400, scoped, tag = 'output window, operand 0']
    %22 = vsyncpa [#allocation4], 0
    %23 = vsyncpa [#allocation7], 0
    %24 = vsyncpa [#allocation5], 0
    %s25 = scalar_lea.sflag [#allocation5], 1
    %26 = vsyncpa %s25, 0
    loop: start=0, step=1, limit=4
    $region2: #{tpu_custom_call.1} parent=1 // loop_pre_header
      _
    $region3: #{tpu_custom_call.1} parent=1 // loop_header
      %s28 = sphi 0, %s32
      %p29 = scmp.ge.s32.totalorder %s28, 4
      %s38 = sphi 0, %s40
      %s41 = sphi 0, %s38
      %s42 = sphi 0, %s41
      %s58 = sphi 0, %s42
      %s62 = sphi 0, %s62
      %s64 = sphi 0, %s62
      %s65 = sphi 0, %s64
      %s79 = sphi 0, %s65
      %s83 = sphi 0, %s83
      %s85 = sphi 0, %s83
      %s86 = sphi 0, %s85
      %s100 = sphi 0, %s86
      %s104 = sphi 0, %s104
      %s106 = sphi 0, %s104
      %s107 = sphi 0, %s106
      %s121 = sphi 0, %s107
      %s125 = sphi 0, %s125
      %s127 = sphi 0, %s125
      %s128 = sphi 0, %s127
      %s142 = sphi 0, %s128
      %s146 = sphi 0, %s146
      %s148 = sphi 0, %s146
      %s149 = sphi 0, %s148
      %s163 = sphi 0, %s149
      %s167 = sphi 0, %s167
      %s169 = sphi 0, %s167
      %s170 = sphi 0, %s169
      %s184 = sphi 0, %s170
      %s188 = sphi 0, %s188
      %s190 = sphi 0, %s188
      %s191 = sphi 0, %s190
      %s205 = sphi 0, %s191
      %s209 = sphi 0, %s209
      %s211 = sphi 0, %s209
      %s212 = sphi 0, %s211
      %s226 = sphi 0, %s212
      %s230 = sphi 0, %s230
      %s232 = sphi 0, %s230
      %s233 = sphi 0, %s232
      %s247 = sphi 0, %s233
      %s251 = sphi 0, %s251
      %s253 = sphi 0, %s251
      %s254 = sphi 0, %s253
      %s268 = sphi 0, %s254
      %s272 = sphi 0, %s272
      %s274 = sphi 0, %s272
      %s275 = sphi 0, %s274
      %s289 = sphi 0, %s275
      %s293 = sphi 0, %s293
      %s295 = sphi 0, %s293
      %s296 = sphi 0, %s295
      %s310 = sphi 0, %s296
      %s314 = sphi 0, %s314
      %s316 = sphi 0, %s314
      %s317 = sphi 0, %s316
      %s331 = sphi 0, %s317
      %s335 = sphi 0, %s335
      %s337 = sphi 0, %s335
      %s338 = sphi 0, %s337
      %s352 = sphi 0, %s338
      %s358 = sphi 0, %s360
      %s361 = sphi 0, %s358
      %s362 = sphi 0, %s361
      %s378 = sphi 0, %s362
    $region4: #{tpu_custom_call.1} parent=1 // loop_header_branch
      %31 = sbr.rel (%p29) target = $region8
    $region5: #{tpu_custom_call.1} parent=1 // loop_body
      %s33 = ssub.s32 %s28, 1
      %s34 = ssub.s32 %s28, 2
      %s35 = sadd.s32 %s28, 1
      %s36 = ssub.s32 %s28, %s35
      %p37 = scmp.eq.s32.totalorder %s36, 0
      %s39 = sadd.s32 %s38, 1
      %s40 = scalar_select %p37, %s38, %s39
      %p43 = pneg %p37
      %p44 = scmp.eq.s32.totalorder %s28, 1
      %p45 = por %p43, %p44
      %p46 = scmp.ne.s32.totalorder %s38, %s41
      %p47 = scmp.eq.s32.totalorder %s28, 0
      %p48 = por %p46, %p47
      %p49 = scmp.ne.s32.totalorder %s38, %s41
      %p50 = scmp.eq.s32.totalorder %s33, 1
      %p51 = por %p49, %p50
      %p52 = scmp.ne.s32.totalorder %s41, %s42
      %p53 = scmp.eq.s32.totalorder %s33, 0
      %p54 = por %p52, %p53
      %p55 = scmp.ne.s32.totalorder %s41, %s42
      %p56 = scmp.eq.s32.totalorder %s34, 1
      %p57 = por %p55, %p56
      %p59 = scmp.ne.s32.totalorder %s42, %s58
      %p60 = scmp.eq.s32.totalorder %s34, 0
      %p61 = por %p59, %p60
      %s63 = sadd.s32 %s62, 1
      %p66 = scmp.eq.s32.totalorder %s28, 1
      %p67 = scmp.ne.s32.totalorder %s62, %s64
      %p68 = scmp.eq.s32.totalorder %s28, 0
      %p69 = por %p67, %p68
      %p70 = scmp.ne.s32.totalorder %s62, %s64
      %p71 = scmp.eq.s32.totalorder %s33, 1
      %p72 = por %p70, %p71
      %p73 = scmp.ne.s32.totalorder %s64, %s65
      %p74 = scmp.eq.s32.totalorder %s33, 0
      %p75 = por %p73, %p74
      %p76 = scmp.ne.s32.totalorder %s64, %s65
      %p77 = scmp.eq.s32.totalorder %s34, 1
      %p78 = por %p76, %p77
      %p80 = scmp.ne.s32.totalorder %s65, %s79
      %p81 = scmp.eq.s32.totalorder %s34, 0
      %p82 = por %p80, %p81
      %s84 = sadd.s32 %s83, 1
      %p87 = scmp.eq.s32.totalorder %s28, 1
      %p88 = scmp.ne.s32.totalorder %s83, %s85
      %p89 = scmp.eq.s32.totalorder %s28, 0
      %p90 = por %p88, %p89
      %p91 = scmp.ne.s32.totalorder %s83, %s85
      %p92 = scmp.eq.s32.totalorder %s33, 1
      %p93 = por %p91, %p92
      %p94 = scmp.ne.s32.totalorder %s85, %s86
      %p95 = scmp.eq.s32.totalorder %s33, 0
      %p96 = por %p94, %p95
      %p97 = scmp.ne.s32.totalorder %s85, %s86
      %p98 = scmp.eq.s32.totalorder %s34, 1
      %p99 = por %p97, %p98
      %p101 = scmp.ne.s32.totalorder %s86, %s100
      %p102 = scmp.eq.s32.totalorder %s34, 0
      %p103 = por %p101, %p102
      %s105 = sadd.s32 %s104, 1
      %p108 = scmp.eq.s32.totalorder %s28, 1
      %p109 = scmp.ne.s32.totalorder %s104, %s106
      %p110 = scmp.eq.s32.totalorder %s28, 0
      %p111 = por %p109, %p110
      %p112 = scmp.ne.s32.totalorder %s104, %s106
      %p113 = scmp.eq.s32.totalorder %s33, 1
      %p114 = por %p112, %p113
      %p115 = scmp.ne.s32.totalorder %s106, %s107
      %p116 = scmp.eq.s32.totalorder %s33, 0
      %p117 = por %p115, %p116
      %p118 = scmp.ne.s32.totalorder %s106, %s107
      %p119 = scmp.eq.s32.totalorder %s34, 1
      %p120 = por %p118, %p119
      %p122 = scmp.ne.s32.totalorder %s107, %s121
      %p123 = scmp.eq.s32.totalorder %s34, 0
      %p124 = por %p122, %p123
      %s126 = sadd.s32 %s125, 1
      %p129 = scmp.eq.s32.totalorder %s28, 1
      %p130 = scmp.ne.s32.totalorder %s125, %s127
      %p131 = scmp.eq.s32.totalorder %s28, 0
      %p132 = por %p130, %p131
      %p133 = scmp.ne.s32.totalorder %s125, %s127
      %p134 = scmp.eq.s32.totalorder %s33, 1
      %p135 = por %p133, %p134
      %p136 = scmp.ne.s32.totalorder %s127, %s128
      %p137 = scmp.eq.s32.totalorder %s33, 0
      %p138 = por %p136, %p137
      %p139 = scmp.ne.s32.totalorder %s127, %s128
      %p140 = scmp.eq.s32.totalorder %s34, 1
      %p141 = por %p139, %p140
      %p143 = scmp.ne.s32.totalorder %s128, %s142
      %p144 = scmp.eq.s32.totalorder %s34, 0
      %p145 = por %p143, %p144
      %s147 = sadd.s32 %s146, 1
      %p150 = scmp.eq.s32.totalorder %s28, 1
      %p151 = scmp.ne.s32.totalorder %s146, %s148
      %p152 = scmp.eq.s32.totalorder %s28, 0
      %p153 = por %p151, %p152
      %p154 = scmp.ne.s32.totalorder %s146, %s148
      %p155 = scmp.eq.s32.totalorder %s33, 1
      %p156 = por %p154, %p155
      %p157 = scmp.ne.s32.totalorder %s148, %s149
      %p158 = scmp.eq.s32.totalorder %s33, 0
      %p159 = por %p157, %p158
      %p160 = scmp.ne.s32.totalorder %s148, %s149
      %p161 = scmp.eq.s32.totalorder %s34, 1
      %p162 = por %p160, %p161
      %p164 = scmp.ne.s32.totalorder %s149, %s163
      %p165 = scmp.eq.s32.totalorder %s34, 0
      %p166 = por %p164, %p165
      %s168 = sadd.s32 %s167, 1
      %p171 = scmp.eq.s32.totalorder %s28, 1
      %p172 = scmp.ne.s32.totalorder %s167, %s169
      %p173 = scmp.eq.s32.totalorder %s28, 0
      %p174 = por %p172, %p173
      %p175 = scmp.ne.s32.totalorder %s167, %s169
      %p176 = scmp.eq.s32.totalorder %s33, 1
      %p177 = por %p175, %p176
      %p178 = scmp.ne.s32.totalorder %s169, %s170
      %p179 = scmp.eq.s32.totalorder %s33, 0
      %p180 = por %p178, %p179
      %p181 = scmp.ne.s32.totalorder %s169, %s170
      %p182 = scmp.eq.s32.totalorder %s34, 1
      %p183 = por %p181, %p182
      %p185 = scmp.ne.s32.totalorder %s170, %s184
      %p186 = scmp.eq.s32.totalorder %s34, 0
      %p187 = por %p185, %p186
      %s189 = sadd.s32 %s188, 1
      %p192 = scmp.eq.s32.totalorder %s28, 1
      %p193 = scmp.ne.s32.totalorder %s188, %s190
      %p194 = scmp.eq.s32.totalorder %s28, 0
      %p195 = por %p193, %p194
      %p196 = scmp.ne.s32.totalorder %s188, %s190
      %p197 = scmp.eq.s32.totalorder %s33, 1
      %p198 = por %p196, %p197
      %p199 = scmp.ne.s32.totalorder %s190, %s191
      %p200 = scmp.eq.s32.totalorder %s33, 0
      %p201 = por %p199, %p200
      %p202 = scmp.ne.s32.totalorder %s190, %s191
      %p203 = scmp.eq.s32.totalorder %s34, 1
      %p204 = por %p202, %p203
      %p206 = scmp.ne.s32.totalorder %s191, %s205
      %p207 = scmp.eq.s32.totalorder %s34, 0
      %p208 = por %p206, %p207
      %s210 = sadd.s32 %s209, 1
      %p213 = scmp.eq.s32.totalorder %s28, 1
      %p214 = scmp.ne.s32.totalorder %s209, %s211
      %p215 = scmp.eq.s32.totalorder %s28, 0
      %p216 = por %p214, %p215
      %p217 = scmp.ne.s32.totalorder %s209, %s211
      %p218 = scmp.eq.s32.totalorder %s33, 1
      %p219 = por %p217, %p218
      %p220 = scmp.ne.s32.totalorder %s211, %s212
      %p221 = scmp.eq.s32.totalorder %s33, 0
      %p222 = por %p220, %p221
      %p223 = scmp.ne.s32.totalorder %s211, %s212
      %p224 = scmp.eq.s32.totalorder %s34, 1
      %p225 = por %p223, %p224
      %p227 = scmp.ne.s32.totalorder %s212, %s226
      %p228 = scmp.eq.s32.totalorder %s34, 0
      %p229 = por %p227, %p228
      %s231 = sadd.s32 %s230, 1
      %p234 = scmp.eq.s32.totalorder %s28, 1
      %p235 = scmp.ne.s32.totalorder %s230, %s232
      %p236 = scmp.eq.s32.totalorder %s28, 0
      %p237 = por %p235, %p236
      %p238 = scmp.ne.s32.totalorder %s230, %s232
      %p239 = scmp.eq.s32.totalorder %s33, 1
      %p240 = por %p238, %p239
      %p241 = scmp.ne.s32.totalorder %s232, %s233
      %p242 = scmp.eq.s32.totalorder %s33, 0
      %p243 = por %p241, %p242
      %p244 = scmp.ne.s32.totalorder %s232, %s233
      %p245 = scmp.eq.s32.totalorder %s34, 1
      %p246 = por %p244, %p245
      %p248 = scmp.ne.s32.totalorder %s233, %s247
      %p249 = scmp.eq.s32.totalorder %s34, 0
      %p250 = por %p248, %p249
      %s252 = sadd.s32 %s251, 1
      %p255 = scmp.eq.s32.totalorder %s28, 1
      %p256 = scmp.ne.s32.totalorder %s251, %s253
      %p257 = scmp.eq.s32.totalorder %s28, 0
      %p258 = por %p256, %p257
      %p259 = scmp.ne.s32.totalorder %s251, %s253
      %p260 = scmp.eq.s32.totalorder %s33, 1
      %p261 = por %p259, %p260
      %p262 = scmp.ne.s32.totalorder %s253, %s254
      %p263 = scmp.eq.s32.totalorder %s33, 0
      %p264 = por %p262, %p263
      %p265 = scmp.ne.s32.totalorder %s253, %s254
      %p266 = scmp.eq.s32.totalorder %s34, 1
      %p267 = por %p265, %p266
      %p269 = scmp.ne.s32.totalorder %s254, %s268
      %p270 = scmp.eq.s32.totalorder %s34, 0
      %p271 = por %p269, %p270
      %s273 = sadd.s32 %s272, 1
      %p276 = scmp.eq.s32.totalorder %s28, 1
      %p277 = scmp.ne.s32.totalorder %s272, %s274
      %p278 = scmp.eq.s32.totalorder %s28, 0
      %p279 = por %p277, %p278
      %p280 = scmp.ne.s32.totalorder %s272, %s274
      %p281 = scmp.eq.s32.totalorder %s33, 1
      %p282 = por %p280, %p281
      %p283 = scmp.ne.s32.totalorder %s274, %s275
      %p284 = scmp.eq.s32.totalorder %s33, 0
      %p285 = por %p283, %p284
      %p286 = scmp.ne.s32.totalorder %s274, %s275
      %p287 = scmp.eq.s32.totalorder %s34, 1
      %p288 = por %p286, %p287
      %p290 = scmp.ne.s32.totalorder %s275, %s289
      %p291 = scmp.eq.s32.totalorder %s34, 0
      %p292 = por %p290, %p291
      %s294 = sadd.s32 %s293, 1
      %p297 = scmp.eq.s32.totalorder %s28, 1
      %p298 = scmp.ne.s32.totalorder %s293, %s295
      %p299 = scmp.eq.s32.totalorder %s28, 0
      %p300 = por %p298, %p299
      %p301 = scmp.ne.s32.totalorder %s293, %s295
      %p302 = scmp.eq.s32.totalorder %s33, 1
      %p303 = por %p301, %p302
      %p304 = scmp.ne.s32.totalorder %s295, %s296
      %p305 = scmp.eq.s32.totalorder %s33, 0
      %p306 = por %p304, %p305
      %p307 = scmp.ne.s32.totalorder %s295, %s296
      %p308 = scmp.eq.s32.totalorder %s34, 1
      %p309 = por %p307, %p308
      %p311 = scmp.ne.s32.totalorder %s296, %s310
      %p312 = scmp.eq.s32.totalorder %s34, 0
      %p313 = por %p311, %p312
      %s315 = sadd.s32 %s314, 1
      %p318 = scmp.eq.s32.totalorder %s28, 1
      %p319 = scmp.ne.s32.totalorder %s314, %s316
      %p320 = scmp.eq.s32.totalorder %s28, 0
      %p321 = por %p319, %p320
      %p322 = scmp.ne.s32.totalorder %s314, %s316
      %p323 = scmp.eq.s32.totalorder %s33, 1
      %p324 = por %p322, %p323
      %p325 = scmp.ne.s32.totalorder %s316, %s317
      %p326 = scmp.eq.s32.totalorder %s33, 0
      %p327 = por %p325, %p326
      %p328 = scmp.ne.s32.totalorder %s316, %s317
      %p329 = scmp.eq.s32.totalorder %s34, 1
      %p330 = por %p328, %p329
      %p332 = scmp.ne.s32.totalorder %s317, %s331
      %p333 = scmp.eq.s32.totalorder %s34, 0
      %p334 = por %p332, %p333
      %s336 = sadd.s32 %s335, 1
      %p339 = scmp.eq.s32.totalorder %s28, 1
      %p340 = scmp.ne.s32.totalorder %s335, %s337
      %p341 = scmp.eq.s32.totalorder %s28, 0
      %p342 = por %p340, %p341
      %p343 = scmp.ne.s32.totalorder %s335, %s337
      %p344 = scmp.eq.s32.totalorder %s33, 1
      %p345 = por %p343, %p344
      %p346 = scmp.ne.s32.totalorder %s337, %s338
      %p347 = scmp.eq.s32.totalorder %s33, 0
      %p348 = por %p346, %p347
      %p349 = scmp.ne.s32.totalorder %s337, %s338
      %p350 = scmp.eq.s32.totalorder %s34, 1
      %p351 = por %p349, %p350
      %p353 = scmp.ne.s32.totalorder %s338, %s352
      %p354 = scmp.eq.s32.totalorder %s34, 0
      %p355 = por %p353, %p354
      %s356 = ssub.s32 %s28, %s35
      %p357 = scmp.eq.s32.totalorder %s356, 0
      %s359 = sadd.s32 %s358, 1
      %s360 = scalar_select %p357, %s358, %s359
      %p363 = pneg %p357
      %p364 = scmp.eq.s32.totalorder %s28, 1
      %p365 = por %p363, %p364
      %p366 = scmp.ne.s32.totalorder %s358, %s361
      %p367 = scmp.eq.s32.totalorder %s28, 0
      %p368 = por %p366, %p367
      %p369 = scmp.ne.s32.totalorder %s358, %s361
      %p370 = scmp.eq.s32.totalorder %s33, 1
      %p371 = por %p369, %p370
      %p372 = scmp.ne.s32.totalorder %s361, %s362
      %p373 = scmp.eq.s32.totalorder %s33, 0
      %p374 = por %p372, %p373
      %p375 = scmp.ne.s32.totalorder %s361, %s362
      %p376 = scmp.eq.s32.totalorder %s34, 1
      %p377 = por %p375, %p376
      %p379 = scmp.ne.s32.totalorder %s362, %s378
      %p380 = scmp.eq.s32.totalorder %s34, 0
      %p381 = por %p379, %p380
      %p382 = scmp.le.s32.totalorder 1, %s28
      %p383 = scmp.lt.s32.totalorder %s28, 3
      %p384 = pnand %p382, %p383
      %p385 = pneg %p384
      // Predicated region
      $region9: #{tpu_custom_call.1} parent=5 // pred_check
        _
      $region10: #{tpu_custom_call.1} parent=5 // pred_check_branch
        %387 = sbr.rel (%p384) target = $region12
      $region11: #{tpu_custom_call.1} parent=5 // pred_region
        %s388 = ssub.s32 %s28, 1
        // Predicated region
        $region13: #{tpu_custom_call.1} parent=11 // pred_check
          %p389 = pneg %p75
        $region14: #{tpu_custom_call.1} parent=11 // pred_check_branch
          %391 = sbr.rel (%p389) target = $region16
        $region15: #{tpu_custom_call.1} parent=11 // pred_region
          _
        $region16: #{tpu_custom_call.1} parent=11 // pred_fallthru
          _
        // Predicated region
        $region17: #{tpu_custom_call.1} parent=11 // pred_check
          %p392 = pneg %p96
        $region18: #{tpu_custom_call.1} parent=11 // pred_check_branch
          %394 = sbr.rel (%p392) target = $region20
        $region19: #{tpu_custom_call.1} parent=11 // pred_region
          _
        $region20: #{tpu_custom_call.1} parent=11 // pred_fallthru
          _
        // Predicated region
        $region21: #{tpu_custom_call.1} parent=11 // pred_check
          %p395 = pneg %p117
        $region22: #{tpu_custom_call.1} parent=11 // pred_check_branch
          %397 = sbr.rel (%p395) target = $region24
        $region23: #{tpu_custom_call.1} parent=11 // pred_region
          _
        $region24: #{tpu_custom_call.1} parent=11 // pred_fallthru
          _
        // Predicated region
        $region25: #{tpu_custom_call.1} parent=11 // pred_check
          %p398 = pneg %p138
        $region26: #{tpu_custom_call.1} parent=11 // pred_check_branch
          %400 = sbr.rel (%p398) target = $region28
        $region27: #{tpu_custom_call.1} parent=11 // pred_region
          _
        $region28: #{tpu_custom_call.1} parent=11 // pred_fallthru
          _
        // Predicated region
        $region29: #{tpu_custom_call.1} parent=11 // pred_check
          %p401 = pneg %p159
        $region30: #{tpu_custom_call.1} parent=11 // pred_check_branch
          %403 = sbr.rel (%p401) target = $region32
        $region31: #{tpu_custom_call.1} parent=11 // pred_region
          %s405 = ssub.s32 16384, 16384
          %406 = vsyncadd [#allocation4], %s405
          %s407 = sshll.u32 [#allocation3], 4
          %s408 = int_to_ptr.vmem [resolvable:$true] %s407
          %413 = dma.hbm_to_vmem [thread:$0]  %s5, 16384, %s408, [#allocation4], 256, 256, 16
        $region32: #{tpu_custom_call.1} parent=11 // pred_fallthru
          _
        // Predicated region
        $region33: #{tpu_custom_call.1} parent=11 // pred_check
          %p414 = pneg %p180
        $region34: #{tpu_custom_call.1} parent=11 // pred_check_branch
          %416 = sbr.rel (%p414) target = $region36
        $region35: #{tpu_custom_call.1} parent=11 // pred_region
          _
        $region36: #{tpu_custom_call.1} parent=11 // pred_fallthru
          _
        // Predicated region
        $region37: #{tpu_custom_call.1} parent=11 // pred_check
          %p417 = pneg %p201
        $region38: #{tpu_custom_call.1} parent=11 // pred_check_branch
          %419 = sbr.rel (%p417) target = $region40
        $region39: #{tpu_custom_call.1} parent=11 // pred_region
          _
        $region40: #{tpu_custom_call.1} parent=11 // pred_fallthru
          _
        // Predicated region
        $region41: #{tpu_custom_call.1} parent=11 // pred_check
          %p420 = pneg %p222
        $region42: #{tpu_custom_call.1} parent=11 // pred_check_branch
          %422 = sbr.rel (%p420) target = $region44
        $region43: #{tpu_custom_call.1} parent=11 // pred_region
          _
        $region44: #{tpu_custom_call.1} parent=11 // pred_fallthru
          _
        // Predicated region
        $region45: #{tpu_custom_call.1} parent=11 // pred_check
          %p423 = pneg %p243
        $region46: #{tpu_custom_call.1} parent=11 // pred_check_branch
          %425 = sbr.rel (%p423) target = $region48
        $region47: #{tpu_custom_call.1} parent=11 // pred_region
          %s427 = ssub.s32 12288, 12288
          %428 = vsyncadd [#allocation7], %s427
          %s429 = sshll.u32 [#allocation6], 4
          %s430 = int_to_ptr.vmem [resolvable:$true] %s429
          %435 = dma.hbm_to_vmem [thread:$0]  %s9, 12288, %s430, [#allocation7], 192, 192, 12
        $region48: #{tpu_custom_call.1} parent=11 // pred_fallthru
          _
        // Predicated region
        $region49: #{tpu_custom_call.1} parent=11 // pred_check
          %p436 = pneg %p264
        $region50: #{tpu_custom_call.1} parent=11 // pred_check_branch
          %438 = sbr.rel (%p436) target = $region52
        $region51: #{tpu_custom_call.1} parent=11 // pred_region
          _
        $region52: #{tpu_custom_call.1} parent=11 // pred_fallthru
          _
        // Predicated region
        $region53: #{tpu_custom_call.1} parent=11 // pred_check
          %p439 = pneg %p285
        $region54: #{tpu_custom_call.1} parent=11 // pred_check_branch
          %441 = sbr.rel (%p439) target = $region56
        $region55: #{tpu_custom_call.1} parent=11 // pred_region
          _
        $region56: #{tpu_custom_call.1} parent=11 // pred_fallthru
          _
        // Predicated region
        $region57: #{tpu_custom_call.1} parent=11 // pred_check
          %p442 = pneg %p306
        $region58: #{tpu_custom_call.1} parent=11 // pred_check_branch
          %444 = sbr.rel (%p442) target = $region60
        $region59: #{tpu_custom_call.1} parent=11 // pred_region
          _
        $region60: #{tpu_custom_call.1} parent=11 // pred_fallthru
          _
        // Predicated region
        $region61: #{tpu_custom_call.1} parent=11 // pred_check
          %p445 = pneg %p327
        $region62: #{tpu_custom_call.1} parent=11 // pred_check_branch
          %447 = sbr.rel (%p445) target = $region64
        $region63: #{tpu_custom_call.1} parent=11 // pred_region
          _
        $region64: #{tpu_custom_call.1} parent=11 // pred_fallthru
          _
        // Predicated region
        $region65: #{tpu_custom_call.1} parent=11 // pred_check
          %p448 = pneg %p348
        $region66: #{tpu_custom_call.1} parent=11 // pred_check_branch
          %450 = sbr.rel (%p448) target = $region68
        $region67: #{tpu_custom_call.1} parent=11 // pred_region
          _
        $region68: #{tpu_custom_call.1} parent=11 // pred_fallthru
          _
      $region12: #{tpu_custom_call.1} parent=5 // pred_fallthru
        _
      %p451 = scmp.lt.s32.totalorder %s28, 2
      // Predicated region
      $region69: #{tpu_custom_call.1} parent=5 // pred_check
        %p452 = pneg %p451
      $region70: #{tpu_custom_call.1} parent=5 // pred_check_branch
        %454 = sbr.rel (%p452) target = $region72
      $region71: #{tpu_custom_call.1} parent=5 // pred_region
        // Predicated region
        $region73: #{tpu_custom_call.1} parent=71 // pred_check
          %p455 = pneg %p48
        $region74: #{tpu_custom_call.1} parent=71 // pred_check_branch
          %457 = sbr.rel (%p455) target = $region76
        $region75: #{tpu_custom_call.1} parent=71 // pred_region
          %s458 = smul.u32 16, %s28
          %p459 = scmp.lt.s32.totalorder %s458, 31
          %s460 = scalar_select %p459, %s458, 31
          %s461 = smul.addr %s460, 8
          %s462 = scalar_lea.vmem %s0, %s461
          %s463 = smul.u32 16, %s28
        $region76: #{tpu_custom_call.1} parent=71 // pred_fallthru
          _
      $region72: #{tpu_custom_call.1} parent=5 // pred_fallthru
        _
      %p464 = scmp.le.s32.totalorder 1, %s28
      %p465 = scmp.lt.s32.totalorder %s28, 3
      %p466 = pnand %p464, %p465
      %p467 = pneg %p466
      // Predicated region
      $region77: #{tpu_custom_call.1} parent=5 // pred_check
        _
      $region78: #{tpu_custom_call.1} parent=5 // pred_check_branch
        %469 = sbr.rel (%p466) target = $region80
      $region79: #{tpu_custom_call.1} parent=5 // pred_region
        %s470 = ssub.s32 %s28, 1
        // Predicated region
        $region81: #{tpu_custom_call.1} parent=79 // pred_check
          %p471 = pneg %p159
        $region82: #{tpu_custom_call.1} parent=79 // pred_check_branch
          %473 = sbr.rel (%p471) target = $region84
        $region83: #{tpu_custom_call.1} parent=79 // pred_region
          %474 = dma.done [#allocation4], 16384
        $region84: #{tpu_custom_call.1} parent=79 // pred_fallthru
          _
        // Predicated region
        $region85: #{tpu_custom_call.1} parent=79 // pred_check
          %p475 = pneg %p243
        $region86: #{tpu_custom_call.1} parent=79 // pred_check_branch
          %477 = sbr.rel (%p475) target = $region88
        $region87: #{tpu_custom_call.1} parent=79 // pred_region
          %478 = dma.done [#allocation7], 12288
        $region88: #{tpu_custom_call.1} parent=79 // pred_fallthru
          _
        %s479 = smul.u32 16, %s33
        %p480 = scmp.lt.s32.totalorder %s479, 31
        %s481 = scalar_select %p480, %s479, 31
        %s482 = smul.addr %s481, 8
        %s483 = scalar_lea.vmem %s0, %s482
        %p484 = pneg %p54
        %p485 = pneg %p51
        %p486 = pneg %p75
        %p487 = pneg %p72
        %p488 = pneg %p96
        %p489 = pneg %p93
        %p490 = pneg %p117
        %p491 = pneg %p114
        %p492 = pneg %p138
        %p493 = pneg %p135
        %p494 = pneg %p159
        %p495 = pneg %p156
        %p496 = pneg %p180
        %p497 = pneg %p177
        %p498 = pneg %p201
        %p499 = pneg %p198
        %p500 = pneg %p222
        %p501 = pneg %p219
        %p502 = pneg %p243
        %p503 = pneg %p240
        %p504 = pneg %p264
        %p505 = pneg %p261
        %p506 = pneg %p285
        %p507 = pneg %p282
        %p508 = pneg %p306
        %p509 = pneg %p303
        %p510 = pneg %p327
        %p511 = pneg %p324
        %p512 = pneg %p348
        %p513 = pneg %p345
        %p514 = pneg %p374
        %p515 = pneg %p371
        %s516 = sand.u32 %s361, 1
        %s517 = scalar_lea.sflag [#allocation5], %s516
        %s518 = sand.u32 %s361, 1
        %s519 = scalar_lea.vmem [#allocation8], %s518
        %s520 = smul.u32 16, %s33
        %p521 = scmp.lt.s32.totalorder %s520, 31
        %s522 = scalar_select %p521, %s520, 31
        %s523 = smul.addr %s522, 8
        %s524 = scalar_lea.vmem %s0, %s523
        %s525 = smul.u32 16, %s33
        %v527 = vld [vmem:[%s524] sm:$0xff]
        %v528 = vld [vmem:[%s524 + $0x8] sm:$0xff]
        %v529 = vld [vmem:[%s524 + $0x10] sm:$0xff]
        %v530 = vld [vmem:[%s524 + $0x18] sm:$0xff]
        %v531 = vld [vmem:[%s524 + $0x20] sm:$0xff]
        %v532 = vld [vmem:[%s524 + $0x28] sm:$0xff]
        %v533 = vld [vmem:[%s524 + $0x30] sm:$0xff]
        %v534 = vld [vmem:[%s524 + $0x38] sm:$0xff]
        %v535 = vld [vmem:[%s524 + $0x40] sm:$0xff]
        %v536 = vld [vmem:[%s524 + $0x48] sm:$0xff]
        %v537 = vld [vmem:[%s524 + $0x50] sm:$0xff]
        %v538 = vld [vmem:[%s524 + $0x58] sm:$0xff]
        %v539 = vld [vmem:[%s524 + $0x60] sm:$0xff]
        %v540 = vld [vmem:[%s524 + $0x68] sm:$0xff]
        %v541 = vld [vmem:[%s524 + $0x70] sm:$0xff]
        %v542 = vld [vmem:[%s524 + $0x78] sm:$0xff]
        %v543 = vpack.c.bf16 %v528, %v527
        %v544 = vpack.c.bf16 %v530, %v529
        %v545 = vpack.c.bf16 %v532, %v531
        %v546 = vpack.c.bf16 %v534, %v533
        %v547 = vpack.c.bf16 %v536, %v535
        %v548 = vpack.c.bf16 %v538, %v537
        %v549 = vpack.c.bf16 %v540, %v539
        %v550 = vpack.c.bf16 %v542, %v541
        %v551 = vld [vmem:[%s1] sm:$0xff]
        %v552 = vld [vmem:[%s1 + $0x8] sm:$0xff]
        %v553 = vld [vmem:[%s1 + $0x10] sm:$0xff]
        %v554 = vld [vmem:[%s1 + $0x18] sm:$0xff]
        %v555 = vld [vmem:[%s1 + $0x20] sm:$0xff]
        %v556 = vld [vmem:[%s1 + $0x28] sm:$0xff]
        %v557 = vld [vmem:[%s1 + $0x30] sm:$0xff]
        %v558 = vld [vmem:[%s1 + $0x38] sm:$0xff]
        %v559 = vld [vmem:[%s2] sm:$0xf]
        %v561 = vlaneseq
        %v562 = vshrl.u32 %v561, 7
        %v563 = vsub.s32 0, %v562
        %v564 = vrot.slane %v559, %v563
        %v565 = vlaneseq
        %v566 = vshrl.u32 %v565, 7
        %v567 = vsub.s32 1, %v566
        %v568 = vrot.slane %v559, %v567
        %v569 = vlaneseq
        %v570 = vshrl.u32 %v569, 7
        %v571 = vsub.s32 2, %v570
        %v572 = vrot.slane %v559, %v571
        %v573 = vlaneseq
        %v574 = vshrl.u32 %v573, 7
        %v575 = vsub.s32 3, %v574
        %v576 = vrot.slane %v559, %v575
        %v589 = vunpack.c.l.b16 %v551
        %v590 = vunpack.c.h.b16 %v551
        %v591 = vunpack.c.l.b16 %v552
        %v592 = vunpack.c.h.b16 %v552
        %v593 = vunpack.c.l.b16 %v553
        %v594 = vunpack.c.h.b16 %v553
        %v595 = vunpack.c.l.b16 %v554
        %v596 = vunpack.c.h.b16 %v554
        %v597 = vunpack.c.l.b16 %v555
        %v598 = vunpack.c.h.b16 %v555
        %v599 = vunpack.c.l.b16 %v556
        %v600 = vunpack.c.h.b16 %v556
        %v601 = vunpack.c.l.b16 %v557
        %v602 = vunpack.c.h.b16 %v557
        %v603 = vunpack.c.l.b16 %v558
        %v604 = vunpack.c.h.b16 %v558
        %v605 = vpack.c.b16 %v593, %v589
        %v606 = vpack.c.b16 %v594, %v590
        %v607 = vpack.c.b16 %v595, %v591
        %v608 = vpack.c.b16 %v596, %v592
        %v609 = vpack.c.b16 %v601, %v597
        %v610 = vpack.c.b16 %v602, %v598
        %v611 = vpack.c.b16 %v603, %v599
        %v612 = vpack.c.b16 %v604, %v600
        %vm621 = vcmask 261120
        %v623 = vsel %vm621, %v543, 0
        %v626 = vsel %vm621, %v544, 0
        %v629 = vsel %vm621, %v545, 0
        %v632 = vsel %vm621, %v546, 0
        %v635 = vsel %vm621, %v547, 0
        %v638 = vsel %vm621, %v548, 0
        %v641 = vsel %vm621, %v549, 0
        %v644 = vsel %vm621, %v550, 0
        %646 = vmatprep.subr.bf16.mxu0 0
        %647 = vmatpush1.bf16.msra.mxu0 0
        %648 = vmatprep.subr.bf16.mxu0 0
        %649 = vmatpush1.bf16.msra.mxu0 0
        %650 = vmatprep.subr.bf16.mxu0 0
        %651 = vmatpush1.bf16.msra.mxu0 0
        %652 = vmatprep.subr.bf16.mxu0 0
        %653 = vmatpush1.bf16.msra.mxu0 0
        %654 = vmatprep.subr.bf16.mxu0 0
        %655 = vmatpush1.bf16.msra.mxu0 0
        %656 = vmatprep.subr.bf16.mxu0 0
        %657 = vmatpush1.bf16.msra.mxu0 0
        %658 = vmatprep.subr.bf16.mxu0 %v610
        %659 = vmatpush1.bf16.msra.mxu0 %v609
        %660 = vmatprep.subr.bf16.mxu0 %v606
        %661 = vmatpush1.bf16.msra.mxu0 %v605
        %662 = vmatprep.subr.bf16.mxu0 0
        %663 = vmatpush2.bf16.msra.mxu0 0
        %664 = vmatprep.subr.bf16.mxu0 0
        %665 = vmatpush2.bf16.msra.mxu0 0
        %666 = vmatprep.subr.bf16.mxu0 0
        %667 = vmatpush2.bf16.msra.mxu0 0
        %668 = vmatprep.subr.bf16.mxu0 0
        %669 = vmatpush2.bf16.msra.mxu0 0
        %670 = vmatprep.subr.bf16.mxu0 0
        %671 = vmatpush2.bf16.msra.mxu0 0
        %672 = vmatprep.subr.bf16.mxu0 0
        %673 = vmatpush2.bf16.msra.mxu0 0
        %674 = vmatprep.subr.bf16.mxu0 0
        %675 = vmatpush2.bf16.msra.mxu0 0
        %676 = vmatprep.subr.bf16.mxu0 0
        %677 = vmatpush2.bf16.msra.mxu0 0
        %678 = vmatprep.mubr.bf16.mxu0 0
        %679 = vmatmul.mubr.bf16.gmra.mxu0 %v623
        %v680 = vpop.f32.mrf.mxu0
        %v681 = vadd.f32 %v564, %v680
        %v682 = vpop.f32.mrf.mxu0
        %v683 = vadd.f32 %v568, %v682
        %v684 = vpop.f32.mrf.mxu0
        %v685 = vadd.f32 %v564, %v684
        %v686 = vpop.f32.mrf.mxu0
        %v687 = vadd.f32 %v568, %v686
        %688 = vmatprep.mubr.bf16.mxu0 0
        %689 = vmatmul.mubr.bf16.gmra.mxu0 %v626
        %v690 = vpop.f32.mrf.mxu0
        %v691 = vadd.f32 %v564, %v690
        %v692 = vpop.f32.mrf.mxu0
        %v693 = vadd.f32 %v568, %v692
        %v694 = vpop.f32.mrf.mxu0
        %v695 = vadd.f32 %v564, %v694
        %v696 = vpop.f32.mrf.mxu0
        %v697 = vadd.f32 %v568, %v696
        %698 = vmatprep.mubr.bf16.mxu0 0
        %699 = vmatmul.mubr.bf16.gmra.mxu0 %v629
        %v700 = vpop.f32.mrf.mxu0
        %v701 = vadd.f32 %v564, %v700
        %v702 = vpop.f32.mrf.mxu0
        %v703 = vadd.f32 %v568, %v702
        %v704 = vpop.f32.mrf.mxu0
        %v705 = vadd.f32 %v564, %v704
        %v706 = vpop.f32.mrf.mxu0
        %v707 = vadd.f32 %v568, %v706
        %708 = vmatprep.mubr.bf16.mxu0 0
        %709 = vmatmul.mubr.bf16.gmra.mxu0 %v632
        %v710 = vpop.f32.mrf.mxu0
        %v711 = vadd.f32 %v564, %v710
        %v712 = vpop.f32.mrf.mxu0
        %v713 = vadd.f32 %v568, %v712
        %v714 = vpop.f32.mrf.mxu0
        %v715 = vadd.f32 %v564, %v714
        %v716 = vpop.f32.mrf.mxu0
        %v717 = vadd.f32 %v568, %v716
        %718 = vmatprep.mubr.bf16.mxu0 0
        %719 = vmatmul.mubr.bf16.gmra.mxu0 %v635
        %v720 = vpop.f32.mrf.mxu0
        %v721 = vadd.f32 %v564, %v720
        %v722 = vpop.f32.mrf.mxu0
        %v723 = vadd.f32 %v568, %v722
        %v724 = vpop.f32.mrf.mxu0
        %v725 = vadd.f32 %v564, %v724
        %v726 = vpop.f32.mrf.mxu0
        %v727 = vadd.f32 %v568, %v726
        %728 = vmatprep.mubr.bf16.mxu0 0
        %729 = vmatmul.mubr.bf16.gmra.mxu0 %v638
        %v730 = vpop.f32.mrf.mxu0
        %v731 = vadd.f32 %v564, %v730
        %v732 = vpop.f32.mrf.mxu0
        %v733 = vadd.f32 %v568, %v732
        %v734 = vpop.f32.mrf.mxu0
        %v735 = vadd.f32 %v564, %v734
        %v736 = vpop.f32.mrf.mxu0
        %v737 = vadd.f32 %v568, %v736
        %738 = vmatprep.mubr.bf16.mxu0 0
        %739 = vmatmul.mubr.bf16.gmra.mxu0 %v641
        %v740 = vpop.f32.mrf.mxu0
        %v741 = vadd.f32 %v564, %v740
        %v742 = vpop.f32.mrf.mxu0
        %v743 = vadd.f32 %v568, %v742
        %v744 = vpop.f32.mrf.mxu0
        %v745 = vadd.f32 %v564, %v744
        %v746 = vpop.f32.mrf.mxu0
        %v747 = vadd.f32 %v568, %v746
        %748 = vmatprep.mubr.bf16.mxu0 0
        %749 = vmatmul.mubr.bf16.gmra.mxu0 %v644
        %v750 = vpop.f32.mrf.mxu0
        %v751 = vadd.f32 %v564, %v750
        %v752 = vpop.f32.mrf.mxu0
        %v753 = vadd.f32 %v568, %v752
        %v754 = vpop.f32.mrf.mxu0
        %v755 = vadd.f32 %v564, %v754
        %v756 = vpop.f32.mrf.mxu0
        %v757 = vadd.f32 %v568, %v756
        %758 = vdwg.mxu0
        %759 = vmatprep.subr.bf16.mxu0 0
        %760 = vmatpush1.bf16.msra.mxu0 0
        %761 = vmatprep.subr.bf16.mxu0 0
        %762 = vmatpush1.bf16.msra.mxu0 0
        %763 = vmatprep.subr.bf16.mxu0 0
        %764 = vmatpush1.bf16.msra.mxu0 0
        %765 = vmatprep.subr.bf16.mxu0 0
        %766 = vmatpush1.bf16.msra.mxu0 0
        %767 = vmatprep.subr.bf16.mxu0 0
        %768 = vmatpush1.bf16.msra.mxu0 0
        %769 = vmatprep.subr.bf16.mxu0 0
        %770 = vmatpush1.bf16.msra.mxu0 0
        %771 = vmatprep.subr.bf16.mxu0 %v612
        %772 = vmatpush1.bf16.msra.mxu0 %v611
        %773 = vmatprep.subr.bf16.mxu0 %v608
        %774 = vmatpush1.bf16.msra.mxu0 %v607
        %775 = vmatprep.subr.bf16.mxu0 0
        %776 = vmatpush2.bf16.msra.mxu0 0
        %777 = vmatprep.subr.bf16.mxu0 0
        %778 = vmatpush2.bf16.msra.mxu0 0
        %779 = vmatprep.subr.bf16.mxu0 0
        %780 = vmatpush2.bf16.msra.mxu0 0
        %781 = vmatprep.subr.bf16.mxu0 0
        %782 = vmatpush2.bf16.msra.mxu0 0
        %783 = vmatprep.subr.bf16.mxu0 0
        %784 = vmatpush2.bf16.msra.mxu0 0
        %785 = vmatprep.subr.bf16.mxu0 0
        %786 = vmatpush2.bf16.msra.mxu0 0
        %787 = vmatprep.subr.bf16.mxu0 0
        %788 = vmatpush2.bf16.msra.mxu0 0
        %789 = vmatprep.subr.bf16.mxu0 0
        %790 = vmatpush2.bf16.msra.mxu0 0
        %791 = vmatprep.mubr.bf16.mxu0 0
        %792 = vmatmul.mubr.bf16.gmra.mxu0 %v623
        %v793 = vpop.f32.mrf.mxu0
        %v794 = vadd.f32 %v572, %v793
        %v795 = vpop.f32.mrf.mxu0
        %v796 = vadd.f32 %v576, %v795
        %v797 = vpop.f32.mrf.mxu0
        %v798 = vadd.f32 %v572, %v797
        %v799 = vpop.f32.mrf.mxu0
        %v800 = vadd.f32 %v576, %v799
        %801 = vmatprep.mubr.bf16.mxu0 0
        %802 = vmatmul.mubr.bf16.gmra.mxu0 %v626
        %v803 = vpop.f32.mrf.mxu0
        %v804 = vadd.f32 %v572, %v803
        %v805 = vpop.f32.mrf.mxu0
        %v806 = vadd.f32 %v576, %v805
        %v807 = vpop.f32.mrf.mxu0
        %v808 = vadd.f32 %v572, %v807
        %v809 = vpop.f32.mrf.mxu0
        %v810 = vadd.f32 %v576, %v809
        %811 = vmatprep.mubr.bf16.mxu0 0
        %812 = vmatmul.mubr.bf16.gmra.mxu0 %v629
        %v813 = vpop.f32.mrf.mxu0
        %v814 = vadd.f32 %v572, %v813
        %v815 = vpop.f32.mrf.mxu0
        %v816 = vadd.f32 %v576, %v815
        %v817 = vpop.f32.mrf.mxu0
        %v818 = vadd.f32 %v572, %v817
        %v819 = vpop.f32.mrf.mxu0
        %v820 = vadd.f32 %v576, %v819
        %821 = vmatprep.mubr.bf16.mxu0 0
        %822 = vmatmul.mubr.bf16.gmra.mxu0 %v632
        %v823 = vpop.f32.mrf.mxu0
        %v824 = vadd.f32 %v572, %v823
        %v825 = vpop.f32.mrf.mxu0
        %v826 = vadd.f32 %v576, %v825
        %v827 = vpop.f32.mrf.mxu0
        %v828 = vadd.f32 %v572, %v827
        %v829 = vpop.f32.mrf.mxu0
        %v830 = vadd.f32 %v576, %v829
        %831 = vmatprep.mubr.bf16.mxu0 0
        %832 = vmatmul.mubr.bf16.gmra.mxu0 %v635
        %v833 = vpop.f32.mrf.mxu0
        %v834 = vadd.f32 %v572, %v833
        %v835 = vpop.f32.mrf.mxu0
        %v836 = vadd.f32 %v576, %v835
        %v837 = vpop.f32.mrf.mxu0
        %v838 = vadd.f32 %v572, %v837
        %v839 = vpop.f32.mrf.mxu0
        %v840 = vadd.f32 %v576, %v839
        %841 = vmatprep.mubr.bf16.mxu0 0
        %842 = vmatmul.mubr.bf16.gmra.mxu0 %v638
        %v843 = vpop.f32.mrf.mxu0
        %v844 = vadd.f32 %v572, %v843
        %v845 = vpop.f32.mrf.mxu0
        %v846 = vadd.f32 %v576, %v845
        %v847 = vpop.f32.mrf.mxu0
        %v848 = vadd.f32 %v572, %v847
        %v849 = vpop.f32.mrf.mxu0
        %v850 = vadd.f32 %v576, %v849
        %851 = vmatprep.mubr.bf16.mxu0 0
        %852 = vmatmul.mubr.bf16.gmra.mxu0 %v641
        %v853 = vpop.f32.mrf.mxu0
        %v854 = vadd.f32 %v572, %v853
        %v855 = vpop.f32.mrf.mxu0
        %v856 = vadd.f32 %v576, %v855
        %v857 = vpop.f32.mrf.mxu0
        %v858 = vadd.f32 %v572, %v857
        %v859 = vpop.f32.mrf.mxu0
        %v860 = vadd.f32 %v576, %v859
        %861 = vmatprep.mubr.bf16.mxu0 0
        %862 = vmatmul.mubr.bf16.gmra.mxu0 %v644
        %v863 = vpop.f32.mrf.mxu0
        %v864 = vadd.f32 %v572, %v863
        %v865 = vpop.f32.mrf.mxu0
        %v866 = vadd.f32 %v576, %v865
        %v867 = vpop.f32.mrf.mxu0
        %v868 = vadd.f32 %v572, %v867
        %v869 = vpop.f32.mrf.mxu0
        %v870 = vadd.f32 %v576, %v869
        %871 = vdwg.mxu0
        %vm872 = vcmp.gt.f32.partialorder %v681, 0.0
        %vm873 = vcmp.gt.f32.partialorder %v683, 0.0
        %vm874 = vcmp.gt.f32.partialorder %v794, 0.0
        %vm875 = vcmp.gt.f32.partialorder %v796, 0.0
        %vm876 = vcmp.gt.f32.partialorder %v685, 0.0
        %vm877 = vcmp.gt.f32.partialorder %v687, 0.0
        %vm878 = vcmp.gt.f32.partialorder %v798, 0.0
        %vm879 = vcmp.gt.f32.partialorder %v800, 0.0
        %vm880 = vcmp.gt.f32.partialorder %v691, 0.0
        %vm881 = vcmp.gt.f32.partialorder %v693, 0.0
        %vm882 = vcmp.gt.f32.partialorder %v804, 0.0
        %vm883 = vcmp.gt.f32.partialorder %v806, 0.0
        %vm884 = vcmp.gt.f32.partialorder %v695, 0.0
        %vm885 = vcmp.gt.f32.partialorder %v697, 0.0
        %vm886 = vcmp.gt.f32.partialorder %v808, 0.0
        %vm887 = vcmp.gt.f32.partialorder %v810, 0.0
        %vm888 = vcmp.gt.f32.partialorder %v701, 0.0
        %vm889 = vcmp.gt.f32.partialorder %v703, 0.0
        %vm890 = vcmp.gt.f32.partialorder %v814, 0.0
        %vm891 = vcmp.gt.f32.partialorder %v816, 0.0
        %vm892 = vcmp.gt.f32.partialorder %v705, 0.0
        %vm893 = vcmp.gt.f32.partialorder %v707, 0.0
        %vm894 = vcmp.gt.f32.partialorder %v818, 0.0
        %vm895 = vcmp.gt.f32.partialorder %v820, 0.0
        %vm896 = vcmp.gt.f32.partialorder %v711, 0.0
        %vm897 = vcmp.gt.f32.partialorder %v713, 0.0
        %vm898 = vcmp.gt.f32.partialorder %v824, 0.0
        %vm899 = vcmp.gt.f32.partialorder %v826, 0.0
        %vm900 = vcmp.gt.f32.partialorder %v715, 0.0
        %vm901 = vcmp.gt.f32.partialorder %v717, 0.0
        %vm902 = vcmp.gt.f32.partialorder %v828, 0.0
        %vm903 = vcmp.gt.f32.partialorder %v830, 0.0
        %vm904 = vcmp.gt.f32.partialorder %v721, 0.0
        %vm905 = vcmp.gt.f32.partialorder %v723, 0.0
        %vm906 = vcmp.gt.f32.partialorder %v834, 0.0
        %vm907 = vcmp.gt.f32.partialorder %v836, 0.0
        %vm908 = vcmp.gt.f32.partialorder %v725, 0.0
        %vm909 = vcmp.gt.f32.partialorder %v727, 0.0
        %vm910 = vcmp.gt.f32.partialorder %v838, 0.0
        %vm911 = vcmp.gt.f32.partialorder %v840, 0.0
        %vm912 = vcmp.gt.f32.partialorder %v731, 0.0
        %vm913 = vcmp.gt.f32.partialorder %v733, 0.0
        %vm914 = vcmp.gt.f32.partialorder %v844, 0.0
        %vm915 = vcmp.gt.f32.partialorder %v846, 0.0
        %vm916 = vcmp.gt.f32.partialorder %v735, 0.0
        %vm917 = vcmp.gt.f32.partialorder %v737, 0.0
        %vm918 = vcmp.gt.f32.partialorder %v848, 0.0
        %vm919 = vcmp.gt.f32.partialorder %v850, 0.0
        %vm920 = vcmp.gt.f32.partialorder %v741, 0.0
        %vm921 = vcmp.gt.f32.partialorder %v743, 0.0
        %vm922 = vcmp.gt.f32.partialorder %v854, 0.0
        %vm923 = vcmp.gt.f32.partialorder %v856, 0.0
        %vm924 = vcmp.gt.f32.partialorder %v745, 0.0
        %vm925 = vcmp.gt.f32.partialorder %v747, 0.0
        %vm926 = vcmp.gt.f32.partialorder %v858, 0.0
        %vm927 = vcmp.gt.f32.partialorder %v860, 0.0
        %vm928 = vcmp.gt.f32.partialorder %v751, 0.0
        %vm929 = vcmp.gt.f32.partialorder %v753, 0.0
        %vm930 = vcmp.gt.f32.partialorder %v864, 0.0
        %vm931 = vcmp.gt.f32.partialorder %v866, 0.0
        %vm932 = vcmp.gt.f32.partialorder %v755, 0.0
        %vm933 = vcmp.gt.f32.partialorder %v757, 0.0
        %vm934 = vcmp.gt.f32.partialorder %v868, 0.0
        %vm935 = vcmp.gt.f32.partialorder %v870, 0.0
        %v936 = vmul.f32 %v681, 1.442695
        %v937 = vpow.pop %v936
        %v938 = vmul.f32 %v683, 1.442695
        %v939 = vpow.pop %v938
        %v940 = vmul.f32 %v794, 1.442695
        %v941 = vpow.pop %v940
        %v942 = vmul.f32 %v796, 1.442695
        %v943 = vpow.pop %v942
        %v944 = vmul.f32 %v685, 1.442695
        %v945 = vpow.pop %v944
        %v946 = vmul.f32 %v687, 1.442695
        %v947 = vpow.pop %v946
        %v948 = vmul.f32 %v798, 1.442695
        %v949 = vpow.pop %v948
        %v950 = vmul.f32 %v800, 1.442695
        %v951 = vpow.pop %v950
        %v952 = vmul.f32 %v691, 1.442695
        %v953 = vpow.pop %v952
        %v954 = vmul.f32 %v693, 1.442695
        %v955 = vpow.pop %v954
        %v956 = vmul.f32 %v804, 1.442695
        %v957 = vpow.pop %v956
        %v958 = vmul.f32 %v806, 1.442695
        %v959 = vpow.pop %v958
        %v960 = vmul.f32 %v695, 1.442695
        %v961 = vpow.pop %v960
        %v962 = vmul.f32 %v697, 1.442695
        %v963 = vpow.pop %v962
        %v964 = vmul.f32 %v808, 1.442695
        %v965 = vpow.pop %v964
        %v966 = vmul.f32 %v810, 1.442695
        %v967 = vpow.pop %v966
        %v968 = vmul.f32 %v701, 1.442695
        %v969 = vpow.pop %v968
        %v970 = vmul.f32 %v703, 1.442695
        %v971 = vpow.pop %v970
        %v972 = vmul.f32 %v814, 1.442695
        %v973 = vpow.pop %v972
        %v974 = vmul.f32 %v816, 1.442695
        %v975 = vpow.pop %v974
        %v976 = vmul.f32 %v705, 1.442695
        %v977 = vpow.pop %v976
        %v978 = vmul.f32 %v707, 1.442695
        %v979 = vpow.pop %v978
        %v980 = vmul.f32 %v818, 1.442695
        %v981 = vpow.pop %v980
        %v982 = vmul.f32 %v820, 1.442695
        %v983 = vpow.pop %v982
        %v984 = vmul.f32 %v711, 1.442695
        %v985 = vpow.pop %v984
        %v986 = vmul.f32 %v713, 1.442695
        %v987 = vpow.pop %v986
        %v988 = vmul.f32 %v824, 1.442695
        %v989 = vpow.pop %v988
        %v990 = vmul.f32 %v826, 1.442695
        %v991 = vpow.pop %v990
        %v992 = vmul.f32 %v715, 1.442695
        %v993 = vpow.pop %v992
        %v994 = vmul.f32 %v717, 1.442695
        %v995 = vpow.pop %v994
        %v996 = vmul.f32 %v828, 1.442695
        %v997 = vpow.pop %v996
        %v998 = vmul.f32 %v830, 1.442695
        %v999 = vpow.pop %v998
        %v1000 = vmul.f32 %v721, 1.442695
        %v1001 = vpow.pop %v1000
        %v1002 = vmul.f32 %v723, 1.442695
        %v1003 = vpow.pop %v1002
        %v1004 = vmul.f32 %v834, 1.442695
        %v1005 = vpow.pop %v1004
        %v1006 = vmul.f32 %v836, 1.442695
        %v1007 = vpow.pop %v1006
        %v1008 = vmul.f32 %v725, 1.442695
        %v1009 = vpow.pop %v1008
        %v1010 = vmul.f32 %v727, 1.442695
        %v1011 = vpow.pop %v1010
        %v1012 = vmul.f32 %v838, 1.442695
        %v1013 = vpow.pop %v1012
        %v1014 = vmul.f32 %v840, 1.442695
        %v1015 = vpow.pop %v1014
        %v1016 = vmul.f32 %v731, 1.442695
        %v1017 = vpow.pop %v1016
        %v1018 = vmul.f32 %v733, 1.442695
        %v1019 = vpow.pop %v1018
        %v1020 = vmul.f32 %v844, 1.442695
        %v1021 = vpow.pop %v1020
        %v1022 = vmul.f32 %v846, 1.442695
        %v1023 = vpow.pop %v1022
        %v1024 = vmul.f32 %v735, 1.442695
        %v1025 = vpow.pop %v1024
        %v1026 = vmul.f32 %v737, 1.442695
        %v1027 = vpow.pop %v1026
        %v1028 = vmul.f32 %v848, 1.442695
        %v1029 = vpow.pop %v1028
        %v1030 = vmul.f32 %v850, 1.442695
        %v1031 = vpow.pop %v1030
        %v1032 = vmul.f32 %v741, 1.442695
        %v1033 = vpow.pop %v1032
        %v1034 = vmul.f32 %v743, 1.442695
        %v1035 = vpow.pop %v1034
        %v1036 = vmul.f32 %v854, 1.442695
        %v1037 = vpow.pop %v1036
        %v1038 = vmul.f32 %v856, 1.442695
        %v1039 = vpow.pop %v1038
        %v1040 = vmul.f32 %v745, 1.442695
        %v1041 = vpow.pop %v1040
        %v1042 = vmul.f32 %v747, 1.442695
        %v1043 = vpow.pop %v1042
        %v1044 = vmul.f32 %v858, 1.442695
        %v1045 = vpow.pop %v1044
        %v1046 = vmul.f32 %v860, 1.442695
        %v1047 = vpow.pop %v1046
        %v1048 = vmul.f32 %v751, 1.442695
        %v1049 = vpow.pop %v1048
        %v1050 = vmul.f32 %v753, 1.442695
        %v1051 = vpow.pop %v1050
        %v1052 = vmul.f32 %v864, 1.442695
        %v1053 = vpow.pop %v1052
        %v1054 = vmul.f32 %v866, 1.442695
        %v1055 = vpow.pop %v1054
        %v1056 = vmul.f32 %v755, 1.442695
        %v1057 = vpow.pop %v1056
        %v1058 = vmul.f32 %v757, 1.442695
        %v1059 = vpow.pop %v1058
        %v1060 = vmul.f32 %v868, 1.442695
        %v1061 = vpow.pop %v1060
        %v1062 = vmul.f32 %v870, 1.442695
        %v1063 = vpow.pop %v1062
        %v1064 = vsub.f32 %v937, 1.0
        %v1065 = vsub.f32 %v939, 1.0
        %v1066 = vsub.f32 %v941, 1.0
        %v1067 = vsub.f32 %v943, 1.0
        %v1068 = vsub.f32 %v945, 1.0
        %v1069 = vsub.f32 %v947, 1.0
        %v1070 = vsub.f32 %v949, 1.0
        %v1071 = vsub.f32 %v951, 1.0
        %v1072 = vsub.f32 %v953, 1.0
        %v1073 = vsub.f32 %v955, 1.0
        %v1074 = vsub.f32 %v957, 1.0
        %v1075 = vsub.f32 %v959, 1.0
        %v1076 = vsub.f32 %v961, 1.0
        %v1077 = vsub.f32 %v963, 1.0
        %v1078 = vsub.f32 %v965, 1.0
        %v1079 = vsub.f32 %v967, 1.0
        %v1080 = vsub.f32 %v969, 1.0
        %v1081 = vsub.f32 %v971, 1.0
        %v1082 = vsub.f32 %v973, 1.0
        %v1083 = vsub.f32 %v975, 1.0
        %v1084 = vsub.f32 %v977, 1.0
        %v1085 = vsub.f32 %v979, 1.0
        %v1086 = vsub.f32 %v981, 1.0
        %v1087 = vsub.f32 %v983, 1.0
        %v1088 = vsub.f32 %v985, 1.0
        %v1089 = vsub.f32 %v987, 1.0
        %v1090 = vsub.f32 %v989, 1.0
        %v1091 = vsub.f32 %v991, 1.0
        %v1092 = vsub.f32 %v993, 1.0
        %v1093 = vsub.f32 %v995, 1.0
        %v1094 = vsub.f32 %v997, 1.0
        %v1095 = vsub.f32 %v999, 1.0
        %v1096 = vsub.f32 %v1001, 1.0
        %v1097 = vsub.f32 %v1003, 1.0
        %v1098 = vsub.f32 %v1005, 1.0
        %v1099 = vsub.f32 %v1007, 1.0
        %v1100 = vsub.f32 %v1009, 1.0
        %v1101 = vsub.f32 %v1011, 1.0
        %v1102 = vsub.f32 %v1013, 1.0
        %v1103 = vsub.f32 %v1015, 1.0
        %v1104 = vsub.f32 %v1017, 1.0
        %v1105 = vsub.f32 %v1019, 1.0
        %v1106 = vsub.f32 %v1021, 1.0
        %v1107 = vsub.f32 %v1023, 1.0
        %v1108 = vsub.f32 %v1025, 1.0
        %v1109 = vsub.f32 %v1027, 1.0
        %v1110 = vsub.f32 %v1029, 1.0
        %v1111 = vsub.f32 %v1031, 1.0
        %v1112 = vsub.f32 %v1033, 1.0
        %v1113 = vsub.f32 %v1035, 1.0
        %v1114 = vsub.f32 %v1037, 1.0
        %v1115 = vsub.f32 %v1039, 1.0
        %v1116 = vsub.f32 %v1041, 1.0
        %v1117 = vsub.f32 %v1043, 1.0
        %v1118 = vsub.f32 %v1045, 1.0
        %v1119 = vsub.f32 %v1047, 1.0
        %v1120 = vsub.f32 %v1049, 1.0
        %v1121 = vsub.f32 %v1051, 1.0
        %v1122 = vsub.f32 %v1053, 1.0
        %v1123 = vsub.f32 %v1055, 1.0
        %v1124 = vsub.f32 %v1057, 1.0
        %v1125 = vsub.f32 %v1059, 1.0
        %v1126 = vsub.f32 %v1061, 1.0
        %v1127 = vsub.f32 %v1063, 1.0
        %v1128 = vsel %vm872, %v681, %v1064
        %v1129 = vsel %vm873, %v683, %v1065
        %v1130 = vsel %vm874, %v794, %v1066
        %v1131 = vsel %vm875, %v796, %v1067
        %v1132 = vsel %vm876, %v685, %v1068
        %v1133 = vsel %vm877, %v687, %v1069
        %v1134 = vsel %vm878, %v798, %v1070
        %v1135 = vsel %vm879, %v800, %v1071
        %v1136 = vsel %vm880, %v691, %v1072
        %v1137 = vsel %vm881, %v693, %v1073
        %v1138 = vsel %vm882, %v804, %v1074
        %v1139 = vsel %vm883, %v806, %v1075
        %v1140 = vsel %vm884, %v695, %v1076
        %v1141 = vsel %vm885, %v697, %v1077
        %v1142 = vsel %vm886, %v808, %v1078
        %v1143 = vsel %vm887, %v810, %v1079
        %v1144 = vsel %vm888, %v701, %v1080
        %v1145 = vsel %vm889, %v703, %v1081
        %v1146 = vsel %vm890, %v814, %v1082
        %v1147 = vsel %vm891, %v816, %v1083
        %v1148 = vsel %vm892, %v705, %v1084
        %v1149 = vsel %vm893, %v707, %v1085
        %v1150 = vsel %vm894, %v818, %v1086
        %v1151 = vsel %vm895, %v820, %v1087
        %v1152 = vsel %vm896, %v711, %v1088
        %v1153 = vsel %vm897, %v713, %v1089
        %v1154 = vsel %vm898, %v824, %v1090
        %v1155 = vsel %vm899, %v826, %v1091
        %v1156 = vsel %vm900, %v715, %v1092
        %v1157 = vsel %vm901, %v717, %v1093
        %v1158 = vsel %vm902, %v828, %v1094
        %v1159 = vsel %vm903, %v830, %v1095
        %v1160 = vsel %vm904, %v721, %v1096
        %v1161 = vsel %vm905, %v723, %v1097
        %v1162 = vsel %vm906, %v834, %v1098
        %v1163 = vsel %vm907, %v836, %v1099
        %v1164 = vsel %vm908, %v725, %v1100
        %v1165 = vsel %vm909, %v727, %v1101
        %v1166 = vsel %vm910, %v838, %v1102
        %v1167 = vsel %vm911, %v840, %v1103
        %v1168 = vsel %vm912, %v731, %v1104
        %v1169 = vsel %vm913, %v733, %v1105
        %v1170 = vsel %vm914, %v844, %v1106
        %v1171 = vsel %vm915, %v846, %v1107
        %v1172 = vsel %vm916, %v735, %v1108
        %v1173 = vsel %vm917, %v737, %v1109
        %v1174 = vsel %vm918, %v848, %v1110
        %v1175 = vsel %vm919, %v850, %v1111
        %v1176 = vsel %vm920, %v741, %v1112
        %v1177 = vsel %vm921, %v743, %v1113
        %v1178 = vsel %vm922, %v854, %v1114
        %v1179 = vsel %vm923, %v856, %v1115
        %v1180 = vsel %vm924, %v745, %v1116
        %v1181 = vsel %vm925, %v747, %v1117
        %v1182 = vsel %vm926, %v858, %v1118
        %v1183 = vsel %vm927, %v860, %v1119
        %v1184 = vsel %vm928, %v751, %v1120
        %v1185 = vsel %vm929, %v753, %v1121
        %v1186 = vsel %vm930, %v864, %v1122
        %v1187 = vsel %vm931, %v866, %v1123
        %v1188 = vsel %vm932, %v755, %v1124
        %v1189 = vsel %vm933, %v757, %v1125
        %v1190 = vsel %vm934, %v868, %v1126
        %v1191 = vsel %vm935, %v870, %v1127
        %v1192 = vld [vmem:[%s3] sm:$0xf]
        %v1193 = vld [vmem:[%s4] sm:$0xf]
        %v1194 = vadd.f32 %v1128, %v1129
        %v1195 = vadd.f32 %v1194, %v1130
        %v1196 = vadd.f32 %v1195, %v1131
        %1197 = vadd.xlane.f32.xlu0 %v1196
        %v1198 = vpop.xlane.xlu0 %1197
        %v1199 = vadd.f32 %v1132, %v1133
        %v1200 = vadd.f32 %v1199, %v1134
        %v1201 = vadd.f32 %v1200, %v1135
        %1202 = vadd.xlane.f32.xlu0 %v1201
        %v1203 = vpop.xlane.xlu0 %1202
        %v1204 = vadd.f32 %v1136, %v1137
        %v1205 = vadd.f32 %v1204, %v1138
        %v1206 = vadd.f32 %v1205, %v1139
        %1207 = vadd.xlane.f32.xlu0 %v1206
        %v1208 = vpop.xlane.xlu0 %1207
        %v1209 = vadd.f32 %v1140, %v1141
        %v1210 = vadd.f32 %v1209, %v1142
        %v1211 = vadd.f32 %v1210, %v1143
        %1212 = vadd.xlane.f32.xlu0 %v1211
        %v1213 = vpop.xlane.xlu0 %1212
        %v1214 = vadd.f32 %v1144, %v1145
        %v1215 = vadd.f32 %v1214, %v1146
        %v1216 = vadd.f32 %v1215, %v1147
        %1217 = vadd.xlane.f32.xlu0 %v1216
        %v1218 = vpop.xlane.xlu0 %1217
        %v1219 = vadd.f32 %v1148, %v1149
        %v1220 = vadd.f32 %v1219, %v1150
        %v1221 = vadd.f32 %v1220, %v1151
        %1222 = vadd.xlane.f32.xlu0 %v1221
        %v1223 = vpop.xlane.xlu0 %1222
        %v1224 = vadd.f32 %v1152, %v1153
        %v1225 = vadd.f32 %v1224, %v1154
        %v1226 = vadd.f32 %v1225, %v1155
        %1227 = vadd.xlane.f32.xlu0 %v1226
        %v1228 = vpop.xlane.xlu0 %1227
        %v1229 = vadd.f32 %v1156, %v1157
        %v1230 = vadd.f32 %v1229, %v1158
        %v1231 = vadd.f32 %v1230, %v1159
        %1232 = vadd.xlane.f32.xlu0 %v1231
        %v1233 = vpop.xlane.xlu0 %1232
        %v1234 = vadd.f32 %v1160, %v1161
        %v1235 = vadd.f32 %v1234, %v1162
        %v1236 = vadd.f32 %v1235, %v1163
        %1237 = vadd.xlane.f32.xlu0 %v1236
        %v1238 = vpop.xlane.xlu0 %1237
        %v1239 = vadd.f32 %v1164, %v1165
        %v1240 = vadd.f32 %v1239, %v1166
        %v1241 = vadd.f32 %v1240, %v1167
        %1242 = vadd.xlane.f32.xlu0 %v1241
        %v1243 = vpop.xlane.xlu0 %1242
        %v1244 = vadd.f32 %v1168, %v1169
        %v1245 = vadd.f32 %v1244, %v1170
        %v1246 = vadd.f32 %v1245, %v1171
        %1247 = vadd.xlane.f32.xlu0 %v1246
        %v1248 = vpop.xlane.xlu0 %1247
        %v1249 = vadd.f32 %v1172, %v1173
        %v1250 = vadd.f32 %v1249, %v1174
        %v1251 = vadd.f32 %v1250, %v1175
        %1252 = vadd.xlane.f32.xlu0 %v1251
        %v1253 = vpop.xlane.xlu0 %1252
        %v1254 = vadd.f32 %v1176, %v1177
        %v1255 = vadd.f32 %v1254, %v1178
        %v1256 = vadd.f32 %v1255, %v1179
        %1257 = vadd.xlane.f32.xlu0 %v1256
        %v1258 = vpop.xlane.xlu0 %1257
        %v1259 = vadd.f32 %v1180, %v1181
        %v1260 = vadd.f32 %v1259, %v1182
        %v1261 = vadd.f32 %v1260, %v1183
        %1262 = vadd.xlane.f32.xlu0 %v1261
        %v1263 = vpop.xlane.xlu0 %1262
        %v1264 = vadd.f32 %v1184, %v1185
        %v1265 = vadd.f32 %v1264, %v1186
        %v1266 = vadd.f32 %v1265, %v1187
        %1267 = vadd.xlane.f32.xlu0 %v1266
        %v1268 = vpop.xlane.xlu0 %1267
        %v1269 = vadd.f32 %v1188, %v1189
        %v1270 = vadd.f32 %v1269, %v1190
        %v1271 = vadd.f32 %v1270, %v1191
        %1272 = vadd.xlane.f32.xlu0 %v1271
        %v1273 = vpop.xlane.xlu0 %1272
        %v1274 = vmul.f32 %v1198, 0.0025
        %v1275 = vmul.f32 %v1203, 0.0025
        %v1276 = vmul.f32 %v1208, 0.0025
        %v1277 = vmul.f32 %v1213, 0.0025
        %v1278 = vmul.f32 %v1218, 0.0025
        %v1279 = vmul.f32 %v1223, 0.0025
        %v1280 = vmul.f32 %v1228, 0.0025
        %v1281 = vmul.f32 %v1233, 0.0025
        %v1282 = vmul.f32 %v1238, 0.0025
        %v1283 = vmul.f32 %v1243, 0.0025
        %v1284 = vmul.f32 %v1248, 0.0025
        %v1285 = vmul.f32 %v1253, 0.0025
        %v1286 = vmul.f32 %v1258, 0.0025
        %v1287 = vmul.f32 %v1263, 0.0025
        %v1288 = vmul.f32 %v1268, 0.0025
        %v1289 = vmul.f32 %v1273, 0.0025
        %v1290 = vmul.f32 %v1128, %v1128
        %v1291 = vmul.f32 %v1129, %v1129
        %v1292 = vmul.f32 %v1130, %v1130
        %v1293 = vmul.f32 %v1131, %v1131
        %v1294 = vmul.f32 %v1132, %v1132
        %v1295 = vmul.f32 %v1133, %v1133
        %v1296 = vmul.f32 %v1134, %v1134
        %v1297 = vmul.f32 %v1135, %v1135
        %v1298 = vmul.f32 %v1136, %v1136
        %v1299 = vmul.f32 %v1137, %v1137
        %v1300 = vmul.f32 %v1138, %v1138
        %v1301 = vmul.f32 %v1139, %v1139
        %v1302 = vmul.f32 %v1140, %v1140
        %v1303 = vmul.f32 %v1141, %v1141
        %v1304 = vmul.f32 %v1142, %v1142
        %v1305 = vmul.f32 %v1143, %v1143
        %v1306 = vmul.f32 %v1144, %v1144
        %v1307 = vmul.f32 %v1145, %v1145
        %v1308 = vmul.f32 %v1146, %v1146
        %v1309 = vmul.f32 %v1147, %v1147
        %v1310 = vmul.f32 %v1148, %v1148
        %v1311 = vmul.f32 %v1149, %v1149
        %v1312 = vmul.f32 %v1150, %v1150
        %v1313 = vmul.f32 %v1151, %v1151
        %v1314 = vmul.f32 %v1152, %v1152
        %v1315 = vmul.f32 %v1153, %v1153
        %v1316 = vmul.f32 %v1154, %v1154
        %v1317 = vmul.f32 %v1155, %v1155
        %v1318 = vmul.f32 %v1156, %v1156
        %v1319 = vmul.f32 %v1157, %v1157
        %v1320 = vmul.f32 %v1158, %v1158
        %v1321 = vmul.f32 %v1159, %v1159
        %v1322 = vmul.f32 %v1160, %v1160
        %v1323 = vmul.f32 %v1161, %v1161
        %v1324 = vmul.f32 %v1162, %v1162
        %v1325 = vmul.f32 %v1163, %v1163
        %v1326 = vmul.f32 %v1164, %v1164
        %v1327 = vmul.f32 %v1165, %v1165
        %v1328 = vmul.f32 %v1166, %v1166
        %v1329 = vmul.f32 %v1167, %v1167
        %v1330 = vmul.f32 %v1168, %v1168
        %v1331 = vmul.f32 %v1169, %v1169
        %v1332 = vmul.f32 %v1170, %v1170
        %v1333 = vmul.f32 %v1171, %v1171
        %v1334 = vmul.f32 %v1172, %v1172
        %v1335 = vmul.f32 %v1173, %v1173
        %v1336 = vmul.f32 %v1174, %v1174
        %v1337 = vmul.f32 %v1175, %v1175
        %v1338 = vmul.f32 %v1176, %v1176
        %v1339 = vmul.f32 %v1177, %v1177
        %v1340 = vmul.f32 %v1178, %v1178
        %v1341 = vmul.f32 %v1179, %v1179
        %v1342 = vmul.f32 %v1180, %v1180
        %v1343 = vmul.f32 %v1181, %v1181
        %v1344 = vmul.f32 %v1182, %v1182
        %v1345 = vmul.f32 %v1183, %v1183
        %v1346 = vmul.f32 %v1184, %v1184
        %v1347 = vmul.f32 %v1185, %v1185
        %v1348 = vmul.f32 %v1186, %v1186
        %v1349 = vmul.f32 %v1187, %v1187
        %v1350 = vmul.f32 %v1188, %v1188
        %v1351 = vmul.f32 %v1189, %v1189
        %v1352 = vmul.f32 %v1190, %v1190
        %v1353 = vmul.f32 %v1191, %v1191
        %v1354 = vadd.f32 %v1290, %v1291
        %v1355 = vadd.f32 %v1354, %v1292
        %v1356 = vadd.f32 %v1355, %v1293
        %1357 = vadd.xlane.f32.xlu0 %v1356
        %v1358 = vpop.xlane.xlu0 %1357
        %v1359 = vadd.f32 %v1294, %v1295
        %v1360 = vadd.f32 %v1359, %v1296
        %v1361 = vadd.f32 %v1360, %v1297
        %1362 = vadd.xlane.f32.xlu0 %v1361
        %v1363 = vpop.xlane.xlu0 %1362
        %v1364 = vadd.f32 %v1298, %v1299
        %v1365 = vadd.f32 %v1364, %v1300
        %v1366 = vadd.f32 %v1365, %v1301
        %1367 = vadd.xlane.f32.xlu0 %v1366
        %v1368 = vpop.xlane.xlu0 %1367
        %v1369 = vadd.f32 %v1302, %v1303
        %v1370 = vadd.f32 %v1369, %v1304
        %v1371 = vadd.f32 %v1370, %v1305
        %1372 = vadd.xlane.f32.xlu0 %v1371
        %v1373 = vpop.xlane.xlu0 %1372
        %v1374 = vadd.f32 %v1306, %v1307
        %v1375 = vadd.f32 %v1374, %v1308
        %v1376 = vadd.f32 %v1375, %v1309
        %1377 = vadd.xlane.f32.xlu0 %v1376
        %v1378 = vpop.xlane.xlu0 %1377
        %v1379 = vadd.f32 %v1310, %v1311
        %v1380 = vadd.f32 %v1379, %v1312
        %v1381 = vadd.f32 %v1380, %v1313
        %1382 = vadd.xlane.f32.xlu0 %v1381
        %v1383 = vpop.xlane.xlu0 %1382
        %v1384 = vadd.f32 %v1314, %v1315
        %v1385 = vadd.f32 %v1384, %v1316
        %v1386 = vadd.f32 %v1385, %v1317
        %1387 = vadd.xlane.f32.xlu0 %v1386
        %v1388 = vpop.xlane.xlu0 %1387
        %v1389 = vadd.f32 %v1318, %v1319
        %v1390 = vadd.f32 %v1389, %v1320
        %v1391 = vadd.f32 %v1390, %v1321
        %1392 = vadd.xlane.f32.xlu0 %v1391
        %v1393 = vpop.xlane.xlu0 %1392
        %v1394 = vadd.f32 %v1322, %v1323
        %v1395 = vadd.f32 %v1394, %v1324
        %v1396 = vadd.f32 %v1395, %v1325
        %1397 = vadd.xlane.f32.xlu0 %v1396
        %v1398 = vpop.xlane.xlu0 %1397
        %v1399 = vadd.f32 %v1326, %v1327
        %v1400 = vadd.f32 %v1399, %v1328
        %v1401 = vadd.f32 %v1400, %v1329
        %1402 = vadd.xlane.f32.xlu0 %v1401
        %v1403 = vpop.xlane.xlu0 %1402
        %v1404 = vadd.f32 %v1330, %v1331
        %v1405 = vadd.f32 %v1404, %v1332
        %v1406 = vadd.f32 %v1405, %v1333
        %1407 = vadd.xlane.f32.xlu0 %v1406
        %v1408 = vpop.xlane.xlu0 %1407
        %v1409 = vadd.f32 %v1334, %v1335
        %v1410 = vadd.f32 %v1409, %v1336
        %v1411 = vadd.f32 %v1410, %v1337
        %1412 = vadd.xlane.f32.xlu0 %v1411
        %v1413 = vpop.xlane.xlu0 %1412
        %v1414 = vadd.f32 %v1338, %v1339
        %v1415 = vadd.f32 %v1414, %v1340
        %v1416 = vadd.f32 %v1415, %v1341
        %1417 = vadd.xlane.f32.xlu0 %v1416
        %v1418 = vpop.xlane.xlu0 %1417
        %v1419 = vadd.f32 %v1342, %v1343
        %v1420 = vadd.f32 %v1419, %v1344
        %v1421 = vadd.f32 %v1420, %v1345
        %1422 = vadd.xlane.f32.xlu0 %v1421
        %v1423 = vpop.xlane.xlu0 %1422
        %v1424 = vadd.f32 %v1346, %v1347
        %v1425 = vadd.f32 %v1424, %v1348
        %v1426 = vadd.f32 %v1425, %v1349
        %1427 = vadd.xlane.f32.xlu0 %v1426
        %v1428 = vpop.xlane.xlu0 %1427
        %v1429 = vadd.f32 %v1350, %v1351
        %v1430 = vadd.f32 %v1429, %v1352
        %v1431 = vadd.f32 %v1430, %v1353
        %1432 = vadd.xlane.f32.xlu0 %v1431
        %v1433 = vpop.xlane.xlu0 %1432
        %v1434 = vmul.f32 %v1358, 0.0025
        %v1435 = vmul.f32 %v1363, 0.0025
        %v1436 = vmul.f32 %v1368, 0.0025
        %v1437 = vmul.f32 %v1373, 0.0025
        %v1438 = vmul.f32 %v1378, 0.0025
        %v1439 = vmul.f32 %v1383, 0.0025
        %v1440 = vmul.f32 %v1388, 0.0025
        %v1441 = vmul.f32 %v1393, 0.0025
        %v1442 = vmul.f32 %v1398, 0.0025
        %v1443 = vmul.f32 %v1403, 0.0025
        %v1444 = vmul.f32 %v1408, 0.0025
        %v1445 = vmul.f32 %v1413, 0.0025
        %v1446 = vmul.f32 %v1418, 0.0025
        %v1447 = vmul.f32 %v1423, 0.0025
        %v1448 = vmul.f32 %v1428, 0.0025
        %v1449 = vmul.f32 %v1433, 0.0025
        %v1450 = vmul.f32 %v1274, %v1274
        %v1451 = vmul.f32 %v1275, %v1275
        %v1452 = vmul.f32 %v1276, %v1276
        %v1453 = vmul.f32 %v1277, %v1277
        %v1454 = vmul.f32 %v1278, %v1278
        %v1455 = vmul.f32 %v1279, %v1279
        %v1456 = vmul.f32 %v1280, %v1280
        %v1457 = vmul.f32 %v1281, %v1281
        %v1458 = vmul.f32 %v1282, %v1282
        %v1459 = vmul.f32 %v1283, %v1283
        %v1460 = vmul.f32 %v1284, %v1284
        %v1461 = vmul.f32 %v1285, %v1285
        %v1462 = vmul.f32 %v1286, %v1286
        %v1463 = vmul.f32 %v1287, %v1287
        %v1464 = vmul.f32 %v1288, %v1288
        %v1465 = vmul.f32 %v1289, %v1289
        %v1466 = vsub.f32 %v1434, %v1450
        %v1467 = vsub.f32 %v1435, %v1451
        %v1468 = vsub.f32 %v1436, %v1452
        %v1469 = vsub.f32 %v1437, %v1453
        %v1470 = vsub.f32 %v1438, %v1454
        %v1471 = vsub.f32 %v1439, %v1455
        %v1472 = vsub.f32 %v1440, %v1456
        %v1473 = vsub.f32 %v1441, %v1457
        %v1474 = vsub.f32 %v1442, %v1458
        %v1475 = vsub.f32 %v1443, %v1459
        %v1476 = vsub.f32 %v1444, %v1460
        %v1477 = vsub.f32 %v1445, %v1461
        %v1478 = vsub.f32 %v1446, %v1462
        %v1479 = vsub.f32 %v1447, %v1463
        %v1480 = vsub.f32 %v1448, %v1464
        %v1481 = vsub.f32 %v1449, %v1465
        %v1482 = vmax.f32 %v1466, 0.0
        %v1483 = vmax.f32 %v1467, 0.0
        %v1484 = vmax.f32 %v1468, 0.0
        %v1485 = vmax.f32 %v1469, 0.0
        %v1486 = vmax.f32 %v1470, 0.0
        %v1487 = vmax.f32 %v1471, 0.0
        %v1488 = vmax.f32 %v1472, 0.0
        %v1489 = vmax.f32 %v1473, 0.0
        %v1490 = vmax.f32 %v1474, 0.0
        %v1491 = vmax.f32 %v1475, 0.0
        %v1492 = vmax.f32 %v1476, 0.0
        %v1493 = vmax.f32 %v1477, 0.0
        %v1494 = vmax.f32 %v1478, 0.0
        %v1495 = vmax.f32 %v1479, 0.0
        %v1496 = vmax.f32 %v1480, 0.0
        %v1497 = vmax.f32 %v1481, 0.0
        %v1498 = vadd.f32 %v1482, 1e-05
        %v1499 = vadd.f32 %v1483, 1e-05
        %v1500 = vadd.f32 %v1484, 1e-05
        %v1501 = vadd.f32 %v1485, 1e-05
        %v1502 = vadd.f32 %v1486, 1e-05
        %v1503 = vadd.f32 %v1487, 1e-05
        %v1504 = vadd.f32 %v1488, 1e-05
        %v1505 = vadd.f32 %v1489, 1e-05
        %v1506 = vadd.f32 %v1490, 1e-05
        %v1507 = vadd.f32 %v1491, 1e-05
        %v1508 = vadd.f32 %v1492, 1e-05
        %v1509 = vadd.f32 %v1493, 1e-05
        %v1510 = vadd.f32 %v1494, 1e-05
        %v1511 = vadd.f32 %v1495, 1e-05
        %v1512 = vadd.f32 %v1496, 1e-05
        %v1513 = vadd.f32 %v1497, 1e-05
        %v1514 = vrsqrt.pop %v1498
        %v1515 = vrsqrt.pop %v1499
        %v1516 = vrsqrt.pop %v1500
        %v1517 = vrsqrt.pop %v1501
        %v1518 = vrsqrt.pop %v1502
        %v1519 = vrsqrt.pop %v1503
        %v1520 = vrsqrt.pop %v1504
        %v1521 = vrsqrt.pop %v1505
        %v1522 = vrsqrt.pop %v1506
        %v1523 = vrsqrt.pop %v1507
        %v1524 = vrsqrt.pop %v1508
        %v1525 = vrsqrt.pop %v1509
        %v1526 = vrsqrt.pop %v1510
        %v1527 = vrsqrt.pop %v1511
        %v1528 = vrsqrt.pop %v1512
        %v1529 = vrsqrt.pop %v1513
        %v1530 = vsub.f32 %v1128, %v1274
        %v1531 = vsub.f32 %v1129, %v1274
        %v1532 = vsub.f32 %v1130, %v1274
        %v1533 = vsub.f32 %v1131, %v1274
        %v1534 = vsub.f32 %v1132, %v1275
        %v1535 = vsub.f32 %v1133, %v1275
        %v1536 = vsub.f32 %v1134, %v1275
        %v1537 = vsub.f32 %v1135, %v1275
        %v1538 = vsub.f32 %v1136, %v1276
        %v1539 = vsub.f32 %v1137, %v1276
        %v1540 = vsub.f32 %v1138, %v1276
        %v1541 = vsub.f32 %v1139, %v1276
        %v1542 = vsub.f32 %v1140, %v1277
        %v1543 = vsub.f32 %v1141, %v1277
        %v1544 = vsub.f32 %v1142, %v1277
        %v1545 = vsub.f32 %v1143, %v1277
        %v1546 = vsub.f32 %v1144, %v1278
        %v1547 = vsub.f32 %v1145, %v1278
        %v1548 = vsub.f32 %v1146, %v1278
        %v1549 = vsub.f32 %v1147, %v1278
        %v1550 = vsub.f32 %v1148, %v1279
        %v1551 = vsub.f32 %v1149, %v1279
        %v1552 = vsub.f32 %v1150, %v1279
        %v1553 = vsub.f32 %v1151, %v1279
        %v1554 = vsub.f32 %v1152, %v1280
        %v1555 = vsub.f32 %v1153, %v1280
        %v1556 = vsub.f32 %v1154, %v1280
        %v1557 = vsub.f32 %v1155, %v1280
        %v1558 = vsub.f32 %v1156, %v1281
        %v1559 = vsub.f32 %v1157, %v1281
        %v1560 = vsub.f32 %v1158, %v1281
        %v1561 = vsub.f32 %v1159, %v1281
        %v1562 = vsub.f32 %v1160, %v1282
        %v1563 = vsub.f32 %v1161, %v1282
        %v1564 = vsub.f32 %v1162, %v1282
        %v1565 = vsub.f32 %v1163, %v1282
        %v1566 = vsub.f32 %v1164, %v1283
        %v1567 = vsub.f32 %v1165, %v1283
        %v1568 = vsub.f32 %v1166, %v1283
        %v1569 = vsub.f32 %v1167, %v1283
        %v1570 = vsub.f32 %v1168, %v1284
        %v1571 = vsub.f32 %v1169, %v1284
        %v1572 = vsub.f32 %v1170, %v1284
        %v1573 = vsub.f32 %v1171, %v1284
        %v1574 = vsub.f32 %v1172, %v1285
        %v1575 = vsub.f32 %v1173, %v1285
        %v1576 = vsub.f32 %v1174, %v1285
        %v1577 = vsub.f32 %v1175, %v1285
        %v1578 = vsub.f32 %v1176, %v1286
        %v1579 = vsub.f32 %v1177, %v1286
        %v1580 = vsub.f32 %v1178, %v1286
        %v1581 = vsub.f32 %v1179, %v1286
        %v1582 = vsub.f32 %v1180, %v1287
        %v1583 = vsub.f32 %v1181, %v1287
        %v1584 = vsub.f32 %v1182, %v1287
        %v1585 = vsub.f32 %v1183, %v1287
        %v1586 = vsub.f32 %v1184, %v1288
        %v1587 = vsub.f32 %v1185, %v1288
        %v1588 = vsub.f32 %v1186, %v1288
        %v1589 = vsub.f32 %v1187, %v1288
        %v1590 = vsub.f32 %v1188, %v1289
        %v1591 = vsub.f32 %v1189, %v1289
        %v1592 = vsub.f32 %v1190, %v1289
        %v1593 = vsub.f32 %v1191, %v1289
        %v1594 = vmul.f32 %v1530, %v1514
        %v1595 = vmul.f32 %v1531, %v1514
        %v1596 = vmul.f32 %v1532, %v1514
        %v1597 = vmul.f32 %v1533, %v1514
        %v1598 = vmul.f32 %v1534, %v1515
        %v1599 = vmul.f32 %v1535, %v1515
        %v1600 = vmul.f32 %v1536, %v1515
        %v1601 = vmul.f32 %v1537, %v1515
        %v1602 = vmul.f32 %v1538, %v1516
        %v1603 = vmul.f32 %v1539, %v1516
        %v1604 = vmul.f32 %v1540, %v1516
        %v1605 = vmul.f32 %v1541, %v1516
        %v1606 = vmul.f32 %v1542, %v1517
        %v1607 = vmul.f32 %v1543, %v1517
        %v1608 = vmul.f32 %v1544, %v1517
        %v1609 = vmul.f32 %v1545, %v1517
        %v1610 = vmul.f32 %v1546, %v1518
        %v1611 = vmul.f32 %v1547, %v1518
        %v1612 = vmul.f32 %v1548, %v1518
        %v1613 = vmul.f32 %v1549, %v1518
        %v1614 = vmul.f32 %v1550, %v1519
        %v1615 = vmul.f32 %v1551, %v1519
        %v1616 = vmul.f32 %v1552, %v1519
        %v1617 = vmul.f32 %v1553, %v1519
        %v1618 = vmul.f32 %v1554, %v1520
        %v1619 = vmul.f32 %v1555, %v1520
        %v1620 = vmul.f32 %v1556, %v1520
        %v1621 = vmul.f32 %v1557, %v1520
        %v1622 = vmul.f32 %v1558, %v1521
        %v1623 = vmul.f32 %v1559, %v1521
        %v1624 = vmul.f32 %v1560, %v1521
        %v1625 = vmul.f32 %v1561, %v1521
        %v1626 = vmul.f32 %v1562, %v1522
        %v1627 = vmul.f32 %v1563, %v1522
        %v1628 = vmul.f32 %v1564, %v1522
        %v1629 = vmul.f32 %v1565, %v1522
        %v1630 = vmul.f32 %v1566, %v1523
        %v1631 = vmul.f32 %v1567, %v1523
        %v1632 = vmul.f32 %v1568, %v1523
        %v1633 = vmul.f32 %v1569, %v1523
        %v1634 = vmul.f32 %v1570, %v1524
        %v1635 = vmul.f32 %v1571, %v1524
        %v1636 = vmul.f32 %v1572, %v1524
        %v1637 = vmul.f32 %v1573, %v1524
        %v1638 = vmul.f32 %v1574, %v1525
        %v1639 = vmul.f32 %v1575, %v1525
        %v1640 = vmul.f32 %v1576, %v1525
        %v1641 = vmul.f32 %v1577, %v1525
        %v1642 = vmul.f32 %v1578, %v1526
        %v1643 = vmul.f32 %v1579, %v1526
        %v1644 = vmul.f32 %v1580, %v1526
        %v1645 = vmul.f32 %v1581, %v1526
        %v1646 = vmul.f32 %v1582, %v1527
        %v1647 = vmul.f32 %v1583, %v1527
        %v1648 = vmul.f32 %v1584, %v1527
        %v1649 = vmul.f32 %v1585, %v1527
        %v1650 = vmul.f32 %v1586, %v1528
        %v1651 = vmul.f32 %v1587, %v1528
        %v1652 = vmul.f32 %v1588, %v1528
        %v1653 = vmul.f32 %v1589, %v1528
        %v1654 = vmul.f32 %v1590, %v1529
        %v1655 = vmul.f32 %v1591, %v1529
        %v1656 = vmul.f32 %v1592, %v1529
        %v1657 = vmul.f32 %v1593, %v1529
        %v1659 = vlaneseq
        %v1660 = vshrl.u32 %v1659, 7
        %v1661 = vsub.s32 0, %v1660
        %v1662 = vrot.slane %v1192, %v1661
        %v1663 = vlaneseq
        %v1664 = vshrl.u32 %v1663, 7
        %v1665 = vsub.s32 1, %v1664
        %v1666 = vrot.slane %v1192, %v1665
        %v1667 = vlaneseq
        %v1668 = vshrl.u32 %v1667, 7
        %v1669 = vsub.s32 2, %v1668
        %v1670 = vrot.slane %v1192, %v1669
        %v1671 = vlaneseq
        %v1672 = vshrl.u32 %v1671, 7
        %v1673 = vsub.s32 3, %v1672
        %v1674 = vrot.slane %v1192, %v1673
        %v1679 = vmul.f32 %v1594, %v1662
        %v1680 = vmul.f32 %v1595, %v1666
        %v1681 = vmul.f32 %v1596, %v1670
        %v1682 = vmul.f32 %v1597, %v1674
        %v1683 = vmul.f32 %v1598, %v1662
        %v1684 = vmul.f32 %v1599, %v1666
        %v1685 = vmul.f32 %v1600, %v1670
        %v1686 = vmul.f32 %v1601, %v1674
        %v1687 = vmul.f32 %v1602, %v1662
        %v1688 = vmul.f32 %v1603, %v1666
        %v1689 = vmul.f32 %v1604, %v1670
        %v1690 = vmul.f32 %v1605, %v1674
        %v1691 = vmul.f32 %v1606, %v1662
        %v1692 = vmul.f32 %v1607, %v1666
        %v1693 = vmul.f32 %v1608, %v1670
        %v1694 = vmul.f32 %v1609, %v1674
        %v1695 = vmul.f32 %v1610, %v1662
        %v1696 = vmul.f32 %v1611, %v1666
        %v1697 = vmul.f32 %v1612, %v1670
        %v1698 = vmul.f32 %v1613, %v1674
        %v1699 = vmul.f32 %v1614, %v1662
        %v1700 = vmul.f32 %v1615, %v1666
        %v1701 = vmul.f32 %v1616, %v1670
        %v1702 = vmul.f32 %v1617, %v1674
        %v1703 = vmul.f32 %v1618, %v1662
        %v1704 = vmul.f32 %v1619, %v1666
        %v1705 = vmul.f32 %v1620, %v1670
        %v1706 = vmul.f32 %v1621, %v1674
        %v1707 = vmul.f32 %v1622, %v1662
        %v1708 = vmul.f32 %v1623, %v1666
        %v1709 = vmul.f32 %v1624, %v1670
        %v1710 = vmul.f32 %v1625, %v1674
        %v1711 = vmul.f32 %v1626, %v1662
        %v1712 = vmul.f32 %v1627, %v1666
        %v1713 = vmul.f32 %v1628, %v1670
        %v1714 = vmul.f32 %v1629, %v1674
        %v1715 = vmul.f32 %v1630, %v1662
        %v1716 = vmul.f32 %v1631, %v1666
        %v1717 = vmul.f32 %v1632, %v1670
        %v1718 = vmul.f32 %v1633, %v1674
        %v1719 = vmul.f32 %v1634, %v1662
        %v1720 = vmul.f32 %v1635, %v1666
        %v1721 = vmul.f32 %v1636, %v1670
        %v1722 = vmul.f32 %v1637, %v1674
        %v1723 = vmul.f32 %v1638, %v1662
        %v1724 = vmul.f32 %v1639, %v1666
        %v1725 = vmul.f32 %v1640, %v1670
        %v1726 = vmul.f32 %v1641, %v1674
        %v1727 = vmul.f32 %v1642, %v1662
        %v1728 = vmul.f32 %v1643, %v1666
        %v1729 = vmul.f32 %v1644, %v1670
        %v1730 = vmul.f32 %v1645, %v1674
        %v1731 = vmul.f32 %v1646, %v1662
        %v1732 = vmul.f32 %v1647, %v1666
        %v1733 = vmul.f32 %v1648, %v1670
        %v1734 = vmul.f32 %v1649, %v1674
        %v1735 = vmul.f32 %v1650, %v1662
        %v1736 = vmul.f32 %v1651, %v1666
        %v1737 = vmul.f32 %v1652, %v1670
        %v1738 = vmul.f32 %v1653, %v1674
        %v1739 = vmul.f32 %v1654, %v1662
        %v1740 = vmul.f32 %v1655, %v1666
        %v1741 = vmul.f32 %v1656, %v1670
        %v1742 = vmul.f32 %v1657, %v1674
        %v1744 = vlaneseq
        %v1745 = vshrl.u32 %v1744, 7
        %v1746 = vsub.s32 0, %v1745
        %v1747 = vrot.slane %v1193, %v1746
        %v1748 = vlaneseq
        %v1749 = vshrl.u32 %v1748, 7
        %v1750 = vsub.s32 1, %v1749
        %v1751 = vrot.slane %v1193, %v1750
        %v1752 = vlaneseq
        %v1753 = vshrl.u32 %v1752, 7
        %v1754 = vsub.s32 2, %v1753
        %v1755 = vrot.slane %v1193, %v1754
        %v1756 = vlaneseq
        %v1757 = vshrl.u32 %v1756, 7
        %v1758 = vsub.s32 3, %v1757
        %v1759 = vrot.slane %v1193, %v1758
        %v1764 = vadd.f32 %v1679, %v1747
        %v1765 = vadd.f32 %v1680, %v1751
        %v1766 = vadd.f32 %v1681, %v1755
        %v1767 = vadd.f32 %v1682, %v1759
        %v1768 = vadd.f32 %v1683, %v1747
        %v1769 = vadd.f32 %v1684, %v1751
        %v1770 = vadd.f32 %v1685, %v1755
        %v1771 = vadd.f32 %v1686, %v1759
        %v1772 = vadd.f32 %v1687, %v1747
        %v1773 = vadd.f32 %v1688, %v1751
        %v1774 = vadd.f32 %v1689, %v1755
        %v1775 = vadd.f32 %v1690, %v1759
        %v1776 = vadd.f32 %v1691, %v1747
        %v1777 = vadd.f32 %v1692, %v1751
        %v1778 = vadd.f32 %v1693, %v1755
        %v1779 = vadd.f32 %v1694, %v1759
        %v1780 = vadd.f32 %v1695, %v1747
        %v1781 = vadd.f32 %v1696, %v1751
        %v1782 = vadd.f32 %v1697, %v1755
        %v1783 = vadd.f32 %v1698, %v1759
        %v1784 = vadd.f32 %v1699, %v1747
        %v1785 = vadd.f32 %v1700, %v1751
        %v1786 = vadd.f32 %v1701, %v1755
        %v1787 = vadd.f32 %v1702, %v1759
        %v1788 = vadd.f32 %v1703, %v1747
        %v1789 = vadd.f32 %v1704, %v1751
        %v1790 = vadd.f32 %v1705, %v1755
        %v1791 = vadd.f32 %v1706, %v1759
        %v1792 = vadd.f32 %v1707, %v1747
        %v1793 = vadd.f32 %v1708, %v1751
        %v1794 = vadd.f32 %v1709, %v1755
        %v1795 = vadd.f32 %v1710, %v1759
        %v1796 = vadd.f32 %v1711, %v1747
        %v1797 = vadd.f32 %v1712, %v1751
        %v1798 = vadd.f32 %v1713, %v1755
        %v1799 = vadd.f32 %v1714, %v1759
        %v1800 = vadd.f32 %v1715, %v1747
        %v1801 = vadd.f32 %v1716, %v1751
        %v1802 = vadd.f32 %v1717, %v1755
        %v1803 = vadd.f32 %v1718, %v1759
        %v1804 = vadd.f32 %v1719, %v1747
        %v1805 = vadd.f32 %v1720, %v1751
        %v1806 = vadd.f32 %v1721, %v1755
        %v1807 = vadd.f32 %v1722, %v1759
        %v1808 = vadd.f32 %v1723, %v1747
        %v1809 = vadd.f32 %v1724, %v1751
        %v1810 = vadd.f32 %v1725, %v1755
        %v1811 = vadd.f32 %v1726, %v1759
        %v1812 = vadd.f32 %v1727, %v1747
        %v1813 = vadd.f32 %v1728, %v1751
        %v1814 = vadd.f32 %v1729, %v1755
        %v1815 = vadd.f32 %v1730, %v1759
        %v1816 = vadd.f32 %v1731, %v1747
        %v1817 = vadd.f32 %v1732, %v1751
        %v1818 = vadd.f32 %v1733, %v1755
        %v1819 = vadd.f32 %v1734, %v1759
        %v1820 = vadd.f32 %v1735, %v1747
        %v1821 = vadd.f32 %v1736, %v1751
        %v1822 = vadd.f32 %v1737, %v1755
        %v1823 = vadd.f32 %v1738, %v1759
        %v1824 = vadd.f32 %v1739, %v1747
        %v1825 = vadd.f32 %v1740, %v1751
        %v1826 = vadd.f32 %v1741, %v1755
        %v1827 = vadd.f32 %v1742, %v1759
        %v1828 = vpack.c.bf16 %v1768, %v1764
        %v1829 = vpack.c.bf16 %v1769, %v1765
        %v1830 = vpack.c.bf16 %v1770, %v1766
        %v1831 = vpack.c.bf16 %v1771, %v1767
        %v1832 = vpack.c.bf16 %v1776, %v1772
        %v1833 = vpack.c.bf16 %v1777, %v1773
        %v1834 = vpack.c.bf16 %v1778, %v1774
        %v1835 = vpack.c.bf16 %v1779, %v1775
        %v1836 = vpack.c.bf16 %v1784, %v1780
        %v1837 = vpack.c.bf16 %v1785, %v1781
        %v1838 = vpack.c.bf16 %v1786, %v1782
        %v1839 = vpack.c.bf16 %v1787, %v1783
        %v1840 = vpack.c.bf16 %v1792, %v1788
        %v1841 = vpack.c.bf16 %v1793, %v1789
        %v1842 = vpack.c.bf16 %v1794, %v1790
        %v1843 = vpack.c.bf16 %v1795, %v1791
        %v1844 = vpack.c.bf16 %v1800, %v1796
        %v1845 = vpack.c.bf16 %v1801, %v1797
        %v1846 = vpack.c.bf16 %v1802, %v1798
        %v1847 = vpack.c.bf16 %v1803, %v1799
        %v1848 = vpack.c.bf16 %v1808, %v1804
        %v1849 = vpack.c.bf16 %v1809, %v1805
        %v1850 = vpack.c.bf16 %v1810, %v1806
        %v1851 = vpack.c.bf16 %v1811, %v1807
        %v1852 = vpack.c.bf16 %v1816, %v1812
        %v1853 = vpack.c.bf16 %v1817, %v1813
        %v1854 = vpack.c.bf16 %v1818, %v1814
        %v1855 = vpack.c.bf16 %v1819, %v1815
        %v1856 = vpack.c.bf16 %v1824, %v1820
        %v1857 = vpack.c.bf16 %v1825, %v1821
        %v1858 = vpack.c.bf16 %v1826, %v1822
        %v1859 = vpack.c.bf16 %v1827, %v1823
        %v1860 = vld [vmem:[#allocation3] sm:$0xff]
        %v1861 = vld [vmem:[#allocation3 + $0x8] sm:$0xff]
        %v1862 = vld [vmem:[#allocation3 + $0x10] sm:$0xff]
        %v1863 = vld [vmem:[#allocation3 + $0x18] sm:$0xff]
        %v1864 = vld [vmem:[#allocation3 + $0x20] sm:$0xff]
        %v1865 = vld [vmem:[#allocation3 + $0x28] sm:$0xff]
        %v1866 = vld [vmem:[#allocation3 + $0x30] sm:$0xff]
        %v1867 = vld [vmem:[#allocation3 + $0x38] sm:$0xff]
        %v1868 = vld [vmem:[#allocation3 + $0x40] sm:$0xff]
        %v1869 = vld [vmem:[#allocation3 + $0x48] sm:$0xff]
        %v1870 = vld [vmem:[#allocation3 + $0x50] sm:$0xff]
        %v1871 = vld [vmem:[#allocation3 + $0x58] sm:$0xff]
        %v1872 = vld [vmem:[#allocation3 + $0x60] sm:$0xff]
        %v1873 = vld [vmem:[#allocation3 + $0x68] sm:$0xff]
        %v1874 = vld [vmem:[#allocation3 + $0x70] sm:$0xff]
        %v1875 = vld [vmem:[#allocation3 + $0x78] sm:$0xff]
        %v1876 = vld [vmem:[#allocation3 + $0x80] sm:$0xff]
        %v1877 = vld [vmem:[#allocation3 + $0x88] sm:$0xff]
        %v1878 = vld [vmem:[#allocation3 + $0x90] sm:$0xff]
        %v1879 = vld [vmem:[#allocation3 + $0x98] sm:$0xff]
        %v1880 = vld [vmem:[#allocation3 + $0xa0] sm:$0xff]
        %v1881 = vld [vmem:[#allocation3 + $0xa8] sm:$0xff]
        %v1882 = vld [vmem:[#allocation3 + $0xb0] sm:$0xff]
        %v1883 = vld [vmem:[#allocation3 + $0xb8] sm:$0xff]
        %v1884 = vld [vmem:[#allocation3 + $0xc0] sm:$0xff]
        %v1885 = vld [vmem:[#allocation3 + $0xc8] sm:$0xff]
        %v1886 = vld [vmem:[#allocation3 + $0xd0] sm:$0xff]
        %v1887 = vld [vmem:[#allocation3 + $0xd8] sm:$0xff]
        %v1888 = vld [vmem:[#allocation3 + $0xe0] sm:$0xff]
        %v1889 = vld [vmem:[#allocation3 + $0xe8] sm:$0xff]
        %v1890 = vld [vmem:[#allocation3 + $0xf0] sm:$0xff]
        %v1891 = vld [vmem:[#allocation3 + $0xf8] sm:$0xff]
        %v1892 = vld [vmem:[#allocation3 + $0x100] sm:$0xff]
        %v1893 = vld [vmem:[#allocation3 + $0x108] sm:$0xff]
        %v1894 = vld [vmem:[#allocation3 + $0x110] sm:$0xff]
        %v1895 = vld [vmem:[#allocation3 + $0x118] sm:$0xff]
        %v1896 = vld [vmem:[#allocation3 + $0x120] sm:$0xff]
        %v1897 = vld [vmem:[#allocation3 + $0x128] sm:$0xff]
        %v1898 = vld [vmem:[#allocation3 + $0x130] sm:$0xff]
        %v1899 = vld [vmem:[#allocation3 + $0x138] sm:$0xff]
        %v1900 = vld [vmem:[#allocation3 + $0x140] sm:$0xff]
        %v1901 = vld [vmem:[#allocation3 + $0x148] sm:$0xff]
        %v1902 = vld [vmem:[#allocation3 + $0x150] sm:$0xff]
        %v1903 = vld [vmem:[#allocation3 + $0x158] sm:$0xff]
        %v1904 = vld [vmem:[#allocation3 + $0x160] sm:$0xff]
        %v1905 = vld [vmem:[#allocation3 + $0x168] sm:$0xff]
        %v1906 = vld [vmem:[#allocation3 + $0x170] sm:$0xff]
        %v1907 = vld [vmem:[#allocation3 + $0x178] sm:$0xff]
        %v1908 = vld [vmem:[#allocation3 + $0x180] sm:$0xff]
        %v1909 = vld [vmem:[#allocation3 + $0x188] sm:$0xff]
        %v1910 = vld [vmem:[#allocation3 + $0x190] sm:$0xff]
        %v1911 = vld [vmem:[#allocation3 + $0x198] sm:$0xff]
        %v1912 = vld [vmem:[#allocation3 + $0x1a0] sm:$0xff]
        %v1913 = vld [vmem:[#allocation3 + $0x1a8] sm:$0xff]
        %v1914 = vld [vmem:[#allocation3 + $0x1b0] sm:$0xff]
        %v1915 = vld [vmem:[#allocation3 + $0x1b8] sm:$0xff]
        %v1916 = vld [vmem:[#allocation3 + $0x1c0] sm:$0xff]
        %v1917 = vld [vmem:[#allocation3 + $0x1c8] sm:$0xff]
        %v1918 = vld [vmem:[#allocation3 + $0x1d0] sm:$0xff]
        %v1919 = vld [vmem:[#allocation3 + $0x1d8] sm:$0xff]
        %v1920 = vld [vmem:[#allocation3 + $0x1e0] sm:$0xff]
        %v1921 = vld [vmem:[#allocation3 + $0x1e8] sm:$0xff]
        %v1922 = vld [vmem:[#allocation3 + $0x1f0] sm:$0xff]
        %v1923 = vld [vmem:[#allocation3 + $0x1f8] sm:$0xff]
        %v1924 = vld [vmem:[#allocation3 + $0x200] sm:$0xff]
        %v1925 = vld [vmem:[#allocation3 + $0x208] sm:$0xff]
        %v1926 = vld [vmem:[#allocation3 + $0x210] sm:$0xff]
        %v1927 = vld [vmem:[#allocation3 + $0x218] sm:$0xff]
        %v1928 = vld [vmem:[#allocation3 + $0x220] sm:$0xff]
        %v1929 = vld [vmem:[#allocation3 + $0x228] sm:$0xff]
        %v1930 = vld [vmem:[#allocation3 + $0x230] sm:$0xff]
        %v1931 = vld [vmem:[#allocation3 + $0x238] sm:$0xff]
        %v1932 = vld [vmem:[#allocation3 + $0x240] sm:$0xff]
        %v1933 = vld [vmem:[#allocation3 + $0x248] sm:$0xff]
        %v1934 = vld [vmem:[#allocation3 + $0x250] sm:$0xff]
        %v1935 = vld [vmem:[#allocation3 + $0x258] sm:$0xff]
        %v1936 = vld [vmem:[#allocation3 + $0x260] sm:$0xff]
        %v1937 = vld [vmem:[#allocation3 + $0x268] sm:$0xff]
        %v1938 = vld [vmem:[#allocation3 + $0x270] sm:$0xff]
        %v1939 = vld [vmem:[#allocation3 + $0x278] sm:$0xff]
        %v1940 = vld [vmem:[#allocation3 + $0x280] sm:$0xff]
        %v1941 = vld [vmem:[#allocation3 + $0x288] sm:$0xff]
        %v1942 = vld [vmem:[#allocation3 + $0x290] sm:$0xff]
        %v1943 = vld [vmem:[#allocation3 + $0x298] sm:$0xff]
        %v1944 = vld [vmem:[#allocation3 + $0x2a0] sm:$0xff]
        %v1945 = vld [vmem:[#allocation3 + $0x2a8] sm:$0xff]
        %v1946 = vld [vmem:[#allocation3 + $0x2b0] sm:$0xff]
        %v1947 = vld [vmem:[#allocation3 + $0x2b8] sm:$0xff]
        %v1948 = vld [vmem:[#allocation3 + $0x2c0] sm:$0xff]
        %v1949 = vld [vmem:[#allocation3 + $0x2c8] sm:$0xff]
        %v1950 = vld [vmem:[#allocation3 + $0x2d0] sm:$0xff]
        %v1951 = vld [vmem:[#allocation3 + $0x2d8] sm:$0xff]
        %v1952 = vld [vmem:[#allocation3 + $0x2e0] sm:$0xff]
        %v1953 = vld [vmem:[#allocation3 + $0x2e8] sm:$0xff]
        %v1954 = vld [vmem:[#allocation3 + $0x2f0] sm:$0xff]
        %v1955 = vld [vmem:[#allocation3 + $0x2f8] sm:$0xff]
        %v1956 = vld [vmem:[#allocation3 + $0x300] sm:$0xff]
        %v1957 = vld [vmem:[#allocation3 + $0x308] sm:$0xff]
        %v1958 = vld [vmem:[#allocation3 + $0x310] sm:$0xff]
        %v1959 = vld [vmem:[#allocation3 + $0x318] sm:$0xff]
        %v1960 = vld [vmem:[#allocation3 + $0x320] sm:$0xff]
        %v1961 = vld [vmem:[#allocation3 + $0x328] sm:$0xff]
        %v1962 = vld [vmem:[#allocation3 + $0x330] sm:$0xff]
        %v1963 = vld [vmem:[#allocation3 + $0x338] sm:$0xff]
        %v1964 = vld [vmem:[#allocation3 + $0x340] sm:$0xff]
        %v1965 = vld [vmem:[#allocation3 + $0x348] sm:$0xff]
        %v1966 = vld [vmem:[#allocation3 + $0x350] sm:$0xff]
        %v1967 = vld [vmem:[#allocation3 + $0x358] sm:$0xff]
        %v1968 = vld [vmem:[#allocation3 + $0x360] sm:$0xff]
        %v1969 = vld [vmem:[#allocation3 + $0x368] sm:$0xff]
        %v1970 = vld [vmem:[#allocation3 + $0x370] sm:$0xff]
        %v1971 = vld [vmem:[#allocation3 + $0x378] sm:$0xff]
        %v1972 = vld [vmem:[#allocation3 + $0x380] sm:$0xff]
        %v1973 = vld [vmem:[#allocation3 + $0x388] sm:$0xff]
        %v1974 = vld [vmem:[#allocation3 + $0x390] sm:$0xff]
        %v1975 = vld [vmem:[#allocation3 + $0x398] sm:$0xff]
        %v1976 = vld [vmem:[#allocation3 + $0x3a0] sm:$0xff]
        %v1977 = vld [vmem:[#allocation3 + $0x3a8] sm:$0xff]
        %v1978 = vld [vmem:[#allocation3 + $0x3b0] sm:$0xff]
        %v1979 = vld [vmem:[#allocation3 + $0x3b8] sm:$0xff]
        %v1980 = vld [vmem:[#allocation3 + $0x3c0] sm:$0xff]
        %v1981 = vld [vmem:[#allocation3 + $0x3c8] sm:$0xff]
        %v1982 = vld [vmem:[#allocation3 + $0x3d0] sm:$0xff]
        %v1983 = vld [vmem:[#allocation3 + $0x3d8] sm:$0xff]
        %v1984 = vld [vmem:[#allocation3 + $0x3e0] sm:$0xff]
        %v1985 = vld [vmem:[#allocation3 + $0x3e8] sm:$0xff]
        %v1986 = vld [vmem:[#allocation3 + $0x3f0] sm:$0xff]
        %v1987 = vld [vmem:[#allocation3 + $0x3f8] sm:$0xff]
        %v1988 = vld [vmem:[%s6] sm:$0xf]
        %v1990 = vlaneseq
        %v1991 = vshrl.u32 %v1990, 7
        %v1992 = vsub.s32 0, %v1991
        %v1993 = vrot.slane %v1988, %v1992
        %v1994 = vlaneseq
        %v1995 = vshrl.u32 %v1994, 7
        %v1996 = vsub.s32 1, %v1995
        %v1997 = vrot.slane %v1988, %v1996
        %v1998 = vlaneseq
        %v1999 = vshrl.u32 %v1998, 7
        %v2000 = vsub.s32 2, %v1999
        %v2001 = vrot.slane %v1988, %v2000
        %v2002 = vlaneseq
        %v2003 = vshrl.u32 %v2002, 7
        %v2004 = vsub.s32 3, %v2003
        %v2005 = vrot.slane %v1988, %v2004
        %v2138 = vunpack.c.l.b16 %v1860
        %v2139 = vunpack.c.h.b16 %v1860
        %v2140 = vunpack.c.l.b16 %v1861
        %v2141 = vunpack.c.h.b16 %v1861
        %v2142 = vunpack.c.l.b16 %v1862
        %v2143 = vunpack.c.h.b16 %v1862
        %v2144 = vunpack.c.l.b16 %v1863
        %v2145 = vunpack.c.h.b16 %v1863
        %v2146 = vunpack.c.l.b16 %v1864
        %v2147 = vunpack.c.h.b16 %v1864
        %v2148 = vunpack.c.l.b16 %v1865
        %v2149 = vunpack.c.h.b16 %v1865
        %v2150 = vunpack.c.l.b16 %v1866
        %v2151 = vunpack.c.h.b16 %v1866
        %v2152 = vunpack.c.l.b16 %v1867
        %v2153 = vunpack.c.h.b16 %v1867
        %v2154 = vunpack.c.l.b16 %v1868
        %v2155 = vunpack.c.h.b16 %v1868
        %v2156 = vunpack.c.l.b16 %v1869
        %v2157 = vunpack.c.h.b16 %v1869
        %v2158 = vunpack.c.l.b16 %v1870
        %v2159 = vunpack.c.h.b16 %v1870
        %v2160 = vunpack.c.l.b16 %v1871
        %v2161 = vunpack.c.h.b16 %v1871
        %v2162 = vunpack.c.l.b16 %v1872
        %v2163 = vunpack.c.h.b16 %v1872
        %v2164 = vunpack.c.l.b16 %v1873
        %v2165 = vunpack.c.h.b16 %v1873
        %v2166 = vunpack.c.l.b16 %v1874
        %v2167 = vunpack.c.h.b16 %v1874
        %v2168 = vunpack.c.l.b16 %v1875
        %v2169 = vunpack.c.h.b16 %v1875
        %v2170 = vunpack.c.l.b16 %v1876
        %v2171 = vunpack.c.h.b16 %v1876
        %v2172 = vunpack.c.l.b16 %v1877
        %v2173 = vunpack.c.h.b16 %v1877
        %v2174 = vunpack.c.l.b16 %v1878
        %v2175 = vunpack.c.h.b16 %v1878
        %v2176 = vunpack.c.l.b16 %v1879
        %v2177 = vunpack.c.h.b16 %v1879
        %v2178 = vunpack.c.l.b16 %v1880
        %v2179 = vunpack.c.h.b16 %v1880
        %v2180 = vunpack.c.l.b16 %v1881
        %v2181 = vunpack.c.h.b16 %v1881
        %v2182 = vunpack.c.l.b16 %v1882
        %v2183 = vunpack.c.h.b16 %v1882
        %v2184 = vunpack.c.l.b16 %v1883
        %v2185 = vunpack.c.h.b16 %v1883
        %v2186 = vunpack.c.l.b16 %v1884
        %v2187 = vunpack.c.h.b16 %v1884
        %v2188 = vunpack.c.l.b16 %v1885
        %v2189 = vunpack.c.h.b16 %v1885
        %v2190 = vunpack.c.l.b16 %v1886
        %v2191 = vunpack.c.h.b16 %v1886
        %v2192 = vunpack.c.l.b16 %v1887
        %v2193 = vunpack.c.h.b16 %v1887
        %v2194 = vunpack.c.l.b16 %v1888
        %v2195 = vunpack.c.h.b16 %v1888
        %v2196 = vunpack.c.l.b16 %v1889
        %v2197 = vunpack.c.h.b16 %v1889
        %v2198 = vunpack.c.l.b16 %v1890
        %v2199 = vunpack.c.h.b16 %v1890
        %v2200 = vunpack.c.l.b16 %v1891
        %v2201 = vunpack.c.h.b16 %v1891
        %v2202 = vunpack.c.l.b16 %v1892
        %v2203 = vunpack.c.h.b16 %v1892
        %v2204 = vunpack.c.l.b16 %v1893
        %v2205 = vunpack.c.h.b16 %v1893
        %v2206 = vunpack.c.l.b16 %v1894
        %v2207 = vunpack.c.h.b16 %v1894
        %v2208 = vunpack.c.l.b16 %v1895
        %v2209 = vunpack.c.h.b16 %v1895
        %v2210 = vunpack.c.l.b16 %v1896
        %v2211 = vunpack.c.h.b16 %v1896
        %v2212 = vunpack.c.l.b16 %v1897
        %v2213 = vunpack.c.h.b16 %v1897
        %v2214 = vunpack.c.l.b16 %v1898
        %v2215 = vunpack.c.h.b16 %v1898
        %v2216 = vunpack.c.l.b16 %v1899
        %v2217 = vunpack.c.h.b16 %v1899
        %v2218 = vunpack.c.l.b16 %v1900
        %v2219 = vunpack.c.h.b16 %v1900
        %v2220 = vunpack.c.l.b16 %v1901
        %v2221 = vunpack.c.h.b16 %v1901
        %v2222 = vunpack.c.l.b16 %v1902
        %v2223 = vunpack.c.h.b16 %v1902
        %v2224 = vunpack.c.l.b16 %v1903
        %v2225 = vunpack.c.h.b16 %v1903
        %v2226 = vunpack.c.l.b16 %v1904
        %v2227 = vunpack.c.h.b16 %v1904
        %v2228 = vunpack.c.l.b16 %v1905
        %v2229 = vunpack.c.h.b16 %v1905
        %v2230 = vunpack.c.l.b16 %v1906
        %v2231 = vunpack.c.h.b16 %v1906
        %v2232 = vunpack.c.l.b16 %v1907
        %v2233 = vunpack.c.h.b16 %v1907
        %v2234 = vunpack.c.l.b16 %v1908
        %v2235 = vunpack.c.h.b16 %v1908
        %v2236 = vunpack.c.l.b16 %v1909
        %v2237 = vunpack.c.h.b16 %v1909
        %v2238 = vunpack.c.l.b16 %v1910
        %v2239 = vunpack.c.h.b16 %v1910
        %v2240 = vunpack.c.l.b16 %v1911
        %v2241 = vunpack.c.h.b16 %v1911
        %v2242 = vunpack.c.l.b16 %v1912
        %v2243 = vunpack.c.h.b16 %v1912
        %v2244 = vunpack.c.l.b16 %v1913
        %v2245 = vunpack.c.h.b16 %v1913
        %v2246 = vunpack.c.l.b16 %v1914
        %v2247 = vunpack.c.h.b16 %v1914
        %v2248 = vunpack.c.l.b16 %v1915
        %v2249 = vunpack.c.h.b16 %v1915
        %v2250 = vunpack.c.l.b16 %v1916
        %v2251 = vunpack.c.h.b16 %v1916
        %v2252 = vunpack.c.l.b16 %v1917
        %v2253 = vunpack.c.h.b16 %v1917
        %v2254 = vunpack.c.l.b16 %v1918
        %v2255 = vunpack.c.h.b16 %v1918
        %v2256 = vunpack.c.l.b16 %v1919
        %v2257 = vunpack.c.h.b16 %v1919
        %v2258 = vunpack.c.l.b16 %v1920
        %v2259 = vunpack.c.h.b16 %v1920
        %v2260 = vunpack.c.l.b16 %v1921
        %v2261 = vunpack.c.h.b16 %v1921
        %v2262 = vunpack.c.l.b16 %v1922
        %v2263 = vunpack.c.h.b16 %v1922
        %v2264 = vunpack.c.l.b16 %v1923
        %v2265 = vunpack.c.h.b16 %v1923
        %v2266 = vunpack.c.l.b16 %v1924
        %v2267 = vunpack.c.h.b16 %v1924
        %v2268 = vunpack.c.l.b16 %v1925
        %v2269 = vunpack.c.h.b16 %v1925
        %v2270 = vunpack.c.l.b16 %v1926
        %v2271 = vunpack.c.h.b16 %v1926
        %v2272 = vunpack.c.l.b16 %v1927
        %v2273 = vunpack.c.h.b16 %v1927
        %v2274 = vunpack.c.l.b16 %v1928
        %v2275 = vunpack.c.h.b16 %v1928
        %v2276 = vunpack.c.l.b16 %v1929
        %v2277 = vunpack.c.h.b16 %v1929
        %v2278 = vunpack.c.l.b16 %v1930
        %v2279 = vunpack.c.h.b16 %v1930
        %v2280 = vunpack.c.l.b16 %v1931
        %v2281 = vunpack.c.h.b16 %v1931
        %v2282 = vunpack.c.l.b16 %v1932
        %v2283 = vunpack.c.h.b16 %v1932
        %v2284 = vunpack.c.l.b16 %v1933
        %v2285 = vunpack.c.h.b16 %v1933
        %v2286 = vunpack.c.l.b16 %v1934
        %v2287 = vunpack.c.h.b16 %v1934
        %v2288 = vunpack.c.l.b16 %v1935
        %v2289 = vunpack.c.h.b16 %v1935
        %v2290 = vunpack.c.l.b16 %v1936
        %v2291 = vunpack.c.h.b16 %v1936
        %v2292 = vunpack.c.l.b16 %v1937
        %v2293 = vunpack.c.h.b16 %v1937
        %v2294 = vunpack.c.l.b16 %v1938
        %v2295 = vunpack.c.h.b16 %v1938
        %v2296 = vunpack.c.l.b16 %v1939
        %v2297 = vunpack.c.h.b16 %v1939
        %v2298 = vunpack.c.l.b16 %v1940
        %v2299 = vunpack.c.h.b16 %v1940
        %v2300 = vunpack.c.l.b16 %v1941
        %v2301 = vunpack.c.h.b16 %v1941
        %v2302 = vunpack.c.l.b16 %v1942
        %v2303 = vunpack.c.h.b16 %v1942
        %v2304 = vunpack.c.l.b16 %v1943
        %v2305 = vunpack.c.h.b16 %v1943
        %v2306 = vunpack.c.l.b16 %v1944
        %v2307 = vunpack.c.h.b16 %v1944
        %v2308 = vunpack.c.l.b16 %v1945
        %v2309 = vunpack.c.h.b16 %v1945
        %v2310 = vunpack.c.l.b16 %v1946
        %v2311 = vunpack.c.h.b16 %v1946
        %v2312 = vunpack.c.l.b16 %v1947
        %v2313 = vunpack.c.h.b16 %v1947
        %v2314 = vunpack.c.l.b16 %v1948
        %v2315 = vunpack.c.h.b16 %v1948
        %v2316 = vunpack.c.l.b16 %v1949
        %v2317 = vunpack.c.h.b16 %v1949
        %v2318 = vunpack.c.l.b16 %v1950
        %v2319 = vunpack.c.h.b16 %v1950
        %v2320 = vunpack.c.l.b16 %v1951
        %v2321 = vunpack.c.h.b16 %v1951
        %v2322 = vunpack.c.l.b16 %v1952
        %v2323 = vunpack.c.h.b16 %v1952
        %v2324 = vunpack.c.l.b16 %v1953
        %v2325 = vunpack.c.h.b16 %v1953
        %v2326 = vunpack.c.l.b16 %v1954
        %v2327 = vunpack.c.h.b16 %v1954
        %v2328 = vunpack.c.l.b16 %v1955
        %v2329 = vunpack.c.h.b16 %v1955
        %v2330 = vunpack.c.l.b16 %v1956
        %v2331 = vunpack.c.h.b16 %v1956
        %v2332 = vunpack.c.l.b16 %v1957
        %v2333 = vunpack.c.h.b16 %v1957
        %v2334 = vunpack.c.l.b16 %v1958
        %v2335 = vunpack.c.h.b16 %v1958
        %v2336 = vunpack.c.l.b16 %v1959
        %v2337 = vunpack.c.h.b16 %v1959
        %v2338 = vunpack.c.l.b16 %v1960
        %v2339 = vunpack.c.h.b16 %v1960
        %v2340 = vunpack.c.l.b16 %v1961
        %v2341 = vunpack.c.h.b16 %v1961
        %v2342 = vunpack.c.l.b16 %v1962
        %v2343 = vunpack.c.h.b16 %v1962
        %v2344 = vunpack.c.l.b16 %v1963
        %v2345 = vunpack.c.h.b16 %v1963
        %v2346 = vunpack.c.l.b16 %v1964
        %v2347 = vunpack.c.h.b16 %v1964
        %v2348 = vunpack.c.l.b16 %v1965
        %v2349 = vunpack.c.h.b16 %v1965
        %v2350 = vunpack.c.l.b16 %v1966
        %v2351 = vunpack.c.h.b16 %v1966
        %v2352 = vunpack.c.l.b16 %v1967
        %v2353 = vunpack.c.h.b16 %v1967
        %v2354 = vunpack.c.l.b16 %v1968
        %v2355 = vunpack.c.h.b16 %v1968
        %v2356 = vunpack.c.l.b16 %v1969
        %v2357 = vunpack.c.h.b16 %v1969
        %v2358 = vunpack.c.l.b16 %v1970
        %v2359 = vunpack.c.h.b16 %v1970
        %v2360 = vunpack.c.l.b16 %v1971
        %v2361 = vunpack.c.h.b16 %v1971
        %v2362 = vunpack.c.l.b16 %v1972
        %v2363 = vunpack.c.h.b16 %v1972
        %v2364 = vunpack.c.l.b16 %v1973
        %v2365 = vunpack.c.h.b16 %v1973
        %v2366 = vunpack.c.l.b16 %v1974
        %v2367 = vunpack.c.h.b16 %v1974
        %v2368 = vunpack.c.l.b16 %v1975
        %v2369 = vunpack.c.h.b16 %v1975
        %v2370 = vunpack.c.l.b16 %v1976
        %v2371 = vunpack.c.h.b16 %v1976
        %v2372 = vunpack.c.l.b16 %v1977
        %v2373 = vunpack.c.h.b16 %v1977
        %v2374 = vunpack.c.l.b16 %v1978
        %v2375 = vunpack.c.h.b16 %v1978
        %v2376 = vunpack.c.l.b16 %v1979
        %v2377 = vunpack.c.h.b16 %v1979
        %v2378 = vunpack.c.l.b16 %v1980
        %v2379 = vunpack.c.h.b16 %v1980
        %v2380 = vunpack.c.l.b16 %v1981
        %v2381 = vunpack.c.h.b16 %v1981
        %v2382 = vunpack.c.l.b16 %v1982
        %v2383 = vunpack.c.h.b16 %v1982
        %v2384 = vunpack.c.l.b16 %v1983
        %v2385 = vunpack.c.h.b16 %v1983
        %v2386 = vunpack.c.l.b16 %v1984
        %v2387 = vunpack.c.h.b16 %v1984
        %v2388 = vunpack.c.l.b16 %v1985
        %v2389 = vunpack.c.h.b16 %v1985
        %v2390 = vunpack.c.l.b16 %v1986
        %v2391 = vunpack.c.h.b16 %v1986
        %v2392 = vunpack.c.l.b16 %v1987
        %v2393 = vunpack.c.h.b16 %v1987
        %v2394 = vpack.c.b16 %v2142, %v2138
        %v2395 = vpack.c.b16 %v2143, %v2139
        %v2396 = vpack.c.b16 %v2144, %v2140
        %v2397 = vpack.c.b16 %v2145, %v2141
        %v2398 = vpack.c.b16 %v2150, %v2146
        %v2399 = vpack.c.b16 %v2151, %v2147
        %v2400 = vpack.c.b16 %v2152, %v2148
        %v2401 = vpack.c.b16 %v2153, %v2149
        %v2402 = vpack.c.b16 %v2158, %v2154
        %v2403 = vpack.c.b16 %v2159, %v2155
        %v2404 = vpack.c.b16 %v2160, %v2156
        %v2405 = vpack.c.b16 %v2161, %v2157
        %v2406 = vpack.c.b16 %v2166, %v2162
        %v2407 = vpack.c.b16 %v2167, %v2163
        %v2408 = vpack.c.b16 %v2168, %v2164
        %v2409 = vpack.c.b16 %v2169, %v2165
        %v2410 = vpack.c.b16 %v2174, %v2170
        %v2411 = vpack.c.b16 %v2175, %v2171
        %v2412 = vpack.c.b16 %v2176, %v2172
        %v2413 = vpack.c.b16 %v2177, %v2173
        %v2414 = vpack.c.b16 %v2182, %v2178
        %v2415 = vpack.c.b16 %v2183, %v2179
        %v2416 = vpack.c.b16 %v2184, %v2180
        %v2417 = vpack.c.b16 %v2185, %v2181
        %v2418 = vpack.c.b16 %v2190, %v2186
        %v2419 = vpack.c.b16 %v2191, %v2187
        %v2420 = vpack.c.b16 %v2192, %v2188
        %v2421 = vpack.c.b16 %v2193, %v2189
        %v2422 = vpack.c.b16 %v2198, %v2194
        %v2423 = vpack.c.b16 %v2199, %v2195
        %v2424 = vpack.c.b16 %v2200, %v2196
        %v2425 = vpack.c.b16 %v2201, %v2197
        %v2426 = vpack.c.b16 %v2206, %v2202
        %v2427 = vpack.c.b16 %v2207, %v2203
        %v2428 = vpack.c.b16 %v2208, %v2204
        %v2429 = vpack.c.b16 %v2209, %v2205
        %v2430 = vpack.c.b16 %v2214, %v2210
        %v2431 = vpack.c.b16 %v2215, %v2211
        %v2432 = vpack.c.b16 %v2216, %v2212
        %v2433 = vpack.c.b16 %v2217, %v2213
        %v2434 = vpack.c.b16 %v2222, %v2218
        %v2435 = vpack.c.b16 %v2223, %v2219
        %v2436 = vpack.c.b16 %v2224, %v2220
        %v2437 = vpack.c.b16 %v2225, %v2221
        %v2438 = vpack.c.b16 %v2230, %v2226
        %v2439 = vpack.c.b16 %v2231, %v2227
        %v2440 = vpack.c.b16 %v2232, %v2228
        %v2441 = vpack.c.b16 %v2233, %v2229
        %v2442 = vpack.c.b16 %v2238, %v2234
        %v2443 = vpack.c.b16 %v2239, %v2235
        %v2444 = vpack.c.b16 %v2240, %v2236
        %v2445 = vpack.c.b16 %v2241, %v2237
        %v2446 = vpack.c.b16 %v2246, %v2242
        %v2447 = vpack.c.b16 %v2247, %v2243
        %v2448 = vpack.c.b16 %v2248, %v2244
        %v2449 = vpack.c.b16 %v2249, %v2245
        %v2450 = vpack.c.b16 %v2254, %v2250
        %v2451 = vpack.c.b16 %v2255, %v2251
        %v2452 = vpack.c.b16 %v2256, %v2252
        %v2453 = vpack.c.b16 %v2257, %v2253
        %v2454 = vpack.c.b16 %v2262, %v2258
        %v2455 = vpack.c.b16 %v2263, %v2259
        %v2456 = vpack.c.b16 %v2264, %v2260
        %v2457 = vpack.c.b16 %v2265, %v2261
        %v2458 = vpack.c.b16 %v2270, %v2266
        %v2459 = vpack.c.b16 %v2271, %v2267
        %v2460 = vpack.c.b16 %v2272, %v2268
        %v2461 = vpack.c.b16 %v2273, %v2269
        %v2462 = vpack.c.b16 %v2278, %v2274
        %v2463 = vpack.c.b16 %v2279, %v2275
        %v2464 = vpack.c.b16 %v2280, %v2276
        %v2465 = vpack.c.b16 %v2281, %v2277
        %v2466 = vpack.c.b16 %v2286, %v2282
        %v2467 = vpack.c.b16 %v2287, %v2283
        %v2468 = vpack.c.b16 %v2288, %v2284
        %v2469 = vpack.c.b16 %v2289, %v2285
        %v2470 = vpack.c.b16 %v2294, %v2290
        %v2471 = vpack.c.b16 %v2295, %v2291
        %v2472 = vpack.c.b16 %v2296, %v2292
        %v2473 = vpack.c.b16 %v2297, %v2293
        %v2474 = vpack.c.b16 %v2302, %v2298
        %v2475 = vpack.c.b16 %v2303, %v2299
        %v2476 = vpack.c.b16 %v2304, %v2300
        %v2477 = vpack.c.b16 %v2305, %v2301
        %v2478 = vpack.c.b16 %v2310, %v2306
        %v2479 = vpack.c.b16 %v2311, %v2307
        %v2480 = vpack.c.b16 %v2312, %v2308
        %v2481 = vpack.c.b16 %v2313, %v2309
        %v2482 = vpack.c.b16 %v2318, %v2314
        %v2483 = vpack.c.b16 %v2319, %v2315
        %v2484 = vpack.c.b16 %v2320, %v2316
        %v2485 = vpack.c.b16 %v2321, %v2317
        %v2486 = vpack.c.b16 %v2326, %v2322
        %v2487 = vpack.c.b16 %v2327, %v2323
        %v2488 = vpack.c.b16 %v2328, %v2324
        %v2489 = vpack.c.b16 %v2329, %v2325
        %v2490 = vpack.c.b16 %v2334, %v2330
        %v2491 = vpack.c.b16 %v2335, %v2331
        %v2492 = vpack.c.b16 %v2336, %v2332
        %v2493 = vpack.c.b16 %v2337, %v2333
        %v2494 = vpack.c.b16 %v2342, %v2338
        %v2495 = vpack.c.b16 %v2343, %v2339
        %v2496 = vpack.c.b16 %v2344, %v2340
        %v2497 = vpack.c.b16 %v2345, %v2341
        %v2498 = vpack.c.b16 %v2350, %v2346
        %v2499 = vpack.c.b16 %v2351, %v2347
        %v2500 = vpack.c.b16 %v2352, %v2348
        %v2501 = vpack.c.b16 %v2353, %v2349
        %v2502 = vpack.c.b16 %v2358, %v2354
        %v2503 = vpack.c.b16 %v2359, %v2355
        %v2504 = vpack.c.b16 %v2360, %v2356
        %v2505 = vpack.c.b16 %v2361, %v2357
        %v2506 = vpack.c.b16 %v2366, %v2362
        %v2507 = vpack.c.b16 %v2367, %v2363
        %v2508 = vpack.c.b16 %v2368, %v2364
        %v2509 = vpack.c.b16 %v2369, %v2365
        %v2510 = vpack.c.b16 %v2374, %v2370
        %v2511 = vpack.c.b16 %v2375, %v2371
        %v2512 = vpack.c.b16 %v2376, %v2372
        %v2513 = vpack.c.b16 %v2377, %v2373
        %v2514 = vpack.c.b16 %v2382, %v2378
        %v2515 = vpack.c.b16 %v2383, %v2379
        %v2516 = vpack.c.b16 %v2384, %v2380
        %v2517 = vpack.c.b16 %v2385, %v2381
        %v2518 = vpack.c.b16 %v2390, %v2386
        %v2519 = vpack.c.b16 %v2391, %v2387
        %v2520 = vpack.c.b16 %v2392, %v2388
        %v2521 = vpack.c.b16 %v2393, %v2389
        %2650 = vmatprep.subr.bf16.mxu0 %v2423
        %2651 = vmatpush1.bf16.msra.mxu0 %v2422
        %2652 = vmatprep.subr.bf16.mxu0 %v2419
        %2653 = vmatpush1.bf16.msra.mxu0 %v2418
        %2654 = vmatprep.subr.bf16.mxu0 %v2415
        %2655 = vmatpush1.bf16.msra.mxu0 %v2414
        %2656 = vmatprep.subr.bf16.mxu0 %v2411
        %2657 = vmatpush1.bf16.msra.mxu0 %v2410
        %2658 = vmatprep.subr.bf16.mxu0 %v2407
        %2659 = vmatpush1.bf16.msra.mxu0 %v2406
        %2660 = vmatprep.subr.bf16.mxu0 %v2403
        %2661 = vmatpush1.bf16.msra.mxu0 %v2402
        %2662 = vmatprep.subr.bf16.mxu0 %v2399
        %2663 = vmatpush1.bf16.msra.mxu0 %v2398
        %2664 = vmatprep.subr.bf16.mxu0 %v2395
        %2665 = vmatpush1.bf16.msra.mxu0 %v2394
        %2666 = vmatprep.subr.bf16.mxu0 %v2455
        %2667 = vmatpush2.bf16.msra.mxu0 %v2454
        %2668 = vmatprep.subr.bf16.mxu0 %v2451
        %2669 = vmatpush2.bf16.msra.mxu0 %v2450
        %2670 = vmatprep.subr.bf16.mxu0 %v2447
        %2671 = vmatpush2.bf16.msra.mxu0 %v2446
        %2672 = vmatprep.subr.bf16.mxu0 %v2443
        %2673 = vmatpush2.bf16.msra.mxu0 %v2442
        %2674 = vmatprep.subr.bf16.mxu0 %v2439
        %2675 = vmatpush2.bf16.msra.mxu0 %v2438
        %2676 = vmatprep.subr.bf16.mxu0 %v2435
        %2677 = vmatpush2.bf16.msra.mxu0 %v2434
        %2678 = vmatprep.subr.bf16.mxu0 %v2431
        %2679 = vmatpush2.bf16.msra.mxu0 %v2430
        %2680 = vmatprep.subr.bf16.mxu0 %v2427
        %2681 = vmatpush2.bf16.msra.mxu0 %v2426
        %2682 = vmatprep.mubr.bf16.mxu0 %v1829
        %2683 = vmatmul.mubr.bf16.gmra.mxu0 %v1828
        %v2684 = vpop.f32.mrf.mxu0
        %v2685 = vadd.f32 %v1993, %v2684
        %v2686 = vpop.f32.mrf.mxu0
        %v2687 = vadd.f32 %v1997, %v2686
        %v2688 = vpop.f32.mrf.mxu0
        %v2689 = vadd.f32 %v1993, %v2688
        %v2690 = vpop.f32.mrf.mxu0
        %v2691 = vadd.f32 %v1997, %v2690
        %2692 = vmatprep.mubr.bf16.mxu0 %v1833
        %2693 = vmatmul.mubr.bf16.gmra.mxu0 %v1832
        %v2694 = vpop.f32.mrf.mxu0
        %v2695 = vadd.f32 %v1993, %v2694
        %v2696 = vpop.f32.mrf.mxu0
        %v2697 = vadd.f32 %v1997, %v2696
        %v2698 = vpop.f32.mrf.mxu0
        %v2699 = vadd.f32 %v1993, %v2698
        %v2700 = vpop.f32.mrf.mxu0
        %v2701 = vadd.f32 %v1997, %v2700
        %2702 = vmatprep.mubr.bf16.mxu0 %v1837
        %2703 = vmatmul.mubr.bf16.gmra.mxu0 %v1836
        %v2704 = vpop.f32.mrf.mxu0
        %v2705 = vadd.f32 %v1993, %v2704
        %v2706 = vpop.f32.mrf.mxu0
        %v2707 = vadd.f32 %v1997, %v2706
        %v2708 = vpop.f32.mrf.mxu0
        %v2709 = vadd.f32 %v1993, %v2708
        %v2710 = vpop.f32.mrf.mxu0
        %v2711 = vadd.f32 %v1997, %v2710
        %2712 = vmatprep.mubr.bf16.mxu0 %v1841
        %2713 = vmatmul.mubr.bf16.gmra.mxu0 %v1840
        %v2714 = vpop.f32.mrf.mxu0
        %v2715 = vadd.f32 %v1993, %v2714
        %v2716 = vpop.f32.mrf.mxu0
        %v2717 = vadd.f32 %v1997, %v2716
        %v2718 = vpop.f32.mrf.mxu0
        %v2719 = vadd.f32 %v1993, %v2718
        %v2720 = vpop.f32.mrf.mxu0
        %v2721 = vadd.f32 %v1997, %v2720
        %2722 = vmatprep.mubr.bf16.mxu0 %v1845
        %2723 = vmatmul.mubr.bf16.gmra.mxu0 %v1844
        %v2724 = vpop.f32.mrf.mxu0
        %v2725 = vadd.f32 %v1993, %v2724
        %v2726 = vpop.f32.mrf.mxu0
        %v2727 = vadd.f32 %v1997, %v2726
        %v2728 = vpop.f32.mrf.mxu0
        %v2729 = vadd.f32 %v1993, %v2728
        %v2730 = vpop.f32.mrf.mxu0
        %v2731 = vadd.f32 %v1997, %v2730
        %2732 = vmatprep.mubr.bf16.mxu0 %v1849
        %2733 = vmatmul.mubr.bf16.gmra.mxu0 %v1848
        %v2734 = vpop.f32.mrf.mxu0
        %v2735 = vadd.f32 %v1993, %v2734
        %v2736 = vpop.f32.mrf.mxu0
        %v2737 = vadd.f32 %v1997, %v2736
        %v2738 = vpop.f32.mrf.mxu0
        %v2739 = vadd.f32 %v1993, %v2738
        %v2740 = vpop.f32.mrf.mxu0
        %v2741 = vadd.f32 %v1997, %v2740
        %2742 = vmatprep.mubr.bf16.mxu0 %v1853
        %2743 = vmatmul.mubr.bf16.gmra.mxu0 %v1852
        %v2744 = vpop.f32.mrf.mxu0
        %v2745 = vadd.f32 %v1993, %v2744
        %v2746 = vpop.f32.mrf.mxu0
        %v2747 = vadd.f32 %v1997, %v2746
        %v2748 = vpop.f32.mrf.mxu0
        %v2749 = vadd.f32 %v1993, %v2748
        %v2750 = vpop.f32.mrf.mxu0
        %v2751 = vadd.f32 %v1997, %v2750
        %2752 = vmatprep.mubr.bf16.mxu0 %v1857
        %2753 = vmatmul.mubr.bf16.gmra.mxu0 %v1856
        %v2754 = vpop.f32.mrf.mxu0
        %v2755 = vadd.f32 %v1993, %v2754
        %v2756 = vpop.f32.mrf.mxu0
        %v2757 = vadd.f32 %v1997, %v2756
        %v2758 = vpop.f32.mrf.mxu0
        %v2759 = vadd.f32 %v1993, %v2758
        %v2760 = vpop.f32.mrf.mxu0
        %v2761 = vadd.f32 %v1997, %v2760
        %2762 = vdwg.mxu0
        %2763 = vmatprep.subr.bf16.mxu0 %v2487
        %2764 = vmatpush1.bf16.msra.mxu0 %v2486
        %2765 = vmatprep.subr.bf16.mxu0 %v2483
        %2766 = vmatpush1.bf16.msra.mxu0 %v2482
        %2767 = vmatprep.subr.bf16.mxu0 %v2479
        %2768 = vmatpush1.bf16.msra.mxu0 %v2478
        %2769 = vmatprep.subr.bf16.mxu0 %v2475
        %2770 = vmatpush1.bf16.msra.mxu0 %v2474
        %2771 = vmatprep.subr.bf16.mxu0 %v2471
        %2772 = vmatpush1.bf16.msra.mxu0 %v2470
        %2773 = vmatprep.subr.bf16.mxu0 %v2467
        %2774 = vmatpush1.bf16.msra.mxu0 %v2466
        %2775 = vmatprep.subr.bf16.mxu0 %v2463
        %2776 = vmatpush1.bf16.msra.mxu0 %v2462
        %2777 = vmatprep.subr.bf16.mxu0 %v2459
        %2778 = vmatpush1.bf16.msra.mxu0 %v2458
        %2779 = vmatprep.subr.bf16.mxu0 %v2519
        %2780 = vmatpush2.bf16.msra.mxu0 %v2518
        %2781 = vmatprep.subr.bf16.mxu0 %v2515
        %2782 = vmatpush2.bf16.msra.mxu0 %v2514
        %2783 = vmatprep.subr.bf16.mxu0 %v2511
        %2784 = vmatpush2.bf16.msra.mxu0 %v2510
        %2785 = vmatprep.subr.bf16.mxu0 %v2507
        %2786 = vmatpush2.bf16.msra.mxu0 %v2506
        %2787 = vmatprep.subr.bf16.mxu0 %v2503
        %2788 = vmatpush2.bf16.msra.mxu0 %v2502
        %2789 = vmatprep.subr.bf16.mxu0 %v2499
        %2790 = vmatpush2.bf16.msra.mxu0 %v2498
        %2791 = vmatprep.subr.bf16.mxu0 %v2495
        %2792 = vmatpush2.bf16.msra.mxu0 %v2494
        %2793 = vmatprep.subr.bf16.mxu0 %v2491
        %2794 = vmatpush2.bf16.msra.mxu0 %v2490
        %2795 = vmatprep.mubr.bf16.mxu0 %v1831
        %2796 = vmatmul.mubr.bf16.gmra.mxu0 %v1830
        %v2797 = vpop.f32.mrf.mxu0
        %v2798 = vadd.f32 %v2685, %v2797
        %v2799 = vpop.f32.mrf.mxu0
        %v2800 = vadd.f32 %v2687, %v2799
        %v2801 = vpop.f32.mrf.mxu0
        %v2802 = vadd.f32 %v2689, %v2801
        %v2803 = vpop.f32.mrf.mxu0
        %v2804 = vadd.f32 %v2691, %v2803
        %2805 = vmatprep.mubr.bf16.mxu0 %v1835
        %2806 = vmatmul.mubr.bf16.gmra.mxu0 %v1834
        %v2807 = vpop.f32.mrf.mxu0
        %v2808 = vadd.f32 %v2695, %v2807
        %v2809 = vpop.f32.mrf.mxu0
        %v2810 = vadd.f32 %v2697, %v2809
        %v2811 = vpop.f32.mrf.mxu0
        %v2812 = vadd.f32 %v2699, %v2811
        %v2813 = vpop.f32.mrf.mxu0
        %v2814 = vadd.f32 %v2701, %v2813
        %2815 = vmatprep.mubr.bf16.mxu0 %v1839
        %2816 = vmatmul.mubr.bf16.gmra.mxu0 %v1838
        %v2817 = vpop.f32.mrf.mxu0
        %v2818 = vadd.f32 %v2705, %v2817
        %v2819 = vpop.f32.mrf.mxu0
        %v2820 = vadd.f32 %v2707, %v2819
        %v2821 = vpop.f32.mrf.mxu0
        %v2822 = vadd.f32 %v2709, %v2821
        %v2823 = vpop.f32.mrf.mxu0
        %v2824 = vadd.f32 %v2711, %v2823
        %2825 = vmatprep.mubr.bf16.mxu0 %v1843
        %2826 = vmatmul.mubr.bf16.gmra.mxu0 %v1842
        %v2827 = vpop.f32.mrf.mxu0
        %v2828 = vadd.f32 %v2715, %v2827
        %v2829 = vpop.f32.mrf.mxu0
        %v2830 = vadd.f32 %v2717, %v2829
        %v2831 = vpop.f32.mrf.mxu0
        %v2832 = vadd.f32 %v2719, %v2831
        %v2833 = vpop.f32.mrf.mxu0
        %v2834 = vadd.f32 %v2721, %v2833
        %2835 = vmatprep.mubr.bf16.mxu0 %v1847
        %2836 = vmatmul.mubr.bf16.gmra.mxu0 %v1846
        %v2837 = vpop.f32.mrf.mxu0
        %v2838 = vadd.f32 %v2725, %v2837
        %v2839 = vpop.f32.mrf.mxu0
        %v2840 = vadd.f32 %v2727, %v2839
        %v2841 = vpop.f32.mrf.mxu0
        %v2842 = vadd.f32 %v2729, %v2841
        %v2843 = vpop.f32.mrf.mxu0
        %v2844 = vadd.f32 %v2731, %v2843
        %2845 = vmatprep.mubr.bf16.mxu0 %v1851
        %2846 = vmatmul.mubr.bf16.gmra.mxu0 %v1850
        %v2847 = vpop.f32.mrf.mxu0
        %v2848 = vadd.f32 %v2735, %v2847
        %v2849 = vpop.f32.mrf.mxu0
        %v2850 = vadd.f32 %v2737, %v2849
        %v2851 = vpop.f32.mrf.mxu0
        %v2852 = vadd.f32 %v2739, %v2851
        %v2853 = vpop.f32.mrf.mxu0
        %v2854 = vadd.f32 %v2741, %v2853
        %2855 = vmatprep.mubr.bf16.mxu0 %v1855
        %2856 = vmatmul.mubr.bf16.gmra.mxu0 %v1854
        %v2857 = vpop.f32.mrf.mxu0
        %v2858 = vadd.f32 %v2745, %v2857
        %v2859 = vpop.f32.mrf.mxu0
        %v2860 = vadd.f32 %v2747, %v2859
        %v2861 = vpop.f32.mrf.mxu0
        %v2862 = vadd.f32 %v2749, %v2861
        %v2863 = vpop.f32.mrf.mxu0
        %v2864 = vadd.f32 %v2751, %v2863
        %2865 = vmatprep.mubr.bf16.mxu0 %v1859
        %2866 = vmatmul.mubr.bf16.gmra.mxu0 %v1858
        %v2867 = vpop.f32.mrf.mxu0
        %v2868 = vadd.f32 %v2755, %v2867
        %v2869 = vpop.f32.mrf.mxu0
        %v2870 = vadd.f32 %v2757, %v2869
        %v2871 = vpop.f32.mrf.mxu0
        %v2872 = vadd.f32 %v2759, %v2871
        %v2873 = vpop.f32.mrf.mxu0
        %v2874 = vadd.f32 %v2761, %v2873
        %2875 = vdwg.mxu0
        %2876 = vmatprep.subr.bf16.mxu0 %v2425
        %2877 = vmatpush1.bf16.msra.mxu0 %v2424
        %2878 = vmatprep.subr.bf16.mxu0 %v2421
        %2879 = vmatpush1.bf16.msra.mxu0 %v2420
        %2880 = vmatprep.subr.bf16.mxu0 %v2417
        %2881 = vmatpush1.bf16.msra.mxu0 %v2416
        %2882 = vmatprep.subr.bf16.mxu0 %v2413
        %2883 = vmatpush1.bf16.msra.mxu0 %v2412
        %2884 = vmatprep.subr.bf16.mxu0 %v2409
        %2885 = vmatpush1.bf16.msra.mxu0 %v2408
        %2886 = vmatprep.subr.bf16.mxu0 %v2405
        %2887 = vmatpush1.bf16.msra.mxu0 %v2404
        %2888 = vmatprep.subr.bf16.mxu0 %v2401
        %2889 = vmatpush1.bf16.msra.mxu0 %v2400
        %2890 = vmatprep.subr.bf16.mxu0 %v2397
        %2891 = vmatpush1.bf16.msra.mxu0 %v2396
        %2892 = vmatprep.subr.bf16.mxu0 %v2457
        %2893 = vmatpush2.bf16.msra.mxu0 %v2456
        %2894 = vmatprep.subr.bf16.mxu0 %v2453
        %2895 = vmatpush2.bf16.msra.mxu0 %v2452
        %2896 = vmatprep.subr.bf16.mxu0 %v2449
        %2897 = vmatpush2.bf16.msra.mxu0 %v2448
        %2898 = vmatprep.subr.bf16.mxu0 %v2445
        %2899 = vmatpush2.bf16.msra.mxu0 %v2444
        %2900 = vmatprep.subr.bf16.mxu0 %v2441
        %2901 = vmatpush2.bf16.msra.mxu0 %v2440
        %2902 = vmatprep.subr.bf16.mxu0 %v2437
        %2903 = vmatpush2.bf16.msra.mxu0 %v2436
        %2904 = vmatprep.subr.bf16.mxu0 %v2433
        %2905 = vmatpush2.bf16.msra.mxu0 %v2432
        %2906 = vmatprep.subr.bf16.mxu0 %v2429
        %2907 = vmatpush2.bf16.msra.mxu0 %v2428
        %2908 = vmatprep.mubr.bf16.mxu0 %v1829
        %2909 = vmatmul.mubr.bf16.gmra.mxu0 %v1828
        %v2910 = vpop.f32.mrf.mxu0
        %v2911 = vadd.f32 %v2001, %v2910
        %v2912 = vpop.f32.mrf.mxu0
        %v2913 = vadd.f32 %v2005, %v2912
        %v2914 = vpop.f32.mrf.mxu0
        %v2915 = vadd.f32 %v2001, %v2914
        %v2916 = vpop.f32.mrf.mxu0
        %v2917 = vadd.f32 %v2005, %v2916
        %2918 = vmatprep.mubr.bf16.mxu0 %v1833
        %2919 = vmatmul.mubr.bf16.gmra.mxu0 %v1832
        %v2920 = vpop.f32.mrf.mxu0
        %v2921 = vadd.f32 %v2001, %v2920
        %v2922 = vpop.f32.mrf.mxu0
        %v2923 = vadd.f32 %v2005, %v2922
        %v2924 = vpop.f32.mrf.mxu0
        %v2925 = vadd.f32 %v2001, %v2924
        %v2926 = vpop.f32.mrf.mxu0
        %v2927 = vadd.f32 %v2005, %v2926
        %2928 = vmatprep.mubr.bf16.mxu0 %v1837
        %2929 = vmatmul.mubr.bf16.gmra.mxu0 %v1836
        %v2930 = vpop.f32.mrf.mxu0
        %v2931 = vadd.f32 %v2001, %v2930
        %v2932 = vpop.f32.mrf.mxu0
        %v2933 = vadd.f32 %v2005, %v2932
        %v2934 = vpop.f32.mrf.mxu0
        %v2935 = vadd.f32 %v2001, %v2934
        %v2936 = vpop.f32.mrf.mxu0
        %v2937 = vadd.f32 %v2005, %v2936
        %2938 = vmatprep.mubr.bf16.mxu0 %v1841
        %2939 = vmatmul.mubr.bf16.gmra.mxu0 %v1840
        %v2940 = vpop.f32.mrf.mxu0
        %v2941 = vadd.f32 %v2001, %v2940
        %v2942 = vpop.f32.mrf.mxu0
        %v2943 = vadd.f32 %v2005, %v2942
        %v2944 = vpop.f32.mrf.mxu0
        %v2945 = vadd.f32 %v2001, %v2944
        %v2946 = vpop.f32.mrf.mxu0
        %v2947 = vadd.f32 %v2005, %v2946
        %2948 = vmatprep.mubr.bf16.mxu0 %v1845
        %2949 = vmatmul.mubr.bf16.gmra.mxu0 %v1844
        %v2950 = vpop.f32.mrf.mxu0
        %v2951 = vadd.f32 %v2001, %v2950
        %v2952 = vpop.f32.mrf.mxu0
        %v2953 = vadd.f32 %v2005, %v2952
        %v2954 = vpop.f32.mrf.mxu0
        %v2955 = vadd.f32 %v2001, %v2954
        %v2956 = vpop.f32.mrf.mxu0
        %v2957 = vadd.f32 %v2005, %v2956
        %2958 = vmatprep.mubr.bf16.mxu0 %v1849
        %2959 = vmatmul.mubr.bf16.gmra.mxu0 %v1848
        %v2960 = vpop.f32.mrf.mxu0
        %v2961 = vadd.f32 %v2001, %v2960
        %v2962 = vpop.f32.mrf.mxu0
        %v2963 = vadd.f32 %v2005, %v2962
        %v2964 = vpop.f32.mrf.mxu0
        %v2965 = vadd.f32 %v2001, %v2964
        %v2966 = vpop.f32.mrf.mxu0
        %v2967 = vadd.f32 %v2005, %v2966
        %2968 = vmatprep.mubr.bf16.mxu0 %v1853
        %2969 = vmatmul.mubr.bf16.gmra.mxu0 %v1852
        %v2970 = vpop.f32.mrf.mxu0
        %v2971 = vadd.f32 %v2001, %v2970
        %v2972 = vpop.f32.mrf.mxu0
        %v2973 = vadd.f32 %v2005, %v2972
        %v2974 = vpop.f32.mrf.mxu0
        %v2975 = vadd.f32 %v2001, %v2974
        %v2976 = vpop.f32.mrf.mxu0
        %v2977 = vadd.f32 %v2005, %v2976
        %2978 = vmatprep.mubr.bf16.mxu0 %v1857
        %2979 = vmatmul.mubr.bf16.gmra.mxu0 %v1856
        %v2980 = vpop.f32.mrf.mxu0
        %v2981 = vadd.f32 %v2001, %v2980
        %v2982 = vpop.f32.mrf.mxu0
        %v2983 = vadd.f32 %v2005, %v2982
        %v2984 = vpop.f32.mrf.mxu0
        %v2985 = vadd.f32 %v2001, %v2984
        %v2986 = vpop.f32.mrf.mxu0
        %v2987 = vadd.f32 %v2005, %v2986
        %2988 = vdwg.mxu0
        %2989 = vmatprep.subr.bf16.mxu0 %v2489
        %2990 = vmatpush1.bf16.msra.mxu0 %v2488
        %2991 = vmatprep.subr.bf16.mxu0 %v2485
        %2992 = vmatpush1.bf16.msra.mxu0 %v2484
        %2993 = vmatprep.subr.bf16.mxu0 %v2481
        %2994 = vmatpush1.bf16.msra.mxu0 %v2480
        %2995 = vmatprep.subr.bf16.mxu0 %v2477
        %2996 = vmatpush1.bf16.msra.mxu0 %v2476
        %2997 = vmatprep.subr.bf16.mxu0 %v2473
        %2998 = vmatpush1.bf16.msra.mxu0 %v2472
        %2999 = vmatprep.subr.bf16.mxu0 %v2469
        %3000 = vmatpush1.bf16.msra.mxu0 %v2468
        %3001 = vmatprep.subr.bf16.mxu0 %v2465
        %3002 = vmatpush1.bf16.msra.mxu0 %v2464
        %3003 = vmatprep.subr.bf16.mxu0 %v2461
        %3004 = vmatpush1.bf16.msra.mxu0 %v2460
        %3005 = vmatprep.subr.bf16.mxu0 %v2521
        %3006 = vmatpush2.bf16.msra.mxu0 %v2520
        %3007 = vmatprep.subr.bf16.mxu0 %v2517
        %3008 = vmatpush2.bf16.msra.mxu0 %v2516
        %3009 = vmatprep.subr.bf16.mxu0 %v2513
        %3010 = vmatpush2.bf16.msra.mxu0 %v2512
        %3011 = vmatprep.subr.bf16.mxu0 %v2509
        %3012 = vmatpush2.bf16.msra.mxu0 %v2508
        %3013 = vmatprep.subr.bf16.mxu0 %v2505
        %3014 = vmatpush2.bf16.msra.mxu0 %v2504
        %3015 = vmatprep.subr.bf16.mxu0 %v2501
        %3016 = vmatpush2.bf16.msra.mxu0 %v2500
        %3017 = vmatprep.subr.bf16.mxu0 %v2497
        %3018 = vmatpush2.bf16.msra.mxu0 %v2496
        %3019 = vmatprep.subr.bf16.mxu0 %v2493
        %3020 = vmatpush2.bf16.msra.mxu0 %v2492
        %3021 = vmatprep.mubr.bf16.mxu0 %v1831
        %3022 = vmatmul.mubr.bf16.gmra.mxu0 %v1830
        %v3023 = vpop.f32.mrf.mxu0
        %v3024 = vadd.f32 %v2911, %v3023
        %v3025 = vpop.f32.mrf.mxu0
        %v3026 = vadd.f32 %v2913, %v3025
        %v3027 = vpop.f32.mrf.mxu0
        %v3028 = vadd.f32 %v2915, %v3027
        %v3029 = vpop.f32.mrf.mxu0
        %v3030 = vadd.f32 %v2917, %v3029
        %3031 = vmatprep.mubr.bf16.mxu0 %v1835
        %3032 = vmatmul.mubr.bf16.gmra.mxu0 %v1834
        %v3033 = vpop.f32.mrf.mxu0
        %v3034 = vadd.f32 %v2921, %v3033
        %v3035 = vpop.f32.mrf.mxu0
        %v3036 = vadd.f32 %v2923, %v3035
        %v3037 = vpop.f32.mrf.mxu0
        %v3038 = vadd.f32 %v2925, %v3037
        %v3039 = vpop.f32.mrf.mxu0
        %v3040 = vadd.f32 %v2927, %v3039
        %3041 = vmatprep.mubr.bf16.mxu0 %v1839
        %3042 = vmatmul.mubr.bf16.gmra.mxu0 %v1838
        %v3043 = vpop.f32.mrf.mxu0
        %v3044 = vadd.f32 %v2931, %v3043
        %v3045 = vpop.f32.mrf.mxu0
        %v3046 = vadd.f32 %v2933, %v3045
        %v3047 = vpop.f32.mrf.mxu0
        %v3048 = vadd.f32 %v2935, %v3047
        %v3049 = vpop.f32.mrf.mxu0
        %v3050 = vadd.f32 %v2937, %v3049
        %3051 = vmatprep.mubr.bf16.mxu0 %v1843
        %3052 = vmatmul.mubr.bf16.gmra.mxu0 %v1842
        %v3053 = vpop.f32.mrf.mxu0
        %v3054 = vadd.f32 %v2941, %v3053
        %v3055 = vpop.f32.mrf.mxu0
        %v3056 = vadd.f32 %v2943, %v3055
        %v3057 = vpop.f32.mrf.mxu0
        %v3058 = vadd.f32 %v2945, %v3057
        %v3059 = vpop.f32.mrf.mxu0
        %v3060 = vadd.f32 %v2947, %v3059
        %3061 = vmatprep.mubr.bf16.mxu0 %v1847
        %3062 = vmatmul.mubr.bf16.gmra.mxu0 %v1846
        %v3063 = vpop.f32.mrf.mxu0
        %v3064 = vadd.f32 %v2951, %v3063
        %v3065 = vpop.f32.mrf.mxu0
        %v3066 = vadd.f32 %v2953, %v3065
        %v3067 = vpop.f32.mrf.mxu0
        %v3068 = vadd.f32 %v2955, %v3067
        %v3069 = vpop.f32.mrf.mxu0
        %v3070 = vadd.f32 %v2957, %v3069
        %3071 = vmatprep.mubr.bf16.mxu0 %v1851
        %3072 = vmatmul.mubr.bf16.gmra.mxu0 %v1850
        %v3073 = vpop.f32.mrf.mxu0
        %v3074 = vadd.f32 %v2961, %v3073
        %v3075 = vpop.f32.mrf.mxu0
        %v3076 = vadd.f32 %v2963, %v3075
        %v3077 = vpop.f32.mrf.mxu0
        %v3078 = vadd.f32 %v2965, %v3077
        %v3079 = vpop.f32.mrf.mxu0
        %v3080 = vadd.f32 %v2967, %v3079
        %3081 = vmatprep.mubr.bf16.mxu0 %v1855
        %3082 = vmatmul.mubr.bf16.gmra.mxu0 %v1854
        %v3083 = vpop.f32.mrf.mxu0
        %v3084 = vadd.f32 %v2971, %v3083
        %v3085 = vpop.f32.mrf.mxu0
        %v3086 = vadd.f32 %v2973, %v3085
        %v3087 = vpop.f32.mrf.mxu0
        %v3088 = vadd.f32 %v2975, %v3087
        %v3089 = vpop.f32.mrf.mxu0
        %v3090 = vadd.f32 %v2977, %v3089
        %3091 = vmatprep.mubr.bf16.mxu0 %v1859
        %3092 = vmatmul.mubr.bf16.gmra.mxu0 %v1858
        %v3093 = vpop.f32.mrf.mxu0
        %v3094 = vadd.f32 %v2981, %v3093
        %v3095 = vpop.f32.mrf.mxu0
        %v3096 = vadd.f32 %v2983, %v3095
        %v3097 = vpop.f32.mrf.mxu0
        %v3098 = vadd.f32 %v2985, %v3097
        %v3099 = vpop.f32.mrf.mxu0
        %v3100 = vadd.f32 %v2987, %v3099
        %3101 = vdwg.mxu0
        %vm3102 = vcmp.gt.f32.partialorder %v2798, 0.0
        %vm3103 = vcmp.gt.f32.partialorder %v2800, 0.0
        %vm3104 = vcmp.gt.f32.partialorder %v3024, 0.0
        %vm3105 = vcmp.gt.f32.partialorder %v3026, 0.0
        %vm3106 = vcmp.gt.f32.partialorder %v2802, 0.0
        %vm3107 = vcmp.gt.f32.partialorder %v2804, 0.0
        %vm3108 = vcmp.gt.f32.partialorder %v3028, 0.0
        %vm3109 = vcmp.gt.f32.partialorder %v3030, 0.0
        %vm3110 = vcmp.gt.f32.partialorder %v2808, 0.0
        %vm3111 = vcmp.gt.f32.partialorder %v2810, 0.0
        %vm3112 = vcmp.gt.f32.partialorder %v3034, 0.0
        %vm3113 = vcmp.gt.f32.partialorder %v3036, 0.0
        %vm3114 = vcmp.gt.f32.partialorder %v2812, 0.0
        %vm3115 = vcmp.gt.f32.partialorder %v2814, 0.0
        %vm3116 = vcmp.gt.f32.partialorder %v3038, 0.0
        %vm3117 = vcmp.gt.f32.partialorder %v3040, 0.0
        %vm3118 = vcmp.gt.f32.partialorder %v2818, 0.0
        %vm3119 = vcmp.gt.f32.partialorder %v2820, 0.0
        %vm3120 = vcmp.gt.f32.partialorder %v3044, 0.0
        %vm3121 = vcmp.gt.f32.partialorder %v3046, 0.0
        %vm3122 = vcmp.gt.f32.partialorder %v2822, 0.0
        %vm3123 = vcmp.gt.f32.partialorder %v2824, 0.0
        %vm3124 = vcmp.gt.f32.partialorder %v3048, 0.0
        %vm3125 = vcmp.gt.f32.partialorder %v3050, 0.0
        %vm3126 = vcmp.gt.f32.partialorder %v2828, 0.0
        %vm3127 = vcmp.gt.f32.partialorder %v2830, 0.0
        %vm3128 = vcmp.gt.f32.partialorder %v3054, 0.0
        %vm3129 = vcmp.gt.f32.partialorder %v3056, 0.0
        %vm3130 = vcmp.gt.f32.partialorder %v2832, 0.0
        %vm3131 = vcmp.gt.f32.partialorder %v2834, 0.0
        %vm3132 = vcmp.gt.f32.partialorder %v3058, 0.0
        %vm3133 = vcmp.gt.f32.partialorder %v3060, 0.0
        %vm3134 = vcmp.gt.f32.partialorder %v2838, 0.0
        %vm3135 = vcmp.gt.f32.partialorder %v2840, 0.0
        %vm3136 = vcmp.gt.f32.partialorder %v3064, 0.0
        %vm3137 = vcmp.gt.f32.partialorder %v3066, 0.0
        %vm3138 = vcmp.gt.f32.partialorder %v2842, 0.0
        %vm3139 = vcmp.gt.f32.partialorder %v2844, 0.0
        %vm3140 = vcmp.gt.f32.partialorder %v3068, 0.0
        %vm3141 = vcmp.gt.f32.partialorder %v3070, 0.0
        %vm3142 = vcmp.gt.f32.partialorder %v2848, 0.0
        %vm3143 = vcmp.gt.f32.partialorder %v2850, 0.0
        %vm3144 = vcmp.gt.f32.partialorder %v3074, 0.0
        %vm3145 = vcmp.gt.f32.partialorder %v3076, 0.0
        %vm3146 = vcmp.gt.f32.partialorder %v2852, 0.0
        %vm3147 = vcmp.gt.f32.partialorder %v2854, 0.0
        %vm3148 = vcmp.gt.f32.partialorder %v3078, 0.0
        %vm3149 = vcmp.gt.f32.partialorder %v3080, 0.0
        %vm3150 = vcmp.gt.f32.partialorder %v2858, 0.0
        %vm3151 = vcmp.gt.f32.partialorder %v2860, 0.0
        %vm3152 = vcmp.gt.f32.partialorder %v3084, 0.0
        %vm3153 = vcmp.gt.f32.partialorder %v3086, 0.0
        %vm3154 = vcmp.gt.f32.partialorder %v2862, 0.0
        %vm3155 = vcmp.gt.f32.partialorder %v2864, 0.0
        %vm3156 = vcmp.gt.f32.partialorder %v3088, 0.0
        %vm3157 = vcmp.gt.f32.partialorder %v3090, 0.0
        %vm3158 = vcmp.gt.f32.partialorder %v2868, 0.0
        %vm3159 = vcmp.gt.f32.partialorder %v2870, 0.0
        %vm3160 = vcmp.gt.f32.partialorder %v3094, 0.0
        %vm3161 = vcmp.gt.f32.partialorder %v3096, 0.0
        %vm3162 = vcmp.gt.f32.partialorder %v2872, 0.0
        %vm3163 = vcmp.gt.f32.partialorder %v2874, 0.0
        %vm3164 = vcmp.gt.f32.partialorder %v3098, 0.0
        %vm3165 = vcmp.gt.f32.partialorder %v3100, 0.0
        %v3166 = vmul.f32 %v2798, 1.442695
        %v3167 = vpow.pop %v3166
        %v3168 = vmul.f32 %v2800, 1.442695
        %v3169 = vpow.pop %v3168
        %v3170 = vmul.f32 %v3024, 1.442695
        %v3171 = vpow.pop %v3170
        %v3172 = vmul.f32 %v3026, 1.442695
        %v3173 = vpow.pop %v3172
        %v3174 = vmul.f32 %v2802, 1.442695
        %v3175 = vpow.pop %v3174
        %v3176 = vmul.f32 %v2804, 1.442695
        %v3177 = vpow.pop %v3176
        %v3178 = vmul.f32 %v3028, 1.442695
        %v3179 = vpow.pop %v3178
        %v3180 = vmul.f32 %v3030, 1.442695
        %v3181 = vpow.pop %v3180
        %v3182 = vmul.f32 %v2808, 1.442695
        %v3183 = vpow.pop %v3182
        %v3184 = vmul.f32 %v2810, 1.442695
        %v3185 = vpow.pop %v3184
        %v3186 = vmul.f32 %v3034, 1.442695
        %v3187 = vpow.pop %v3186
        %v3188 = vmul.f32 %v3036, 1.442695
        %v3189 = vpow.pop %v3188
        %v3190 = vmul.f32 %v2812, 1.442695
        %v3191 = vpow.pop %v3190
        %v3192 = vmul.f32 %v2814, 1.442695
        %v3193 = vpow.pop %v3192
        %v3194 = vmul.f32 %v3038, 1.442695
        %v3195 = vpow.pop %v3194
        %v3196 = vmul.f32 %v3040, 1.442695
        %v3197 = vpow.pop %v3196
        %v3198 = vmul.f32 %v2818, 1.442695
        %v3199 = vpow.pop %v3198
        %v3200 = vmul.f32 %v2820, 1.442695
        %v3201 = vpow.pop %v3200
        %v3202 = vmul.f32 %v3044, 1.442695
        %v3203 = vpow.pop %v3202
        %v3204 = vmul.f32 %v3046, 1.442695
        %v3205 = vpow.pop %v3204
        %v3206 = vmul.f32 %v2822, 1.442695
        %v3207 = vpow.pop %v3206
        %v3208 = vmul.f32 %v2824, 1.442695
        %v3209 = vpow.pop %v3208
        %v3210 = vmul.f32 %v3048, 1.442695
        %v3211 = vpow.pop %v3210
        %v3212 = vmul.f32 %v3050, 1.442695
        %v3213 = vpow.pop %v3212
        %v3214 = vmul.f32 %v2828, 1.442695
        %v3215 = vpow.pop %v3214
        %v3216 = vmul.f32 %v2830, 1.442695
        %v3217 = vpow.pop %v3216
        %v3218 = vmul.f32 %v3054, 1.442695
        %v3219 = vpow.pop %v3218
        %v3220 = vmul.f32 %v3056, 1.442695
        %v3221 = vpow.pop %v3220
        %v3222 = vmul.f32 %v2832, 1.442695
        %v3223 = vpow.pop %v3222
        %v3224 = vmul.f32 %v2834, 1.442695
        %v3225 = vpow.pop %v3224
        %v3226 = vmul.f32 %v3058, 1.442695
        %v3227 = vpow.pop %v3226
        %v3228 = vmul.f32 %v3060, 1.442695
        %v3229 = vpow.pop %v3228
        %v3230 = vmul.f32 %v2838, 1.442695
        %v3231 = vpow.pop %v3230
        %v3232 = vmul.f32 %v2840, 1.442695
        %v3233 = vpow.pop %v3232
        %v3234 = vmul.f32 %v3064, 1.442695
        %v3235 = vpow.pop %v3234
        %v3236 = vmul.f32 %v3066, 1.442695
        %v3237 = vpow.pop %v3236
        %v3238 = vmul.f32 %v2842, 1.442695
        %v3239 = vpow.pop %v3238
        %v3240 = vmul.f32 %v2844, 1.442695
        %v3241 = vpow.pop %v3240
        %v3242 = vmul.f32 %v3068, 1.442695
        %v3243 = vpow.pop %v3242
        %v3244 = vmul.f32 %v3070, 1.442695
        %v3245 = vpow.pop %v3244
        %v3246 = vmul.f32 %v2848, 1.442695
        %v3247 = vpow.pop %v3246
        %v3248 = vmul.f32 %v2850, 1.442695
        %v3249 = vpow.pop %v3248
        %v3250 = vmul.f32 %v3074, 1.442695
        %v3251 = vpow.pop %v3250
        %v3252 = vmul.f32 %v3076, 1.442695
        %v3253 = vpow.pop %v3252
        %v3254 = vmul.f32 %v2852, 1.442695
        %v3255 = vpow.pop %v3254
        %v3256 = vmul.f32 %v2854, 1.442695
        %v3257 = vpow.pop %v3256
        %v3258 = vmul.f32 %v3078, 1.442695
        %v3259 = vpow.pop %v3258
        %v3260 = vmul.f32 %v3080, 1.442695
        %v3261 = vpow.pop %v3260
        %v3262 = vmul.f32 %v2858, 1.442695
        %v3263 = vpow.pop %v3262
        %v3264 = vmul.f32 %v2860, 1.442695
        %v3265 = vpow.pop %v3264
        %v3266 = vmul.f32 %v3084, 1.442695
        %v3267 = vpow.pop %v3266
        %v3268 = vmul.f32 %v3086, 1.442695
        %v3269 = vpow.pop %v3268
        %v3270 = vmul.f32 %v2862, 1.442695
        %v3271 = vpow.pop %v3270
        %v3272 = vmul.f32 %v2864, 1.442695
        %v3273 = vpow.pop %v3272
        %v3274 = vmul.f32 %v3088, 1.442695
        %v3275 = vpow.pop %v3274
        %v3276 = vmul.f32 %v3090, 1.442695
        %v3277 = vpow.pop %v3276
        %v3278 = vmul.f32 %v2868, 1.442695
        %v3279 = vpow.pop %v3278
        %v3280 = vmul.f32 %v2870, 1.442695
        %v3281 = vpow.pop %v3280
        %v3282 = vmul.f32 %v3094, 1.442695
        %v3283 = vpow.pop %v3282
        %v3284 = vmul.f32 %v3096, 1.442695
        %v3285 = vpow.pop %v3284
        %v3286 = vmul.f32 %v2872, 1.442695
        %v3287 = vpow.pop %v3286
        %v3288 = vmul.f32 %v2874, 1.442695
        %v3289 = vpow.pop %v3288
        %v3290 = vmul.f32 %v3098, 1.442695
        %v3291 = vpow.pop %v3290
        %v3292 = vmul.f32 %v3100, 1.442695
        %v3293 = vpow.pop %v3292
        %v3294 = vsub.f32 %v3167, 1.0
        %v3295 = vsub.f32 %v3169, 1.0
        %v3296 = vsub.f32 %v3171, 1.0
        %v3297 = vsub.f32 %v3173, 1.0
        %v3298 = vsub.f32 %v3175, 1.0
        %v3299 = vsub.f32 %v3177, 1.0
        %v3300 = vsub.f32 %v3179, 1.0
        %v3301 = vsub.f32 %v3181, 1.0
        %v3302 = vsub.f32 %v3183, 1.0
        %v3303 = vsub.f32 %v3185, 1.0
        %v3304 = vsub.f32 %v3187, 1.0
        %v3305 = vsub.f32 %v3189, 1.0
        %v3306 = vsub.f32 %v3191, 1.0
        %v3307 = vsub.f32 %v3193, 1.0
        %v3308 = vsub.f32 %v3195, 1.0
        %v3309 = vsub.f32 %v3197, 1.0
        %v3310 = vsub.f32 %v3199, 1.0
        %v3311 = vsub.f32 %v3201, 1.0
        %v3312 = vsub.f32 %v3203, 1.0
        %v3313 = vsub.f32 %v3205, 1.0
        %v3314 = vsub.f32 %v3207, 1.0
        %v3315 = vsub.f32 %v3209, 1.0
        %v3316 = vsub.f32 %v3211, 1.0
        %v3317 = vsub.f32 %v3213, 1.0
        %v3318 = vsub.f32 %v3215, 1.0
        %v3319 = vsub.f32 %v3217, 1.0
        %v3320 = vsub.f32 %v3219, 1.0
        %v3321 = vsub.f32 %v3221, 1.0
        %v3322 = vsub.f32 %v3223, 1.0
        %v3323 = vsub.f32 %v3225, 1.0
        %v3324 = vsub.f32 %v3227, 1.0
        %v3325 = vsub.f32 %v3229, 1.0
        %v3326 = vsub.f32 %v3231, 1.0
        %v3327 = vsub.f32 %v3233, 1.0
        %v3328 = vsub.f32 %v3235, 1.0
        %v3329 = vsub.f32 %v3237, 1.0
        %v3330 = vsub.f32 %v3239, 1.0
        %v3331 = vsub.f32 %v3241, 1.0
        %v3332 = vsub.f32 %v3243, 1.0
        %v3333 = vsub.f32 %v3245, 1.0
        %v3334 = vsub.f32 %v3247, 1.0
        %v3335 = vsub.f32 %v3249, 1.0
        %v3336 = vsub.f32 %v3251, 1.0
        %v3337 = vsub.f32 %v3253, 1.0
        %v3338 = vsub.f32 %v3255, 1.0
        %v3339 = vsub.f32 %v3257, 1.0
        %v3340 = vsub.f32 %v3259, 1.0
        %v3341 = vsub.f32 %v3261, 1.0
        %v3342 = vsub.f32 %v3263, 1.0
        %v3343 = vsub.f32 %v3265, 1.0
        %v3344 = vsub.f32 %v3267, 1.0
        %v3345 = vsub.f32 %v3269, 1.0
        %v3346 = vsub.f32 %v3271, 1.0
        %v3347 = vsub.f32 %v3273, 1.0
        %v3348 = vsub.f32 %v3275, 1.0
        %v3349 = vsub.f32 %v3277, 1.0
        %v3350 = vsub.f32 %v3279, 1.0
        %v3351 = vsub.f32 %v3281, 1.0
        %v3352 = vsub.f32 %v3283, 1.0
        %v3353 = vsub.f32 %v3285, 1.0
        %v3354 = vsub.f32 %v3287, 1.0
        %v3355 = vsub.f32 %v3289, 1.0
        %v3356 = vsub.f32 %v3291, 1.0
        %v3357 = vsub.f32 %v3293, 1.0
        %v3358 = vsel %vm3102, %v2798, %v3294
        %v3359 = vsel %vm3103, %v2800, %v3295
        %v3360 = vsel %vm3104, %v3024, %v3296
        %v3361 = vsel %vm3105, %v3026, %v3297
        %v3362 = vsel %vm3106, %v2802, %v3298
        %v3363 = vsel %vm3107, %v2804, %v3299
        %v3364 = vsel %vm3108, %v3028, %v3300
        %v3365 = vsel %vm3109, %v3030, %v3301
        %v3366 = vsel %vm3110, %v2808, %v3302
        %v3367 = vsel %vm3111, %v2810, %v3303
        %v3368 = vsel %vm3112, %v3034, %v3304
        %v3369 = vsel %vm3113, %v3036, %v3305
        %v3370 = vsel %vm3114, %v2812, %v3306
        %v3371 = vsel %vm3115, %v2814, %v3307
        %v3372 = vsel %vm3116, %v3038, %v3308
        %v3373 = vsel %vm3117, %v3040, %v3309
        %v3374 = vsel %vm3118, %v2818, %v3310
        %v3375 = vsel %vm3119, %v2820, %v3311
        %v3376 = vsel %vm3120, %v3044, %v3312
        %v3377 = vsel %vm3121, %v3046, %v3313
        %v3378 = vsel %vm3122, %v2822, %v3314
        %v3379 = vsel %vm3123, %v2824, %v3315
        %v3380 = vsel %vm3124, %v3048, %v3316
        %v3381 = vsel %vm3125, %v3050, %v3317
        %v3382 = vsel %vm3126, %v2828, %v3318
        %v3383 = vsel %vm3127, %v2830, %v3319
        %v3384 = vsel %vm3128, %v3054, %v3320
        %v3385 = vsel %vm3129, %v3056, %v3321
        %v3386 = vsel %vm3130, %v2832, %v3322
        %v3387 = vsel %vm3131, %v2834, %v3323
        %v3388 = vsel %vm3132, %v3058, %v3324
        %v3389 = vsel %vm3133, %v3060, %v3325
        %v3390 = vsel %vm3134, %v2838, %v3326
        %v3391 = vsel %vm3135, %v2840, %v3327
        %v3392 = vsel %vm3136, %v3064, %v3328
        %v3393 = vsel %vm3137, %v3066, %v3329
        %v3394 = vsel %vm3138, %v2842, %v3330
        %v3395 = vsel %vm3139, %v2844, %v3331
        %v3396 = vsel %vm3140, %v3068, %v3332
        %v3397 = vsel %vm3141, %v3070, %v3333
        %v3398 = vsel %vm3142, %v2848, %v3334
        %v3399 = vsel %vm3143, %v2850, %v3335
        %v3400 = vsel %vm3144, %v3074, %v3336
        %v3401 = vsel %vm3145, %v3076, %v3337
        %v3402 = vsel %vm3146, %v2852, %v3338
        %v3403 = vsel %vm3147, %v2854, %v3339
        %v3404 = vsel %vm3148, %v3078, %v3340
        %v3405 = vsel %vm3149, %v3080, %v3341
        %v3406 = vsel %vm3150, %v2858, %v3342
        %v3407 = vsel %vm3151, %v2860, %v3343
        %v3408 = vsel %vm3152, %v3084, %v3344
        %v3409 = vsel %vm3153, %v3086, %v3345
        %v3410 = vsel %vm3154, %v2862, %v3346
        %v3411 = vsel %vm3155, %v2864, %v3347
        %v3412 = vsel %vm3156, %v3088, %v3348
        %v3413 = vsel %vm3157, %v3090, %v3349
        %v3414 = vsel %vm3158, %v2868, %v3350
        %v3415 = vsel %vm3159, %v2870, %v3351
        %v3416 = vsel %vm3160, %v3094, %v3352
        %v3417 = vsel %vm3161, %v3096, %v3353
        %v3418 = vsel %vm3162, %v2872, %v3354
        %v3419 = vsel %vm3163, %v2874, %v3355
        %v3420 = vsel %vm3164, %v3098, %v3356
        %v3421 = vsel %vm3165, %v3100, %v3357
        %v3422 = vld [vmem:[%s7] sm:$0xf]
        %v3423 = vld [vmem:[%s8] sm:$0xf]
        %v3424 = vadd.f32 %v3358, %v3359
        %v3425 = vadd.f32 %v3424, %v3360
        %v3426 = vadd.f32 %v3425, %v3361
        %3427 = vadd.xlane.f32.xlu0 %v3426
        %v3428 = vpop.xlane.xlu0 %3427
        %v3429 = vadd.f32 %v3362, %v3363
        %v3430 = vadd.f32 %v3429, %v3364
        %v3431 = vadd.f32 %v3430, %v3365
        %3432 = vadd.xlane.f32.xlu0 %v3431
        %v3433 = vpop.xlane.xlu0 %3432
        %v3434 = vadd.f32 %v3366, %v3367
        %v3435 = vadd.f32 %v3434, %v3368
        %v3436 = vadd.f32 %v3435, %v3369
        %3437 = vadd.xlane.f32.xlu0 %v3436
        %v3438 = vpop.xlane.xlu0 %3437
        %v3439 = vadd.f32 %v3370, %v3371
        %v3440 = vadd.f32 %v3439, %v3372
        %v3441 = vadd.f32 %v3440, %v3373
        %3442 = vadd.xlane.f32.xlu0 %v3441
        %v3443 = vpop.xlane.xlu0 %3442
        %v3444 = vadd.f32 %v3374, %v3375
        %v3445 = vadd.f32 %v3444, %v3376
        %v3446 = vadd.f32 %v3445, %v3377
        %3447 = vadd.xlane.f32.xlu0 %v3446
        %v3448 = vpop.xlane.xlu0 %3447
        %v3449 = vadd.f32 %v3378, %v3379
        %v3450 = vadd.f32 %v3449, %v3380
        %v3451 = vadd.f32 %v3450, %v3381
        %3452 = vadd.xlane.f32.xlu0 %v3451
        %v3453 = vpop.xlane.xlu0 %3452
        %v3454 = vadd.f32 %v3382, %v3383
        %v3455 = vadd.f32 %v3454, %v3384
        %v3456 = vadd.f32 %v3455, %v3385
        %3457 = vadd.xlane.f32.xlu0 %v3456
        %v3458 = vpop.xlane.xlu0 %3457
        %v3459 = vadd.f32 %v3386, %v3387
        %v3460 = vadd.f32 %v3459, %v3388
        %v3461 = vadd.f32 %v3460, %v3389
        %3462 = vadd.xlane.f32.xlu0 %v3461
        %v3463 = vpop.xlane.xlu0 %3462
        %v3464 = vadd.f32 %v3390, %v3391
        %v3465 = vadd.f32 %v3464, %v3392
        %v3466 = vadd.f32 %v3465, %v3393
        %3467 = vadd.xlane.f32.xlu0 %v3466
        %v3468 = vpop.xlane.xlu0 %3467
        %v3469 = vadd.f32 %v3394, %v3395
        %v3470 = vadd.f32 %v3469, %v3396
        %v3471 = vadd.f32 %v3470, %v3397
        %3472 = vadd.xlane.f32.xlu0 %v3471
        %v3473 = vpop.xlane.xlu0 %3472
        %v3474 = vadd.f32 %v3398, %v3399
        %v3475 = vadd.f32 %v3474, %v3400
        %v3476 = vadd.f32 %v3475, %v3401
        %3477 = vadd.xlane.f32.xlu0 %v3476
        %v3478 = vpop.xlane.xlu0 %3477
        %v3479 = vadd.f32 %v3402, %v3403
        %v3480 = vadd.f32 %v3479, %v3404
        %v3481 = vadd.f32 %v3480, %v3405
        %3482 = vadd.xlane.f32.xlu0 %v3481
        %v3483 = vpop.xlane.xlu0 %3482
        %v3484 = vadd.f32 %v3406, %v3407
        %v3485 = vadd.f32 %v3484, %v3408
        %v3486 = vadd.f32 %v3485, %v3409
        %3487 = vadd.xlane.f32.xlu0 %v3486
        %v3488 = vpop.xlane.xlu0 %3487
        %v3489 = vadd.f32 %v3410, %v3411
        %v3490 = vadd.f32 %v3489, %v3412
        %v3491 = vadd.f32 %v3490, %v3413
        %3492 = vadd.xlane.f32.xlu0 %v3491
        %v3493 = vpop.xlane.xlu0 %3492
        %v3494 = vadd.f32 %v3414, %v3415
        %v3495 = vadd.f32 %v3494, %v3416
        %v3496 = vadd.f32 %v3495, %v3417
        %3497 = vadd.xlane.f32.xlu0 %v3496
        %v3498 = vpop.xlane.xlu0 %3497
        %v3499 = vadd.f32 %v3418, %v3419
        %v3500 = vadd.f32 %v3499, %v3420
        %v3501 = vadd.f32 %v3500, %v3421
        %3502 = vadd.xlane.f32.xlu0 %v3501
        %v3503 = vpop.xlane.xlu0 %3502
        %v3504 = vmul.f32 %v3428, 0.0025
        %v3505 = vmul.f32 %v3433, 0.0025
        %v3506 = vmul.f32 %v3438, 0.0025
        %v3507 = vmul.f32 %v3443, 0.0025
        %v3508 = vmul.f32 %v3448, 0.0025
        %v3509 = vmul.f32 %v3453, 0.0025
        %v3510 = vmul.f32 %v3458, 0.0025
        %v3511 = vmul.f32 %v3463, 0.0025
        %v3512 = vmul.f32 %v3468, 0.0025
        %v3513 = vmul.f32 %v3473, 0.0025
        %v3514 = vmul.f32 %v3478, 0.0025
        %v3515 = vmul.f32 %v3483, 0.0025
        %v3516 = vmul.f32 %v3488, 0.0025
        %v3517 = vmul.f32 %v3493, 0.0025
        %v3518 = vmul.f32 %v3498, 0.0025
        %v3519 = vmul.f32 %v3503, 0.0025
        %v3520 = vmul.f32 %v3358, %v3358
        %v3521 = vmul.f32 %v3359, %v3359
        %v3522 = vmul.f32 %v3360, %v3360
        %v3523 = vmul.f32 %v3361, %v3361
        %v3524 = vmul.f32 %v3362, %v3362
        %v3525 = vmul.f32 %v3363, %v3363
        %v3526 = vmul.f32 %v3364, %v3364
        %v3527 = vmul.f32 %v3365, %v3365
        %v3528 = vmul.f32 %v3366, %v3366
        %v3529 = vmul.f32 %v3367, %v3367
        %v3530 = vmul.f32 %v3368, %v3368
        %v3531 = vmul.f32 %v3369, %v3369
        %v3532 = vmul.f32 %v3370, %v3370
        %v3533 = vmul.f32 %v3371, %v3371
        %v3534 = vmul.f32 %v3372, %v3372
        %v3535 = vmul.f32 %v3373, %v3373
        %v3536 = vmul.f32 %v3374, %v3374
        %v3537 = vmul.f32 %v3375, %v3375
        %v3538 = vmul.f32 %v3376, %v3376
        %v3539 = vmul.f32 %v3377, %v3377
        %v3540 = vmul.f32 %v3378, %v3378
        %v3541 = vmul.f32 %v3379, %v3379
        %v3542 = vmul.f32 %v3380, %v3380
        %v3543 = vmul.f32 %v3381, %v3381
        %v3544 = vmul.f32 %v3382, %v3382
        %v3545 = vmul.f32 %v3383, %v3383
        %v3546 = vmul.f32 %v3384, %v3384
        %v3547 = vmul.f32 %v3385, %v3385
        %v3548 = vmul.f32 %v3386, %v3386
        %v3549 = vmul.f32 %v3387, %v3387
        %v3550 = vmul.f32 %v3388, %v3388
        %v3551 = vmul.f32 %v3389, %v3389
        %v3552 = vmul.f32 %v3390, %v3390
        %v3553 = vmul.f32 %v3391, %v3391
        %v3554 = vmul.f32 %v3392, %v3392
        %v3555 = vmul.f32 %v3393, %v3393
        %v3556 = vmul.f32 %v3394, %v3394
        %v3557 = vmul.f32 %v3395, %v3395
        %v3558 = vmul.f32 %v3396, %v3396
        %v3559 = vmul.f32 %v3397, %v3397
        %v3560 = vmul.f32 %v3398, %v3398
        %v3561 = vmul.f32 %v3399, %v3399
        %v3562 = vmul.f32 %v3400, %v3400
        %v3563 = vmul.f32 %v3401, %v3401
        %v3564 = vmul.f32 %v3402, %v3402
        %v3565 = vmul.f32 %v3403, %v3403
        %v3566 = vmul.f32 %v3404, %v3404
        %v3567 = vmul.f32 %v3405, %v3405
        %v3568 = vmul.f32 %v3406, %v3406
        %v3569 = vmul.f32 %v3407, %v3407
        %v3570 = vmul.f32 %v3408, %v3408
        %v3571 = vmul.f32 %v3409, %v3409
        %v3572 = vmul.f32 %v3410, %v3410
        %v3573 = vmul.f32 %v3411, %v3411
        %v3574 = vmul.f32 %v3412, %v3412
        %v3575 = vmul.f32 %v3413, %v3413
        %v3576 = vmul.f32 %v3414, %v3414
        %v3577 = vmul.f32 %v3415, %v3415
        %v3578 = vmul.f32 %v3416, %v3416
        %v3579 = vmul.f32 %v3417, %v3417
        %v3580 = vmul.f32 %v3418, %v3418
        %v3581 = vmul.f32 %v3419, %v3419
        %v3582 = vmul.f32 %v3420, %v3420
        %v3583 = vmul.f32 %v3421, %v3421
        %v3584 = vadd.f32 %v3520, %v3521
        %v3585 = vadd.f32 %v3584, %v3522
        %v3586 = vadd.f32 %v3585, %v3523
        %3587 = vadd.xlane.f32.xlu0 %v3586
        %v3588 = vpop.xlane.xlu0 %3587
        %v3589 = vadd.f32 %v3524, %v3525
        %v3590 = vadd.f32 %v3589, %v3526
        %v3591 = vadd.f32 %v3590, %v3527
        %3592 = vadd.xlane.f32.xlu0 %v3591
        %v3593 = vpop.xlane.xlu0 %3592
        %v3594 = vadd.f32 %v3528, %v3529
        %v3595 = vadd.f32 %v3594, %v3530
        %v3596 = vadd.f32 %v3595, %v3531
        %3597 = vadd.xlane.f32.xlu0 %v3596
        %v3598 = vpop.xlane.xlu0 %3597
        %v3599 = vadd.f32 %v3532, %v3533
        %v3600 = vadd.f32 %v3599, %v3534
        %v3601 = vadd.f32 %v3600, %v3535
        %3602 = vadd.xlane.f32.xlu0 %v3601
        %v3603 = vpop.xlane.xlu0 %3602
        %v3604 = vadd.f32 %v3536, %v3537
        %v3605 = vadd.f32 %v3604, %v3538
        %v3606 = vadd.f32 %v3605, %v3539
        %3607 = vadd.xlane.f32.xlu0 %v3606
        %v3608 = vpop.xlane.xlu0 %3607
        %v3609 = vadd.f32 %v3540, %v3541
        %v3610 = vadd.f32 %v3609, %v3542
        %v3611 = vadd.f32 %v3610, %v3543
        %3612 = vadd.xlane.f32.xlu0 %v3611
        %v3613 = vpop.xlane.xlu0 %3612
        %v3614 = vadd.f32 %v3544, %v3545
        %v3615 = vadd.f32 %v3614, %v3546
        %v3616 = vadd.f32 %v3615, %v3547
        %3617 = vadd.xlane.f32.xlu0 %v3616
        %v3618 = vpop.xlane.xlu0 %3617
        %v3619 = vadd.f32 %v3548, %v3549
        %v3620 = vadd.f32 %v3619, %v3550
        %v3621 = vadd.f32 %v3620, %v3551
        %3622 = vadd.xlane.f32.xlu0 %v3621
        %v3623 = vpop.xlane.xlu0 %3622
        %v3624 = vadd.f32 %v3552, %v3553
        %v3625 = vadd.f32 %v3624, %v3554
        %v3626 = vadd.f32 %v3625, %v3555
        %3627 = vadd.xlane.f32.xlu0 %v3626
        %v3628 = vpop.xlane.xlu0 %3627
        %v3629 = vadd.f32 %v3556, %v3557
        %v3630 = vadd.f32 %v3629, %v3558
        %v3631 = vadd.f32 %v3630, %v3559
        %3632 = vadd.xlane.f32.xlu0 %v3631
        %v3633 = vpop.xlane.xlu0 %3632
        %v3634 = vadd.f32 %v3560, %v3561
        %v3635 = vadd.f32 %v3634, %v3562
        %v3636 = vadd.f32 %v3635, %v3563
        %3637 = vadd.xlane.f32.xlu0 %v3636
        %v3638 = vpop.xlane.xlu0 %3637
        %v3639 = vadd.f32 %v3564, %v3565
        %v3640 = vadd.f32 %v3639, %v3566
        %v3641 = vadd.f32 %v3640, %v3567
        %3642 = vadd.xlane.f32.xlu0 %v3641
        %v3643 = vpop.xlane.xlu0 %3642
        %v3644 = vadd.f32 %v3568, %v3569
        %v3645 = vadd.f32 %v3644, %v3570
        %v3646 = vadd.f32 %v3645, %v3571
        %3647 = vadd.xlane.f32.xlu0 %v3646
        %v3648 = vpop.xlane.xlu0 %3647
        %v3649 = vadd.f32 %v3572, %v3573
        %v3650 = vadd.f32 %v3649, %v3574
        %v3651 = vadd.f32 %v3650, %v3575
        %3652 = vadd.xlane.f32.xlu0 %v3651
        %v3653 = vpop.xlane.xlu0 %3652
        %v3654 = vadd.f32 %v3576, %v3577
        %v3655 = vadd.f32 %v3654, %v3578
        %v3656 = vadd.f32 %v3655, %v3579
        %3657 = vadd.xlane.f32.xlu0 %v3656
        %v3658 = vpop.xlane.xlu0 %3657
        %v3659 = vadd.f32 %v3580, %v3581
        %v3660 = vadd.f32 %v3659, %v3582
        %v3661 = vadd.f32 %v3660, %v3583
        %3662 = vadd.xlane.f32.xlu0 %v3661
        %v3663 = vpop.xlane.xlu0 %3662
        %v3664 = vmul.f32 %v3588, 0.0025
        %v3665 = vmul.f32 %v3593, 0.0025
        %v3666 = vmul.f32 %v3598, 0.0025
        %v3667 = vmul.f32 %v3603, 0.0025
        %v3668 = vmul.f32 %v3608, 0.0025
        %v3669 = vmul.f32 %v3613, 0.0025
        %v3670 = vmul.f32 %v3618, 0.0025
        %v3671 = vmul.f32 %v3623, 0.0025
        %v3672 = vmul.f32 %v3628, 0.0025
        %v3673 = vmul.f32 %v3633, 0.0025
        %v3674 = vmul.f32 %v3638, 0.0025
        %v3675 = vmul.f32 %v3643, 0.0025
        %v3676 = vmul.f32 %v3648, 0.0025
        %v3677 = vmul.f32 %v3653, 0.0025
        %v3678 = vmul.f32 %v3658, 0.0025
        %v3679 = vmul.f32 %v3663, 0.0025
        %v3680 = vmul.f32 %v3504, %v3504
        %v3681 = vmul.f32 %v3505, %v3505
        %v3682 = vmul.f32 %v3506, %v3506
        %v3683 = vmul.f32 %v3507, %v3507
        %v3684 = vmul.f32 %v3508, %v3508
        %v3685 = vmul.f32 %v3509, %v3509
        %v3686 = vmul.f32 %v3510, %v3510
        %v3687 = vmul.f32 %v3511, %v3511
        %v3688 = vmul.f32 %v3512, %v3512
        %v3689 = vmul.f32 %v3513, %v3513
        %v3690 = vmul.f32 %v3514, %v3514
        %v3691 = vmul.f32 %v3515, %v3515
        %v3692 = vmul.f32 %v3516, %v3516
        %v3693 = vmul.f32 %v3517, %v3517
        %v3694 = vmul.f32 %v3518, %v3518
        %v3695 = vmul.f32 %v3519, %v3519
        %v3696 = vsub.f32 %v3664, %v3680
        %v3697 = vsub.f32 %v3665, %v3681
        %v3698 = vsub.f32 %v3666, %v3682
        %v3699 = vsub.f32 %v3667, %v3683
        %v3700 = vsub.f32 %v3668, %v3684
        %v3701 = vsub.f32 %v3669, %v3685
        %v3702 = vsub.f32 %v3670, %v3686
        %v3703 = vsub.f32 %v3671, %v3687
        %v3704 = vsub.f32 %v3672, %v3688
        %v3705 = vsub.f32 %v3673, %v3689
        %v3706 = vsub.f32 %v3674, %v3690
        %v3707 = vsub.f32 %v3675, %v3691
        %v3708 = vsub.f32 %v3676, %v3692
        %v3709 = vsub.f32 %v3677, %v3693
        %v3710 = vsub.f32 %v3678, %v3694
        %v3711 = vsub.f32 %v3679, %v3695
        %v3712 = vmax.f32 %v3696, 0.0
        %v3713 = vmax.f32 %v3697, 0.0
        %v3714 = vmax.f32 %v3698, 0.0
        %v3715 = vmax.f32 %v3699, 0.0
        %v3716 = vmax.f32 %v3700, 0.0
        %v3717 = vmax.f32 %v3701, 0.0
        %v3718 = vmax.f32 %v3702, 0.0
        %v3719 = vmax.f32 %v3703, 0.0
        %v3720 = vmax.f32 %v3704, 0.0
        %v3721 = vmax.f32 %v3705, 0.0
        %v3722 = vmax.f32 %v3706, 0.0
        %v3723 = vmax.f32 %v3707, 0.0
        %v3724 = vmax.f32 %v3708, 0.0
        %v3725 = vmax.f32 %v3709, 0.0
        %v3726 = vmax.f32 %v3710, 0.0
        %v3727 = vmax.f32 %v3711, 0.0
        %v3728 = vadd.f32 %v3712, 1e-05
        %v3729 = vadd.f32 %v3713, 1e-05
        %v3730 = vadd.f32 %v3714, 1e-05
        %v3731 = vadd.f32 %v3715, 1e-05
        %v3732 = vadd.f32 %v3716, 1e-05
        %v3733 = vadd.f32 %v3717, 1e-05
        %v3734 = vadd.f32 %v3718, 1e-05
        %v3735 = vadd.f32 %v3719, 1e-05
        %v3736 = vadd.f32 %v3720, 1e-05
        %v3737 = vadd.f32 %v3721, 1e-05
        %v3738 = vadd.f32 %v3722, 1e-05
        %v3739 = vadd.f32 %v3723, 1e-05
        %v3740 = vadd.f32 %v3724, 1e-05
        %v3741 = vadd.f32 %v3725, 1e-05
        %v3742 = vadd.f32 %v3726, 1e-05
        %v3743 = vadd.f32 %v3727, 1e-05
        %v3744 = vrsqrt.pop %v3728
        %v3745 = vrsqrt.pop %v3729
        %v3746 = vrsqrt.pop %v3730
        %v3747 = vrsqrt.pop %v3731
        %v3748 = vrsqrt.pop %v3732
        %v3749 = vrsqrt.pop %v3733
        %v3750 = vrsqrt.pop %v3734
        %v3751 = vrsqrt.pop %v3735
        %v3752 = vrsqrt.pop %v3736
        %v3753 = vrsqrt.pop %v3737
        %v3754 = vrsqrt.pop %v3738
        %v3755 = vrsqrt.pop %v3739
        %v3756 = vrsqrt.pop %v3740
        %v3757 = vrsqrt.pop %v3741
        %v3758 = vrsqrt.pop %v3742
        %v3759 = vrsqrt.pop %v3743
        %v3760 = vsub.f32 %v3358, %v3504
        %v3761 = vsub.f32 %v3359, %v3504
        %v3762 = vsub.f32 %v3360, %v3504
        %v3763 = vsub.f32 %v3361, %v3504
        %v3764 = vsub.f32 %v3362, %v3505
        %v3765 = vsub.f32 %v3363, %v3505
        %v3766 = vsub.f32 %v3364, %v3505
        %v3767 = vsub.f32 %v3365, %v3505
        %v3768 = vsub.f32 %v3366, %v3506
        %v3769 = vsub.f32 %v3367, %v3506
        %v3770 = vsub.f32 %v3368, %v3506
        %v3771 = vsub.f32 %v3369, %v3506
        %v3772 = vsub.f32 %v3370, %v3507
        %v3773 = vsub.f32 %v3371, %v3507
        %v3774 = vsub.f32 %v3372, %v3507
        %v3775 = vsub.f32 %v3373, %v3507
        %v3776 = vsub.f32 %v3374, %v3508
        %v3777 = vsub.f32 %v3375, %v3508
        %v3778 = vsub.f32 %v3376, %v3508
        %v3779 = vsub.f32 %v3377, %v3508
        %v3780 = vsub.f32 %v3378, %v3509
        %v3781 = vsub.f32 %v3379, %v3509
        %v3782 = vsub.f32 %v3380, %v3509
        %v3783 = vsub.f32 %v3381, %v3509
        %v3784 = vsub.f32 %v3382, %v3510
        %v3785 = vsub.f32 %v3383, %v3510
        %v3786 = vsub.f32 %v3384, %v3510
        %v3787 = vsub.f32 %v3385, %v3510
        %v3788 = vsub.f32 %v3386, %v3511
        %v3789 = vsub.f32 %v3387, %v3511
        %v3790 = vsub.f32 %v3388, %v3511
        %v3791 = vsub.f32 %v3389, %v3511
        %v3792 = vsub.f32 %v3390, %v3512
        %v3793 = vsub.f32 %v3391, %v3512
        %v3794 = vsub.f32 %v3392, %v3512
        %v3795 = vsub.f32 %v3393, %v3512
        %v3796 = vsub.f32 %v3394, %v3513
        %v3797 = vsub.f32 %v3395, %v3513
        %v3798 = vsub.f32 %v3396, %v3513
        %v3799 = vsub.f32 %v3397, %v3513
        %v3800 = vsub.f32 %v3398, %v3514
        %v3801 = vsub.f32 %v3399, %v3514
        %v3802 = vsub.f32 %v3400, %v3514
        %v3803 = vsub.f32 %v3401, %v3514
        %v3804 = vsub.f32 %v3402, %v3515
        %v3805 = vsub.f32 %v3403, %v3515
        %v3806 = vsub.f32 %v3404, %v3515
        %v3807 = vsub.f32 %v3405, %v3515
        %v3808 = vsub.f32 %v3406, %v3516
        %v3809 = vsub.f32 %v3407, %v3516
        %v3810 = vsub.f32 %v3408, %v3516
        %v3811 = vsub.f32 %v3409, %v3516
        %v3812 = vsub.f32 %v3410, %v3517
        %v3813 = vsub.f32 %v3411, %v3517
        %v3814 = vsub.f32 %v3412, %v3517
        %v3815 = vsub.f32 %v3413, %v3517
        %v3816 = vsub.f32 %v3414, %v3518
        %v3817 = vsub.f32 %v3415, %v3518
        %v3818 = vsub.f32 %v3416, %v3518
        %v3819 = vsub.f32 %v3417, %v3518
        %v3820 = vsub.f32 %v3418, %v3519
        %v3821 = vsub.f32 %v3419, %v3519
        %v3822 = vsub.f32 %v3420, %v3519
        %v3823 = vsub.f32 %v3421, %v3519
        %v3824 = vmul.f32 %v3760, %v3744
        %v3825 = vmul.f32 %v3761, %v3744
        %v3826 = vmul.f32 %v3762, %v3744
        %v3827 = vmul.f32 %v3763, %v3744
        %v3828 = vmul.f32 %v3764, %v3745
        %v3829 = vmul.f32 %v3765, %v3745
        %v3830 = vmul.f32 %v3766, %v3745
        %v3831 = vmul.f32 %v3767, %v3745
        %v3832 = vmul.f32 %v3768, %v3746
        %v3833 = vmul.f32 %v3769, %v3746
        %v3834 = vmul.f32 %v3770, %v3746
        %v3835 = vmul.f32 %v3771, %v3746
        %v3836 = vmul.f32 %v3772, %v3747
        %v3837 = vmul.f32 %v3773, %v3747
        %v3838 = vmul.f32 %v3774, %v3747
        %v3839 = vmul.f32 %v3775, %v3747
        %v3840 = vmul.f32 %v3776, %v3748
        %v3841 = vmul.f32 %v3777, %v3748
        %v3842 = vmul.f32 %v3778, %v3748
        %v3843 = vmul.f32 %v3779, %v3748
        %v3844 = vmul.f32 %v3780, %v3749
        %v3845 = vmul.f32 %v3781, %v3749
        %v3846 = vmul.f32 %v3782, %v3749
        %v3847 = vmul.f32 %v3783, %v3749
        %v3848 = vmul.f32 %v3784, %v3750
        %v3849 = vmul.f32 %v3785, %v3750
        %v3850 = vmul.f32 %v3786, %v3750
        %v3851 = vmul.f32 %v3787, %v3750
        %v3852 = vmul.f32 %v3788, %v3751
        %v3853 = vmul.f32 %v3789, %v3751
        %v3854 = vmul.f32 %v3790, %v3751
        %v3855 = vmul.f32 %v3791, %v3751
        %v3856 = vmul.f32 %v3792, %v3752
        %v3857 = vmul.f32 %v3793, %v3752
        %v3858 = vmul.f32 %v3794, %v3752
        %v3859 = vmul.f32 %v3795, %v3752
        %v3860 = vmul.f32 %v3796, %v3753
        %v3861 = vmul.f32 %v3797, %v3753
        %v3862 = vmul.f32 %v3798, %v3753
        %v3863 = vmul.f32 %v3799, %v3753
        %v3864 = vmul.f32 %v3800, %v3754
        %v3865 = vmul.f32 %v3801, %v3754
        %v3866 = vmul.f32 %v3802, %v3754
        %v3867 = vmul.f32 %v3803, %v3754
        %v3868 = vmul.f32 %v3804, %v3755
        %v3869 = vmul.f32 %v3805, %v3755
        %v3870 = vmul.f32 %v3806, %v3755
        %v3871 = vmul.f32 %v3807, %v3755
        %v3872 = vmul.f32 %v3808, %v3756
        %v3873 = vmul.f32 %v3809, %v3756
        %v3874 = vmul.f32 %v3810, %v3756
        %v3875 = vmul.f32 %v3811, %v3756
        %v3876 = vmul.f32 %v3812, %v3757
        %v3877 = vmul.f32 %v3813, %v3757
        %v3878 = vmul.f32 %v3814, %v3757
        %v3879 = vmul.f32 %v3815, %v3757
        %v3880 = vmul.f32 %v3816, %v3758
        %v3881 = vmul.f32 %v3817, %v3758
        %v3882 = vmul.f32 %v3818, %v3758
        %v3883 = vmul.f32 %v3819, %v3758
        %v3884 = vmul.f32 %v3820, %v3759
        %v3885 = vmul.f32 %v3821, %v3759
        %v3886 = vmul.f32 %v3822, %v3759
        %v3887 = vmul.f32 %v3823, %v3759
        %v3889 = vlaneseq
        %v3890 = vshrl.u32 %v3889, 7
        %v3891 = vsub.s32 0, %v3890
        %v3892 = vrot.slane %v3422, %v3891
        %v3893 = vlaneseq
        %v3894 = vshrl.u32 %v3893, 7
        %v3895 = vsub.s32 1, %v3894
        %v3896 = vrot.slane %v3422, %v3895
        %v3897 = vlaneseq
        %v3898 = vshrl.u32 %v3897, 7
        %v3899 = vsub.s32 2, %v3898
        %v3900 = vrot.slane %v3422, %v3899
        %v3901 = vlaneseq
        %v3902 = vshrl.u32 %v3901, 7
        %v3903 = vsub.s32 3, %v3902
        %v3904 = vrot.slane %v3422, %v3903
        %v3909 = vmul.f32 %v3824, %v3892
        %v3910 = vmul.f32 %v3825, %v3896
        %v3911 = vmul.f32 %v3826, %v3900
        %v3912 = vmul.f32 %v3827, %v3904
        %v3913 = vmul.f32 %v3828, %v3892
        %v3914 = vmul.f32 %v3829, %v3896
        %v3915 = vmul.f32 %v3830, %v3900
        %v3916 = vmul.f32 %v3831, %v3904
        %v3917 = vmul.f32 %v3832, %v3892
        %v3918 = vmul.f32 %v3833, %v3896
        %v3919 = vmul.f32 %v3834, %v3900
        %v3920 = vmul.f32 %v3835, %v3904
        %v3921 = vmul.f32 %v3836, %v3892
        %v3922 = vmul.f32 %v3837, %v3896
        %v3923 = vmul.f32 %v3838, %v3900
        %v3924 = vmul.f32 %v3839, %v3904
        %v3925 = vmul.f32 %v3840, %v3892
        %v3926 = vmul.f32 %v3841, %v3896
        %v3927 = vmul.f32 %v3842, %v3900
        %v3928 = vmul.f32 %v3843, %v3904
        %v3929 = vmul.f32 %v3844, %v3892
        %v3930 = vmul.f32 %v3845, %v3896
        %v3931 = vmul.f32 %v3846, %v3900
        %v3932 = vmul.f32 %v3847, %v3904
        %v3933 = vmul.f32 %v3848, %v3892
        %v3934 = vmul.f32 %v3849, %v3896
        %v3935 = vmul.f32 %v3850, %v3900
        %v3936 = vmul.f32 %v3851, %v3904
        %v3937 = vmul.f32 %v3852, %v3892
        %v3938 = vmul.f32 %v3853, %v3896
        %v3939 = vmul.f32 %v3854, %v3900
        %v3940 = vmul.f32 %v3855, %v3904
        %v3941 = vmul.f32 %v3856, %v3892
        %v3942 = vmul.f32 %v3857, %v3896
        %v3943 = vmul.f32 %v3858, %v3900
        %v3944 = vmul.f32 %v3859, %v3904
        %v3945 = vmul.f32 %v3860, %v3892
        %v3946 = vmul.f32 %v3861, %v3896
        %v3947 = vmul.f32 %v3862, %v3900
        %v3948 = vmul.f32 %v3863, %v3904
        %v3949 = vmul.f32 %v3864, %v3892
        %v3950 = vmul.f32 %v3865, %v3896
        %v3951 = vmul.f32 %v3866, %v3900
        %v3952 = vmul.f32 %v3867, %v3904
        %v3953 = vmul.f32 %v3868, %v3892
        %v3954 = vmul.f32 %v3869, %v3896
        %v3955 = vmul.f32 %v3870, %v3900
        %v3956 = vmul.f32 %v3871, %v3904
        %v3957 = vmul.f32 %v3872, %v3892
        %v3958 = vmul.f32 %v3873, %v3896
        %v3959 = vmul.f32 %v3874, %v3900
        %v3960 = vmul.f32 %v3875, %v3904
        %v3961 = vmul.f32 %v3876, %v3892
        %v3962 = vmul.f32 %v3877, %v3896
        %v3963 = vmul.f32 %v3878, %v3900
        %v3964 = vmul.f32 %v3879, %v3904
        %v3965 = vmul.f32 %v3880, %v3892
        %v3966 = vmul.f32 %v3881, %v3896
        %v3967 = vmul.f32 %v3882, %v3900
        %v3968 = vmul.f32 %v3883, %v3904
        %v3969 = vmul.f32 %v3884, %v3892
        %v3970 = vmul.f32 %v3885, %v3896
        %v3971 = vmul.f32 %v3886, %v3900
        %v3972 = vmul.f32 %v3887, %v3904
        %v3974 = vlaneseq
        %v3975 = vshrl.u32 %v3974, 7
        %v3976 = vsub.s32 0, %v3975
        %v3977 = vrot.slane %v3423, %v3976
        %v3978 = vlaneseq
        %v3979 = vshrl.u32 %v3978, 7
        %v3980 = vsub.s32 1, %v3979
        %v3981 = vrot.slane %v3423, %v3980
        %v3982 = vlaneseq
        %v3983 = vshrl.u32 %v3982, 7
        %v3984 = vsub.s32 2, %v3983
        %v3985 = vrot.slane %v3423, %v3984
        %v3986 = vlaneseq
        %v3987 = vshrl.u32 %v3986, 7
        %v3988 = vsub.s32 3, %v3987
        %v3989 = vrot.slane %v3423, %v3988
        %v3994 = vadd.f32 %v3909, %v3977
        %v3995 = vadd.f32 %v3910, %v3981
        %v3996 = vadd.f32 %v3911, %v3985
        %v3997 = vadd.f32 %v3912, %v3989
        %v3998 = vadd.f32 %v3913, %v3977
        %v3999 = vadd.f32 %v3914, %v3981
        %v4000 = vadd.f32 %v3915, %v3985
        %v4001 = vadd.f32 %v3916, %v3989
        %v4002 = vadd.f32 %v3917, %v3977
        %v4003 = vadd.f32 %v3918, %v3981
        %v4004 = vadd.f32 %v3919, %v3985
        %v4005 = vadd.f32 %v3920, %v3989
        %v4006 = vadd.f32 %v3921, %v3977
        %v4007 = vadd.f32 %v3922, %v3981
        %v4008 = vadd.f32 %v3923, %v3985
        %v4009 = vadd.f32 %v3924, %v3989
        %v4010 = vadd.f32 %v3925, %v3977
        %v4011 = vadd.f32 %v3926, %v3981
        %v4012 = vadd.f32 %v3927, %v3985
        %v4013 = vadd.f32 %v3928, %v3989
        %v4014 = vadd.f32 %v3929, %v3977
        %v4015 = vadd.f32 %v3930, %v3981
        %v4016 = vadd.f32 %v3931, %v3985
        %v4017 = vadd.f32 %v3932, %v3989
        %v4018 = vadd.f32 %v3933, %v3977
        %v4019 = vadd.f32 %v3934, %v3981
        %v4020 = vadd.f32 %v3935, %v3985
        %v4021 = vadd.f32 %v3936, %v3989
        %v4022 = vadd.f32 %v3937, %v3977
        %v4023 = vadd.f32 %v3938, %v3981
        %v4024 = vadd.f32 %v3939, %v3985
        %v4025 = vadd.f32 %v3940, %v3989
        %v4026 = vadd.f32 %v3941, %v3977
        %v4027 = vadd.f32 %v3942, %v3981
        %v4028 = vadd.f32 %v3943, %v3985
        %v4029 = vadd.f32 %v3944, %v3989
        %v4030 = vadd.f32 %v3945, %v3977
        %v4031 = vadd.f32 %v3946, %v3981
        %v4032 = vadd.f32 %v3947, %v3985
        %v4033 = vadd.f32 %v3948, %v3989
        %v4034 = vadd.f32 %v3949, %v3977
        %v4035 = vadd.f32 %v3950, %v3981
        %v4036 = vadd.f32 %v3951, %v3985
        %v4037 = vadd.f32 %v3952, %v3989
        %v4038 = vadd.f32 %v3953, %v3977
        %v4039 = vadd.f32 %v3954, %v3981
        %v4040 = vadd.f32 %v3955, %v3985
        %v4041 = vadd.f32 %v3956, %v3989
        %v4042 = vadd.f32 %v3957, %v3977
        %v4043 = vadd.f32 %v3958, %v3981
        %v4044 = vadd.f32 %v3959, %v3985
        %v4045 = vadd.f32 %v3960, %v3989
        %v4046 = vadd.f32 %v3961, %v3977
        %v4047 = vadd.f32 %v3962, %v3981
        %v4048 = vadd.f32 %v3963, %v3985
        %v4049 = vadd.f32 %v3964, %v3989
        %v4050 = vadd.f32 %v3965, %v3977
        %v4051 = vadd.f32 %v3966, %v3981
        %v4052 = vadd.f32 %v3967, %v3985
        %v4053 = vadd.f32 %v3968, %v3989
        %v4054 = vadd.f32 %v3969, %v3977
        %v4055 = vadd.f32 %v3970, %v3981
        %v4056 = vadd.f32 %v3971, %v3985
        %v4057 = vadd.f32 %v3972, %v3989
        %v4058 = vpack.c.bf16 %v3998, %v3994
        %v4059 = vpack.c.bf16 %v3999, %v3995
        %v4060 = vpack.c.bf16 %v4000, %v3996
        %v4061 = vpack.c.bf16 %v4001, %v3997
        %v4062 = vpack.c.bf16 %v4006, %v4002
        %v4063 = vpack.c.bf16 %v4007, %v4003
        %v4064 = vpack.c.bf16 %v4008, %v4004
        %v4065 = vpack.c.bf16 %v4009, %v4005
        %v4066 = vpack.c.bf16 %v4014, %v4010
        %v4067 = vpack.c.bf16 %v4015, %v4011
        %v4068 = vpack.c.bf16 %v4016, %v4012
        %v4069 = vpack.c.bf16 %v4017, %v4013
        %v4070 = vpack.c.bf16 %v4022, %v4018
        %v4071 = vpack.c.bf16 %v4023, %v4019
        %v4072 = vpack.c.bf16 %v4024, %v4020
        %v4073 = vpack.c.bf16 %v4025, %v4021
        %v4074 = vpack.c.bf16 %v4030, %v4026
        %v4075 = vpack.c.bf16 %v4031, %v4027
        %v4076 = vpack.c.bf16 %v4032, %v4028
        %v4077 = vpack.c.bf16 %v4033, %v4029
        %v4078 = vpack.c.bf16 %v4038, %v4034
        %v4079 = vpack.c.bf16 %v4039, %v4035
        %v4080 = vpack.c.bf16 %v4040, %v4036
        %v4081 = vpack.c.bf16 %v4041, %v4037
        %v4082 = vpack.c.bf16 %v4046, %v4042
        %v4083 = vpack.c.bf16 %v4047, %v4043
        %v4084 = vpack.c.bf16 %v4048, %v4044
        %v4085 = vpack.c.bf16 %v4049, %v4045
        %v4086 = vpack.c.bf16 %v4054, %v4050
        %v4087 = vpack.c.bf16 %v4055, %v4051
        %v4088 = vpack.c.bf16 %v4056, %v4052
        %v4089 = vpack.c.bf16 %v4057, %v4053
        %v4090 = vld [vmem:[#allocation6] sm:$0xff]
        %v4091 = vld [vmem:[#allocation6 + $0x8] sm:$0xf]
        %v4092 = vld [vmem:[#allocation6 + $0xc] sm:$0xff]
        %v4093 = vld [vmem:[#allocation6 + $0x14] sm:$0xf]
        %v4094 = vld [vmem:[#allocation6 + $0x18] sm:$0xff]
        %v4095 = vld [vmem:[#allocation6 + $0x20] sm:$0xf]
        %v4096 = vld [vmem:[#allocation6 + $0x24] sm:$0xff]
        %v4097 = vld [vmem:[#allocation6 + $0x2c] sm:$0xf]
        %v4098 = vld [vmem:[#allocation6 + $0x30] sm:$0xff]
        %v4099 = vld [vmem:[#allocation6 + $0x38] sm:$0xf]
        %v4100 = vld [vmem:[#allocation6 + $0x3c] sm:$0xff]
        %v4101 = vld [vmem:[#allocation6 + $0x44] sm:$0xf]
        %v4102 = vld [vmem:[#allocation6 + $0x48] sm:$0xff]
        %v4103 = vld [vmem:[#allocation6 + $0x50] sm:$0xf]
        %v4104 = vld [vmem:[#allocation6 + $0x54] sm:$0xff]
        %v4105 = vld [vmem:[#allocation6 + $0x5c] sm:$0xf]
        %v4106 = vld [vmem:[#allocation6 + $0x60] sm:$0xff]
        %v4107 = vld [vmem:[#allocation6 + $0x68] sm:$0xf]
        %v4108 = vld [vmem:[#allocation6 + $0x6c] sm:$0xff]
        %v4109 = vld [vmem:[#allocation6 + $0x74] sm:$0xf]
        %v4110 = vld [vmem:[#allocation6 + $0x78] sm:$0xff]
        %v4111 = vld [vmem:[#allocation6 + $0x80] sm:$0xf]
        %v4112 = vld [vmem:[#allocation6 + $0x84] sm:$0xff]
        %v4113 = vld [vmem:[#allocation6 + $0x8c] sm:$0xf]
        %v4114 = vld [vmem:[#allocation6 + $0x90] sm:$0xff]
        %v4115 = vld [vmem:[#allocation6 + $0x98] sm:$0xf]
        %v4116 = vld [vmem:[#allocation6 + $0x9c] sm:$0xff]
        %v4117 = vld [vmem:[#allocation6 + $0xa4] sm:$0xf]
        %v4118 = vld [vmem:[#allocation6 + $0xa8] sm:$0xff]
        %v4119 = vld [vmem:[#allocation6 + $0xb0] sm:$0xf]
        %v4120 = vld [vmem:[#allocation6 + $0xb4] sm:$0xff]
        %v4121 = vld [vmem:[#allocation6 + $0xbc] sm:$0xf]
        %v4122 = vld [vmem:[#allocation6 + $0xc0] sm:$0xff]
        %v4123 = vld [vmem:[#allocation6 + $0xc8] sm:$0xf]
        %v4124 = vld [vmem:[#allocation6 + $0xcc] sm:$0xff]
        %v4125 = vld [vmem:[#allocation6 + $0xd4] sm:$0xf]
        %v4126 = vld [vmem:[#allocation6 + $0xd8] sm:$0xff]
        %v4127 = vld [vmem:[#allocation6 + $0xe0] sm:$0xf]
        %v4128 = vld [vmem:[#allocation6 + $0xe4] sm:$0xff]
        %v4129 = vld [vmem:[#allocation6 + $0xec] sm:$0xf]
        %v4130 = vld [vmem:[#allocation6 + $0xf0] sm:$0xff]
        %v4131 = vld [vmem:[#allocation6 + $0xf8] sm:$0xf]
        %v4132 = vld [vmem:[#allocation6 + $0xfc] sm:$0xff]
        %v4133 = vld [vmem:[#allocation6 + $0x104] sm:$0xf]
        %v4134 = vld [vmem:[#allocation6 + $0x108] sm:$0xff]
        %v4135 = vld [vmem:[#allocation6 + $0x110] sm:$0xf]
        %v4136 = vld [vmem:[#allocation6 + $0x114] sm:$0xff]
        %v4137 = vld [vmem:[#allocation6 + $0x11c] sm:$0xf]
        %v4138 = vld [vmem:[#allocation6 + $0x120] sm:$0xff]
        %v4139 = vld [vmem:[#allocation6 + $0x128] sm:$0xf]
        %v4140 = vld [vmem:[#allocation6 + $0x12c] sm:$0xff]
        %v4141 = vld [vmem:[#allocation6 + $0x134] sm:$0xf]
        %v4142 = vld [vmem:[#allocation6 + $0x138] sm:$0xff]
        %v4143 = vld [vmem:[#allocation6 + $0x140] sm:$0xf]
        %v4144 = vld [vmem:[#allocation6 + $0x144] sm:$0xff]
        %v4145 = vld [vmem:[#allocation6 + $0x14c] sm:$0xf]
        %v4146 = vld [vmem:[#allocation6 + $0x150] sm:$0xff]
        %v4147 = vld [vmem:[#allocation6 + $0x158] sm:$0xf]
        %v4148 = vld [vmem:[#allocation6 + $0x15c] sm:$0xff]
        %v4149 = vld [vmem:[#allocation6 + $0x164] sm:$0xf]
        %v4150 = vld [vmem:[#allocation6 + $0x168] sm:$0xff]
        %v4151 = vld [vmem:[#allocation6 + $0x170] sm:$0xf]
        %v4152 = vld [vmem:[#allocation6 + $0x174] sm:$0xff]
        %v4153 = vld [vmem:[#allocation6 + $0x17c] sm:$0xf]
        %v4154 = vld [vmem:[#allocation6 + $0x180] sm:$0xff]
        %v4155 = vld [vmem:[#allocation6 + $0x188] sm:$0xf]
        %v4156 = vld [vmem:[#allocation6 + $0x18c] sm:$0xff]
        %v4157 = vld [vmem:[#allocation6 + $0x194] sm:$0xf]
        %v4158 = vld [vmem:[#allocation6 + $0x198] sm:$0xff]
        %v4159 = vld [vmem:[#allocation6 + $0x1a0] sm:$0xf]
        %v4160 = vld [vmem:[#allocation6 + $0x1a4] sm:$0xff]
        %v4161 = vld [vmem:[#allocation6 + $0x1ac] sm:$0xf]
        %v4162 = vld [vmem:[#allocation6 + $0x1b0] sm:$0xff]
        %v4163 = vld [vmem:[#allocation6 + $0x1b8] sm:$0xf]
        %v4164 = vld [vmem:[#allocation6 + $0x1bc] sm:$0xff]
        %v4165 = vld [vmem:[#allocation6 + $0x1c4] sm:$0xf]
        %v4166 = vld [vmem:[#allocation6 + $0x1c8] sm:$0xff]
        %v4167 = vld [vmem:[#allocation6 + $0x1d0] sm:$0xf]
        %v4168 = vld [vmem:[#allocation6 + $0x1d4] sm:$0xff]
        %v4169 = vld [vmem:[#allocation6 + $0x1dc] sm:$0xf]
        %v4170 = vld [vmem:[#allocation6 + $0x1e0] sm:$0xff]
        %v4171 = vld [vmem:[#allocation6 + $0x1e8] sm:$0xf]
        %v4172 = vld [vmem:[#allocation6 + $0x1ec] sm:$0xff]
        %v4173 = vld [vmem:[#allocation6 + $0x1f4] sm:$0xf]
        %v4174 = vld [vmem:[#allocation6 + $0x1f8] sm:$0xff]
        %v4175 = vld [vmem:[#allocation6 + $0x200] sm:$0xf]
        %v4176 = vld [vmem:[#allocation6 + $0x204] sm:$0xff]
        %v4177 = vld [vmem:[#allocation6 + $0x20c] sm:$0xf]
        %v4178 = vld [vmem:[#allocation6 + $0x210] sm:$0xff]
        %v4179 = vld [vmem:[#allocation6 + $0x218] sm:$0xf]
        %v4180 = vld [vmem:[#allocation6 + $0x21c] sm:$0xff]
        %v4181 = vld [vmem:[#allocation6 + $0x224] sm:$0xf]
        %v4182 = vld [vmem:[#allocation6 + $0x228] sm:$0xff]
        %v4183 = vld [vmem:[#allocation6 + $0x230] sm:$0xf]
        %v4184 = vld [vmem:[#allocation6 + $0x234] sm:$0xff]
        %v4185 = vld [vmem:[#allocation6 + $0x23c] sm:$0xf]
        %v4186 = vld [vmem:[#allocation6 + $0x240] sm:$0xff]
        %v4187 = vld [vmem:[#allocation6 + $0x248] sm:$0xf]
        %v4188 = vld [vmem:[#allocation6 + $0x24c] sm:$0xff]
        %v4189 = vld [vmem:[#allocation6 + $0x254] sm:$0xf]
        %v4190 = vld [vmem:[#allocation6 + $0x258] sm:$0xff]
        %v4191 = vld [vmem:[#allocation6 + $0x260] sm:$0xf]
        %v4192 = vld [vmem:[#allocation6 + $0x264] sm:$0xff]
        %v4193 = vld [vmem:[#allocation6 + $0x26c] sm:$0xf]
        %v4194 = vld [vmem:[#allocation6 + $0x270] sm:$0xff]
        %v4195 = vld [vmem:[#allocation6 + $0x278] sm:$0xf]
        %v4196 = vld [vmem:[#allocation6 + $0x27c] sm:$0xff]
        %v4197 = vld [vmem:[#allocation6 + $0x284] sm:$0xf]
        %v4198 = vld [vmem:[#allocation6 + $0x288] sm:$0xff]
        %v4199 = vld [vmem:[#allocation6 + $0x290] sm:$0xf]
        %v4200 = vld [vmem:[#allocation6 + $0x294] sm:$0xff]
        %v4201 = vld [vmem:[#allocation6 + $0x29c] sm:$0xf]
        %v4202 = vld [vmem:[#allocation6 + $0x2a0] sm:$0xff]
        %v4203 = vld [vmem:[#allocation6 + $0x2a8] sm:$0xf]
        %v4204 = vld [vmem:[#allocation6 + $0x2ac] sm:$0xff]
        %v4205 = vld [vmem:[#allocation6 + $0x2b4] sm:$0xf]
        %v4206 = vld [vmem:[#allocation6 + $0x2b8] sm:$0xff]
        %v4207 = vld [vmem:[#allocation6 + $0x2c0] sm:$0xf]
        %v4208 = vld [vmem:[#allocation6 + $0x2c4] sm:$0xff]
        %v4209 = vld [vmem:[#allocation6 + $0x2cc] sm:$0xf]
        %v4210 = vld [vmem:[#allocation6 + $0x2d0] sm:$0xff]
        %v4211 = vld [vmem:[#allocation6 + $0x2d8] sm:$0xf]
        %v4212 = vld [vmem:[#allocation6 + $0x2dc] sm:$0xff]
        %v4213 = vld [vmem:[#allocation6 + $0x2e4] sm:$0xf]
        %v4214 = vld [vmem:[#allocation6 + $0x2e8] sm:$0xff]
        %v4215 = vld [vmem:[#allocation6 + $0x2f0] sm:$0xf]
        %v4216 = vld [vmem:[#allocation6 + $0x2f4] sm:$0xff]
        %v4217 = vld [vmem:[#allocation6 + $0x2fc] sm:$0xf]
        %v4218 = vld [vmem:[%s10] sm:$0x7]
        %v4220 = vlaneseq
        %v4221 = vshrl.u32 %v4220, 7
        %v4222 = vsub.s32 0, %v4221
        %v4223 = vrot.slane %v4218, %v4222
        %v4224 = vlaneseq
        %v4225 = vshrl.u32 %v4224, 7
        %v4226 = vsub.s32 1, %v4225
        %v4227 = vrot.slane %v4218, %v4226
        %v4228 = vlaneseq
        %v4229 = vshrl.u32 %v4228, 7
        %v4230 = vsub.s32 2, %v4229
        %v4231 = vrot.slane %v4218, %v4230
        %v4363 = vunpack.c.l.b16 %v4090
        %v4364 = vunpack.c.h.b16 %v4090
        %v4365 = vunpack.c.l.b16 %v4091
        %v4366 = vunpack.c.l.b16 %v4092
        %v4367 = vunpack.c.h.b16 %v4092
        %v4368 = vunpack.c.l.b16 %v4093
        %v4369 = vunpack.c.l.b16 %v4094
        %v4370 = vunpack.c.h.b16 %v4094
        %v4371 = vunpack.c.l.b16 %v4095
        %v4372 = vunpack.c.l.b16 %v4096
        %v4373 = vunpack.c.h.b16 %v4096
        %v4374 = vunpack.c.l.b16 %v4097
        %v4375 = vunpack.c.l.b16 %v4098
        %v4376 = vunpack.c.h.b16 %v4098
        %v4377 = vunpack.c.l.b16 %v4099
        %v4378 = vunpack.c.l.b16 %v4100
        %v4379 = vunpack.c.h.b16 %v4100
        %v4380 = vunpack.c.l.b16 %v4101
        %v4381 = vunpack.c.l.b16 %v4102
        %v4382 = vunpack.c.h.b16 %v4102
        %v4383 = vunpack.c.l.b16 %v4103
        %v4384 = vunpack.c.l.b16 %v4104
        %v4385 = vunpack.c.h.b16 %v4104
        %v4386 = vunpack.c.l.b16 %v4105
        %v4387 = vunpack.c.l.b16 %v4106
        %v4388 = vunpack.c.h.b16 %v4106
        %v4389 = vunpack.c.l.b16 %v4107
        %v4390 = vunpack.c.l.b16 %v4108
        %v4391 = vunpack.c.h.b16 %v4108
        %v4392 = vunpack.c.l.b16 %v4109
        %v4393 = vunpack.c.l.b16 %v4110
        %v4394 = vunpack.c.h.b16 %v4110
        %v4395 = vunpack.c.l.b16 %v4111
        %v4396 = vunpack.c.l.b16 %v4112
        %v4397 = vunpack.c.h.b16 %v4112
        %v4398 = vunpack.c.l.b16 %v4113
        %v4399 = vunpack.c.l.b16 %v4114
        %v4400 = vunpack.c.h.b16 %v4114
        %v4401 = vunpack.c.l.b16 %v4115
        %v4402 = vunpack.c.l.b16 %v4116
        %v4403 = vunpack.c.h.b16 %v4116
        %v4404 = vunpack.c.l.b16 %v4117
        %v4405 = vunpack.c.l.b16 %v4118
        %v4406 = vunpack.c.h.b16 %v4118
        %v4407 = vunpack.c.l.b16 %v4119
        %v4408 = vunpack.c.l.b16 %v4120
        %v4409 = vunpack.c.h.b16 %v4120
        %v4410 = vunpack.c.l.b16 %v4121
        %v4411 = vunpack.c.l.b16 %v4122
        %v4412 = vunpack.c.h.b16 %v4122
        %v4413 = vunpack.c.l.b16 %v4123
        %v4414 = vunpack.c.l.b16 %v4124
        %v4415 = vunpack.c.h.b16 %v4124
        %v4416 = vunpack.c.l.b16 %v4125
        %v4417 = vunpack.c.l.b16 %v4126
        %v4418 = vunpack.c.h.b16 %v4126
        %v4419 = vunpack.c.l.b16 %v4127
        %v4420 = vunpack.c.l.b16 %v4128
        %v4421 = vunpack.c.h.b16 %v4128
        %v4422 = vunpack.c.l.b16 %v4129
        %v4423 = vunpack.c.l.b16 %v4130
        %v4424 = vunpack.c.h.b16 %v4130
        %v4425 = vunpack.c.l.b16 %v4131
        %v4426 = vunpack.c.l.b16 %v4132
        %v4427 = vunpack.c.h.b16 %v4132
        %v4428 = vunpack.c.l.b16 %v4133
        %v4429 = vunpack.c.l.b16 %v4134
        %v4430 = vunpack.c.h.b16 %v4134
        %v4431 = vunpack.c.l.b16 %v4135
        %v4432 = vunpack.c.l.b16 %v4136
        %v4433 = vunpack.c.h.b16 %v4136
        %v4434 = vunpack.c.l.b16 %v4137
        %v4435 = vunpack.c.l.b16 %v4138
        %v4436 = vunpack.c.h.b16 %v4138
        %v4437 = vunpack.c.l.b16 %v4139
        %v4438 = vunpack.c.l.b16 %v4140
        %v4439 = vunpack.c.h.b16 %v4140
        %v4440 = vunpack.c.l.b16 %v4141
        %v4441 = vunpack.c.l.b16 %v4142
        %v4442 = vunpack.c.h.b16 %v4142
        %v4443 = vunpack.c.l.b16 %v4143
        %v4444 = vunpack.c.l.b16 %v4144
        %v4445 = vunpack.c.h.b16 %v4144
        %v4446 = vunpack.c.l.b16 %v4145
        %v4447 = vunpack.c.l.b16 %v4146
        %v4448 = vunpack.c.h.b16 %v4146
        %v4449 = vunpack.c.l.b16 %v4147
        %v4450 = vunpack.c.l.b16 %v4148
        %v4451 = vunpack.c.h.b16 %v4148
        %v4452 = vunpack.c.l.b16 %v4149
        %v4453 = vunpack.c.l.b16 %v4150
        %v4454 = vunpack.c.h.b16 %v4150
        %v4455 = vunpack.c.l.b16 %v4151
        %v4456 = vunpack.c.l.b16 %v4152
        %v4457 = vunpack.c.h.b16 %v4152
        %v4458 = vunpack.c.l.b16 %v4153
        %v4459 = vunpack.c.l.b16 %v4154
        %v4460 = vunpack.c.h.b16 %v4154
        %v4461 = vunpack.c.l.b16 %v4155
        %v4462 = vunpack.c.l.b16 %v4156
        %v4463 = vunpack.c.h.b16 %v4156
        %v4464 = vunpack.c.l.b16 %v4157
        %v4465 = vunpack.c.l.b16 %v4158
        %v4466 = vunpack.c.h.b16 %v4158
        %v4467 = vunpack.c.l.b16 %v4159
        %v4468 = vunpack.c.l.b16 %v4160
        %v4469 = vunpack.c.h.b16 %v4160
        %v4470 = vunpack.c.l.b16 %v4161
        %v4471 = vunpack.c.l.b16 %v4162
        %v4472 = vunpack.c.h.b16 %v4162
        %v4473 = vunpack.c.l.b16 %v4163
        %v4474 = vunpack.c.l.b16 %v4164
        %v4475 = vunpack.c.h.b16 %v4164
        %v4476 = vunpack.c.l.b16 %v4165
        %v4477 = vunpack.c.l.b16 %v4166
        %v4478 = vunpack.c.h.b16 %v4166
        %v4479 = vunpack.c.l.b16 %v4167
        %v4480 = vunpack.c.l.b16 %v4168
        %v4481 = vunpack.c.h.b16 %v4168
        %v4482 = vunpack.c.l.b16 %v4169
        %v4483 = vunpack.c.l.b16 %v4170
        %v4484 = vunpack.c.h.b16 %v4170
        %v4485 = vunpack.c.l.b16 %v4171
        %v4486 = vunpack.c.l.b16 %v4172
        %v4487 = vunpack.c.h.b16 %v4172
        %v4488 = vunpack.c.l.b16 %v4173
        %v4489 = vunpack.c.l.b16 %v4174
        %v4490 = vunpack.c.h.b16 %v4174
        %v4491 = vunpack.c.l.b16 %v4175
        %v4492 = vunpack.c.l.b16 %v4176
        %v4493 = vunpack.c.h.b16 %v4176
        %v4494 = vunpack.c.l.b16 %v4177
        %v4495 = vunpack.c.l.b16 %v4178
        %v4496 = vunpack.c.h.b16 %v4178
        %v4497 = vunpack.c.l.b16 %v4179
        %v4498 = vunpack.c.l.b16 %v4180
        %v4499 = vunpack.c.h.b16 %v4180
        %v4500 = vunpack.c.l.b16 %v4181
        %v4501 = vunpack.c.l.b16 %v4182
        %v4502 = vunpack.c.h.b16 %v4182
        %v4503 = vunpack.c.l.b16 %v4183
        %v4504 = vunpack.c.l.b16 %v4184
        %v4505 = vunpack.c.h.b16 %v4184
        %v4506 = vunpack.c.l.b16 %v4185
        %v4507 = vunpack.c.l.b16 %v4186
        %v4508 = vunpack.c.h.b16 %v4186
        %v4509 = vunpack.c.l.b16 %v4187
        %v4510 = vunpack.c.l.b16 %v4188
        %v4511 = vunpack.c.h.b16 %v4188
        %v4512 = vunpack.c.l.b16 %v4189
        %v4513 = vunpack.c.l.b16 %v4190
        %v4514 = vunpack.c.h.b16 %v4190
        %v4515 = vunpack.c.l.b16 %v4191
        %v4516 = vunpack.c.l.b16 %v4192
        %v4517 = vunpack.c.h.b16 %v4192
        %v4518 = vunpack.c.l.b16 %v4193
        %v4519 = vunpack.c.l.b16 %v4194
        %v4520 = vunpack.c.h.b16 %v4194
        %v4521 = vunpack.c.l.b16 %v4195
        %v4522 = vunpack.c.l.b16 %v4196
        %v4523 = vunpack.c.h.b16 %v4196
        %v4524 = vunpack.c.l.b16 %v4197
        %v4525 = vunpack.c.l.b16 %v4198
        %v4526 = vunpack.c.h.b16 %v4198
        %v4527 = vunpack.c.l.b16 %v4199
        %v4528 = vunpack.c.l.b16 %v4200
        %v4529 = vunpack.c.h.b16 %v4200
        %v4530 = vunpack.c.l.b16 %v4201
        %v4531 = vunpack.c.l.b16 %v4202
        %v4532 = vunpack.c.h.b16 %v4202
        %v4533 = vunpack.c.l.b16 %v4203
        %v4534 = vunpack.c.l.b16 %v4204
        %v4535 = vunpack.c.h.b16 %v4204
        %v4536 = vunpack.c.l.b16 %v4205
        %v4537 = vunpack.c.l.b16 %v4206
        %v4538 = vunpack.c.h.b16 %v4206
        %v4539 = vunpack.c.l.b16 %v4207
        %v4540 = vunpack.c.l.b16 %v4208
        %v4541 = vunpack.c.h.b16 %v4208
        %v4542 = vunpack.c.l.b16 %v4209
        %v4543 = vunpack.c.l.b16 %v4210
        %v4544 = vunpack.c.h.b16 %v4210
        %v4545 = vunpack.c.l.b16 %v4211
        %v4546 = vunpack.c.l.b16 %v4212
        %v4547 = vunpack.c.h.b16 %v4212
        %v4548 = vunpack.c.l.b16 %v4213
        %v4549 = vunpack.c.l.b16 %v4214
        %v4550 = vunpack.c.h.b16 %v4214
        %v4551 = vunpack.c.l.b16 %v4215
        %v4552 = vunpack.c.l.b16 %v4216
        %v4553 = vunpack.c.h.b16 %v4216
        %v4554 = vunpack.c.l.b16 %v4217
        %v4555 = vpack.c.b16 %v4366, %v4363
        %v4556 = vpack.c.b16 %v4367, %v4364
        %v4557 = vpack.c.b16 %v4368, %v4365
        %v4558 = vpack.c.b16 %v4372, %v4369
        %v4559 = vpack.c.b16 %v4373, %v4370
        %v4560 = vpack.c.b16 %v4374, %v4371
        %v4561 = vpack.c.b16 %v4378, %v4375
        %v4562 = vpack.c.b16 %v4379, %v4376
        %v4563 = vpack.c.b16 %v4380, %v4377
        %v4564 = vpack.c.b16 %v4384, %v4381
        %v4565 = vpack.c.b16 %v4385, %v4382
        %v4566 = vpack.c.b16 %v4386, %v4383
        %v4567 = vpack.c.b16 %v4390, %v4387
        %v4568 = vpack.c.b16 %v4391, %v4388
        %v4569 = vpack.c.b16 %v4392, %v4389
        %v4570 = vpack.c.b16 %v4396, %v4393
        %v4571 = vpack.c.b16 %v4397, %v4394
        %v4572 = vpack.c.b16 %v4398, %v4395
        %v4573 = vpack.c.b16 %v4402, %v4399
        %v4574 = vpack.c.b16 %v4403, %v4400
        %v4575 = vpack.c.b16 %v4404, %v4401
        %v4576 = vpack.c.b16 %v4408, %v4405
        %v4577 = vpack.c.b16 %v4409, %v4406
        %v4578 = vpack.c.b16 %v4410, %v4407
        %v4579 = vpack.c.b16 %v4414, %v4411
        %v4580 = vpack.c.b16 %v4415, %v4412
        %v4581 = vpack.c.b16 %v4416, %v4413
        %v4582 = vpack.c.b16 %v4420, %v4417
        %v4583 = vpack.c.b16 %v4421, %v4418
        %v4584 = vpack.c.b16 %v4422, %v4419
        %v4585 = vpack.c.b16 %v4426, %v4423
        %v4586 = vpack.c.b16 %v4427, %v4424
        %v4587 = vpack.c.b16 %v4428, %v4425
        %v4588 = vpack.c.b16 %v4432, %v4429
        %v4589 = vpack.c.b16 %v4433, %v4430
        %v4590 = vpack.c.b16 %v4434, %v4431
        %v4591 = vpack.c.b16 %v4438, %v4435
        %v4592 = vpack.c.b16 %v4439, %v4436
        %v4593 = vpack.c.b16 %v4440, %v4437
        %v4594 = vpack.c.b16 %v4444, %v4441
        %v4595 = vpack.c.b16 %v4445, %v4442
        %v4596 = vpack.c.b16 %v4446, %v4443
        %v4597 = vpack.c.b16 %v4450, %v4447
        %v4598 = vpack.c.b16 %v4451, %v4448
        %v4599 = vpack.c.b16 %v4452, %v4449
        %v4600 = vpack.c.b16 %v4456, %v4453
        %v4601 = vpack.c.b16 %v4457, %v4454
        %v4602 = vpack.c.b16 %v4458, %v4455
        %v4603 = vpack.c.b16 %v4462, %v4459
        %v4604 = vpack.c.b16 %v4463, %v4460
        %v4605 = vpack.c.b16 %v4464, %v4461
        %v4606 = vpack.c.b16 %v4468, %v4465
        %v4607 = vpack.c.b16 %v4469, %v4466
        %v4608 = vpack.c.b16 %v4470, %v4467
        %v4609 = vpack.c.b16 %v4474, %v4471
        %v4610 = vpack.c.b16 %v4475, %v4472
        %v4611 = vpack.c.b16 %v4476, %v4473
        %v4612 = vpack.c.b16 %v4480, %v4477
        %v4613 = vpack.c.b16 %v4481, %v4478
        %v4614 = vpack.c.b16 %v4482, %v4479
        %v4615 = vpack.c.b16 %v4486, %v4483
        %v4616 = vpack.c.b16 %v4487, %v4484
        %v4617 = vpack.c.b16 %v4488, %v4485
        %v4618 = vpack.c.b16 %v4492, %v4489
        %v4619 = vpack.c.b16 %v4493, %v4490
        %v4620 = vpack.c.b16 %v4494, %v4491
        %v4621 = vpack.c.b16 %v4498, %v4495
        %v4622 = vpack.c.b16 %v4499, %v4496
        %v4623 = vpack.c.b16 %v4500, %v4497
        %v4624 = vpack.c.b16 %v4504, %v4501
        %v4625 = vpack.c.b16 %v4505, %v4502
        %v4626 = vpack.c.b16 %v4506, %v4503
        %v4627 = vpack.c.b16 %v4510, %v4507
        %v4628 = vpack.c.b16 %v4511, %v4508
        %v4629 = vpack.c.b16 %v4512, %v4509
        %v4630 = vpack.c.b16 %v4516, %v4513
        %v4631 = vpack.c.b16 %v4517, %v4514
        %v4632 = vpack.c.b16 %v4518, %v4515
        %v4633 = vpack.c.b16 %v4522, %v4519
        %v4634 = vpack.c.b16 %v4523, %v4520
        %v4635 = vpack.c.b16 %v4524, %v4521
        %v4636 = vpack.c.b16 %v4528, %v4525
        %v4637 = vpack.c.b16 %v4529, %v4526
        %v4638 = vpack.c.b16 %v4530, %v4527
        %v4639 = vpack.c.b16 %v4534, %v4531
        %v4640 = vpack.c.b16 %v4535, %v4532
        %v4641 = vpack.c.b16 %v4536, %v4533
        %v4642 = vpack.c.b16 %v4540, %v4537
        %v4643 = vpack.c.b16 %v4541, %v4538
        %v4644 = vpack.c.b16 %v4542, %v4539
        %v4645 = vpack.c.b16 %v4546, %v4543
        %v4646 = vpack.c.b16 %v4547, %v4544
        %v4647 = vpack.c.b16 %v4548, %v4545
        %v4648 = vpack.c.b16 %v4552, %v4549
        %v4649 = vpack.c.b16 %v4553, %v4550
        %v4650 = vpack.c.b16 %v4554, %v4551
        %4747 = vmatprep.subr.bf16.mxu0 %v4577
        %4748 = vmatpush1.bf16.msra.mxu0 %v4576
        %4749 = vmatprep.subr.bf16.mxu0 %v4574
        %4750 = vmatpush1.bf16.msra.mxu0 %v4573
        %4751 = vmatprep.subr.bf16.mxu0 %v4571
        %4752 = vmatpush1.bf16.msra.mxu0 %v4570
        %4753 = vmatprep.subr.bf16.mxu0 %v4568
        %4754 = vmatpush1.bf16.msra.mxu0 %v4567
        %4755 = vmatprep.subr.bf16.mxu0 %v4565
        %4756 = vmatpush1.bf16.msra.mxu0 %v4564
        %4757 = vmatprep.subr.bf16.mxu0 %v4562
        %4758 = vmatpush1.bf16.msra.mxu0 %v4561
        %4759 = vmatprep.subr.bf16.mxu0 %v4559
        %4760 = vmatpush1.bf16.msra.mxu0 %v4558
        %4761 = vmatprep.subr.bf16.mxu0 %v4556
        %4762 = vmatpush1.bf16.msra.mxu0 %v4555
        %4763 = vmatprep.subr.bf16.mxu0 %v4601
        %4764 = vmatpush2.bf16.msra.mxu0 %v4600
        %4765 = vmatprep.subr.bf16.mxu0 %v4598
        %4766 = vmatpush2.bf16.msra.mxu0 %v4597
        %4767 = vmatprep.subr.bf16.mxu0 %v4595
        %4768 = vmatpush2.bf16.msra.mxu0 %v4594
        %4769 = vmatprep.subr.bf16.mxu0 %v4592
        %4770 = vmatpush2.bf16.msra.mxu0 %v4591
        %4771 = vmatprep.subr.bf16.mxu0 %v4589
        %4772 = vmatpush2.bf16.msra.mxu0 %v4588
        %4773 = vmatprep.subr.bf16.mxu0 %v4586
        %4774 = vmatpush2.bf16.msra.mxu0 %v4585
        %4775 = vmatprep.subr.bf16.mxu0 %v4583
        %4776 = vmatpush2.bf16.msra.mxu0 %v4582
        %4777 = vmatprep.subr.bf16.mxu0 %v4580
        %4778 = vmatpush2.bf16.msra.mxu0 %v4579
        %4779 = vmatprep.mubr.bf16.mxu0 %v4059
        %4780 = vmatmul.mubr.bf16.gmra.mxu0 %v4058
        %v4781 = vpop.f32.mrf.mxu0
        %v4782 = vadd.f32 %v4223, %v4781
        %v4783 = vpop.f32.mrf.mxu0
        %v4784 = vadd.f32 %v4227, %v4783
        %v4785 = vpop.f32.mrf.mxu0
        %v4786 = vadd.f32 %v4223, %v4785
        %v4787 = vpop.f32.mrf.mxu0
        %v4788 = vadd.f32 %v4227, %v4787
        %4789 = vmatprep.mubr.bf16.mxu0 %v4063
        %4790 = vmatmul.mubr.bf16.gmra.mxu0 %v4062
        %v4791 = vpop.f32.mrf.mxu0
        %v4792 = vadd.f32 %v4223, %v4791
        %v4793 = vpop.f32.mrf.mxu0
        %v4794 = vadd.f32 %v4227, %v4793
        %v4795 = vpop.f32.mrf.mxu0
        %v4796 = vadd.f32 %v4223, %v4795
        %v4797 = vpop.f32.mrf.mxu0
        %v4798 = vadd.f32 %v4227, %v4797
        %4799 = vmatprep.mubr.bf16.mxu0 %v4067
        %4800 = vmatmul.mubr.bf16.gmra.mxu0 %v4066
        %v4801 = vpop.f32.mrf.mxu0
        %v4802 = vadd.f32 %v4223, %v4801
        %v4803 = vpop.f32.mrf.mxu0
        %v4804 = vadd.f32 %v4227, %v4803
        %v4805 = vpop.f32.mrf.mxu0
        %v4806 = vadd.f32 %v4223, %v4805
        %v4807 = vpop.f32.mrf.mxu0
        %v4808 = vadd.f32 %v4227, %v4807
        %4809 = vmatprep.mubr.bf16.mxu0 %v4071
        %4810 = vmatmul.mubr.bf16.gmra.mxu0 %v4070
        %v4811 = vpop.f32.mrf.mxu0
        %v4812 = vadd.f32 %v4223, %v4811
        %v4813 = vpop.f32.mrf.mxu0
        %v4814 = vadd.f32 %v4227, %v4813
        %v4815 = vpop.f32.mrf.mxu0
        %v4816 = vadd.f32 %v4223, %v4815
        %v4817 = vpop.f32.mrf.mxu0
        %v4818 = vadd.f32 %v4227, %v4817
        %4819 = vmatprep.mubr.bf16.mxu0 %v4075
        %4820 = vmatmul.mubr.bf16.gmra.mxu0 %v4074
        %v4821 = vpop.f32.mrf.mxu0
        %v4822 = vadd.f32 %v4223, %v4821
        %v4823 = vpop.f32.mrf.mxu0
        %v4824 = vadd.f32 %v4227, %v4823
        %v4825 = vpop.f32.mrf.mxu0
        %v4826 = vadd.f32 %v4223, %v4825
        %v4827 = vpop.f32.mrf.mxu0
        %v4828 = vadd.f32 %v4227, %v4827
        %4829 = vmatprep.mubr.bf16.mxu0 %v4079
        %4830 = vmatmul.mubr.bf16.gmra.mxu0 %v4078
        %v4831 = vpop.f32.mrf.mxu0
        %v4832 = vadd.f32 %v4223, %v4831
        %v4833 = vpop.f32.mrf.mxu0
        %v4834 = vadd.f32 %v4227, %v4833
        %v4835 = vpop.f32.mrf.mxu0
        %v4836 = vadd.f32 %v4223, %v4835
        %v4837 = vpop.f32.mrf.mxu0
        %v4838 = vadd.f32 %v4227, %v4837
        %4839 = vmatprep.mubr.bf16.mxu0 %v4083
        %4840 = vmatmul.mubr.bf16.gmra.mxu0 %v4082
        %v4841 = vpop.f32.mrf.mxu0
        %v4842 = vadd.f32 %v4223, %v4841
        %v4843 = vpop.f32.mrf.mxu0
        %v4844 = vadd.f32 %v4227, %v4843
        %v4845 = vpop.f32.mrf.mxu0
        %v4846 = vadd.f32 %v4223, %v4845
        %v4847 = vpop.f32.mrf.mxu0
        %v4848 = vadd.f32 %v4227, %v4847
        %4849 = vmatprep.mubr.bf16.mxu0 %v4087
        %4850 = vmatmul.mubr.bf16.gmra.mxu0 %v4086
        %v4851 = vpop.f32.mrf.mxu0
        %v4852 = vadd.f32 %v4223, %v4851
        %v4853 = vpop.f32.mrf.mxu0
        %v4854 = vadd.f32 %v4227, %v4853
        %v4855 = vpop.f32.mrf.mxu0
        %v4856 = vadd.f32 %v4223, %v4855
        %v4857 = vpop.f32.mrf.mxu0
        %v4858 = vadd.f32 %v4227, %v4857
        %4859 = vdwg.mxu0
        %4860 = vmatprep.subr.bf16.mxu0 %v4625
        %4861 = vmatpush1.bf16.msra.mxu0 %v4624
        %4862 = vmatprep.subr.bf16.mxu0 %v4622
        %4863 = vmatpush1.bf16.msra.mxu0 %v4621
        %4864 = vmatprep.subr.bf16.mxu0 %v4619
        %4865 = vmatpush1.bf16.msra.mxu0 %v4618
        %4866 = vmatprep.subr.bf16.mxu0 %v4616
        %4867 = vmatpush1.bf16.msra.mxu0 %v4615
        %4868 = vmatprep.subr.bf16.mxu0 %v4613
        %4869 = vmatpush1.bf16.msra.mxu0 %v4612
        %4870 = vmatprep.subr.bf16.mxu0 %v4610
        %4871 = vmatpush1.bf16.msra.mxu0 %v4609
        %4872 = vmatprep.subr.bf16.mxu0 %v4607
        %4873 = vmatpush1.bf16.msra.mxu0 %v4606
        %4874 = vmatprep.subr.bf16.mxu0 %v4604
        %4875 = vmatpush1.bf16.msra.mxu0 %v4603
        %4876 = vmatprep.subr.bf16.mxu0 %v4649
        %4877 = vmatpush2.bf16.msra.mxu0 %v4648
        %4878 = vmatprep.subr.bf16.mxu0 %v4646
        %4879 = vmatpush2.bf16.msra.mxu0 %v4645
        %4880 = vmatprep.subr.bf16.mxu0 %v4643
        %4881 = vmatpush2.bf16.msra.mxu0 %v4642
        %4882 = vmatprep.subr.bf16.mxu0 %v4640
        %4883 = vmatpush2.bf16.msra.mxu0 %v4639
        %4884 = vmatprep.subr.bf16.mxu0 %v4637
        %4885 = vmatpush2.bf16.msra.mxu0 %v4636
        %4886 = vmatprep.subr.bf16.mxu0 %v4634
        %4887 = vmatpush2.bf16.msra.mxu0 %v4633
        %4888 = vmatprep.subr.bf16.mxu0 %v4631
        %4889 = vmatpush2.bf16.msra.mxu0 %v4630
        %4890 = vmatprep.subr.bf16.mxu0 %v4628
        %4891 = vmatpush2.bf16.msra.mxu0 %v4627
        %4892 = vmatprep.mubr.bf16.mxu0 %v4061
        %4893 = vmatmul.mubr.bf16.gmra.mxu0 %v4060
        %v4894 = vpop.f32.mrf.mxu0
        %v4895 = vadd.f32 %v4782, %v4894
        %v4896 = vpop.f32.mrf.mxu0
        %v4897 = vadd.f32 %v4784, %v4896
        %v4898 = vpop.f32.mrf.mxu0
        %v4899 = vadd.f32 %v4786, %v4898
        %v4900 = vpop.f32.mrf.mxu0
        %v4901 = vadd.f32 %v4788, %v4900
        %4902 = vmatprep.mubr.bf16.mxu0 %v4065
        %4903 = vmatmul.mubr.bf16.gmra.mxu0 %v4064
        %v4904 = vpop.f32.mrf.mxu0
        %v4905 = vadd.f32 %v4792, %v4904
        %v4906 = vpop.f32.mrf.mxu0
        %v4907 = vadd.f32 %v4794, %v4906
        %v4908 = vpop.f32.mrf.mxu0
        %v4909 = vadd.f32 %v4796, %v4908
        %v4910 = vpop.f32.mrf.mxu0
        %v4911 = vadd.f32 %v4798, %v4910
        %4912 = vmatprep.mubr.bf16.mxu0 %v4069
        %4913 = vmatmul.mubr.bf16.gmra.mxu0 %v4068
        %v4914 = vpop.f32.mrf.mxu0
        %v4915 = vadd.f32 %v4802, %v4914
        %v4916 = vpop.f32.mrf.mxu0
        %v4917 = vadd.f32 %v4804, %v4916
        %v4918 = vpop.f32.mrf.mxu0
        %v4919 = vadd.f32 %v4806, %v4918
        %v4920 = vpop.f32.mrf.mxu0
        %v4921 = vadd.f32 %v4808, %v4920
        %4922 = vmatprep.mubr.bf16.mxu0 %v4073
        %4923 = vmatmul.mubr.bf16.gmra.mxu0 %v4072
        %v4924 = vpop.f32.mrf.mxu0
        %v4925 = vadd.f32 %v4812, %v4924
        %v4926 = vpop.f32.mrf.mxu0
        %v4927 = vadd.f32 %v4814, %v4926
        %v4928 = vpop.f32.mrf.mxu0
        %v4929 = vadd.f32 %v4816, %v4928
        %v4930 = vpop.f32.mrf.mxu0
        %v4931 = vadd.f32 %v4818, %v4930
        %4932 = vmatprep.mubr.bf16.mxu0 %v4077
        %4933 = vmatmul.mubr.bf16.gmra.mxu0 %v4076
        %v4934 = vpop.f32.mrf.mxu0
        %v4935 = vadd.f32 %v4822, %v4934
        %v4936 = vpop.f32.mrf.mxu0
        %v4937 = vadd.f32 %v4824, %v4936
        %v4938 = vpop.f32.mrf.mxu0
        %v4939 = vadd.f32 %v4826, %v4938
        %v4940 = vpop.f32.mrf.mxu0
        %v4941 = vadd.f32 %v4828, %v4940
        %4942 = vmatprep.mubr.bf16.mxu0 %v4081
        %4943 = vmatmul.mubr.bf16.gmra.mxu0 %v4080
        %v4944 = vpop.f32.mrf.mxu0
        %v4945 = vadd.f32 %v4832, %v4944
        %v4946 = vpop.f32.mrf.mxu0
        %v4947 = vadd.f32 %v4834, %v4946
        %v4948 = vpop.f32.mrf.mxu0
        %v4949 = vadd.f32 %v4836, %v4948
        %v4950 = vpop.f32.mrf.mxu0
        %v4951 = vadd.f32 %v4838, %v4950
        %4952 = vmatprep.mubr.bf16.mxu0 %v4085
        %4953 = vmatmul.mubr.bf16.gmra.mxu0 %v4084
        %v4954 = vpop.f32.mrf.mxu0
        %v4955 = vadd.f32 %v4842, %v4954
        %v4956 = vpop.f32.mrf.mxu0
        %v4957 = vadd.f32 %v4844, %v4956
        %v4958 = vpop.f32.mrf.mxu0
        %v4959 = vadd.f32 %v4846, %v4958
        %v4960 = vpop.f32.mrf.mxu0
        %v4961 = vadd.f32 %v4848, %v4960
        %4962 = vmatprep.mubr.bf16.mxu0 %v4089
        %4963 = vmatmul.mubr.bf16.gmra.mxu0 %v4088
        %v4964 = vpop.f32.mrf.mxu0
        %v4965 = vadd.f32 %v4852, %v4964
        %v4966 = vpop.f32.mrf.mxu0
        %v4967 = vadd.f32 %v4854, %v4966
        %v4968 = vpop.f32.mrf.mxu0
        %v4969 = vadd.f32 %v4856, %v4968
        %v4970 = vpop.f32.mrf.mxu0
        %v4971 = vadd.f32 %v4858, %v4970
        %4972 = vdwg.mxu0
        %4973 = vmatprep.subr.bf16.mxu0 0
        %4974 = vmatpush1.bf16.msra.mxu0 %v4578
        %4975 = vmatprep.subr.bf16.mxu0 0
        %4976 = vmatpush1.bf16.msra.mxu0 %v4575
        %4977 = vmatprep.subr.bf16.mxu0 0
        %4978 = vmatpush1.bf16.msra.mxu0 %v4572
        %4979 = vmatprep.subr.bf16.mxu0 0
        %4980 = vmatpush1.bf16.msra.mxu0 %v4569
        %4981 = vmatprep.subr.bf16.mxu0 0
        %4982 = vmatpush1.bf16.msra.mxu0 %v4566
        %4983 = vmatprep.subr.bf16.mxu0 0
        %4984 = vmatpush1.bf16.msra.mxu0 %v4563
        %4985 = vmatprep.subr.bf16.mxu0 0
        %4986 = vmatpush1.bf16.msra.mxu0 %v4560
        %4987 = vmatprep.subr.bf16.mxu0 0
        %4988 = vmatpush1.bf16.msra.mxu0 %v4557
        %4989 = vmatprep.subr.bf16.mxu0 0
        %4990 = vmatpush2.bf16.msra.mxu0 %v4602
        %4991 = vmatprep.subr.bf16.mxu0 0
        %4992 = vmatpush2.bf16.msra.mxu0 %v4599
        %4993 = vmatprep.subr.bf16.mxu0 0
        %4994 = vmatpush2.bf16.msra.mxu0 %v4596
        %4995 = vmatprep.subr.bf16.mxu0 0
        %4996 = vmatpush2.bf16.msra.mxu0 %v4593
        %4997 = vmatprep.subr.bf16.mxu0 0
        %4998 = vmatpush2.bf16.msra.mxu0 %v4590
        %4999 = vmatprep.subr.bf16.mxu0 0
        %5000 = vmatpush2.bf16.msra.mxu0 %v4587
        %5001 = vmatprep.subr.bf16.mxu0 0
        %5002 = vmatpush2.bf16.msra.mxu0 %v4584
        %5003 = vmatprep.subr.bf16.mxu0 0
        %5004 = vmatpush2.bf16.msra.mxu0 %v4581
        %5005 = vmatprep.mubr.bf16.mxu0 %v4059
        %5006 = vmatmul.mubr.bf16.gmra.mxu0 %v4058
        %v5007 = vpop.f32.mrf.mxu0
        %v5008 = vadd.f32 %v4231, %v5007
        %v5009 = vpop.f32.mrf.mxu0
        %v5010 = vpop.f32.mrf.mxu0
        %v5011 = vadd.f32 %v4231, %v5010
        %v5012 = vpop.f32.mrf.mxu0
        %5013 = vmatprep.mubr.bf16.mxu0 %v4063
        %5014 = vmatmul.mubr.bf16.gmra.mxu0 %v4062
        %v5015 = vpop.f32.mrf.mxu0
        %v5016 = vadd.f32 %v4231, %v5015
        %v5017 = vpop.f32.mrf.mxu0
        %v5018 = vpop.f32.mrf.mxu0
        %v5019 = vadd.f32 %v4231, %v5018
        %v5020 = vpop.f32.mrf.mxu0
        %5021 = vmatprep.mubr.bf16.mxu0 %v4067
        %5022 = vmatmul.mubr.bf16.gmra.mxu0 %v4066
        %v5023 = vpop.f32.mrf.mxu0
        %v5024 = vadd.f32 %v4231, %v5023
        %v5025 = vpop.f32.mrf.mxu0
        %v5026 = vpop.f32.mrf.mxu0
        %v5027 = vadd.f32 %v4231, %v5026
        %v5028 = vpop.f32.mrf.mxu0
        %5029 = vmatprep.mubr.bf16.mxu0 %v4071
        %5030 = vmatmul.mubr.bf16.gmra.mxu0 %v4070
        %v5031 = vpop.f32.mrf.mxu0
        %v5032 = vadd.f32 %v4231, %v5031
        %v5033 = vpop.f32.mrf.mxu0
        %v5034 = vpop.f32.mrf.mxu0
        %v5035 = vadd.f32 %v4231, %v5034
        %v5036 = vpop.f32.mrf.mxu0
        %5037 = vmatprep.mubr.bf16.mxu0 %v4075
        %5038 = vmatmul.mubr.bf16.gmra.mxu0 %v4074
        %v5039 = vpop.f32.mrf.mxu0
        %v5040 = vadd.f32 %v4231, %v5039
        %v5041 = vpop.f32.mrf.mxu0
        %v5042 = vpop.f32.mrf.mxu0
        %v5043 = vadd.f32 %v4231, %v5042
        %v5044 = vpop.f32.mrf.mxu0
        %5045 = vmatprep.mubr.bf16.mxu0 %v4079
        %5046 = vmatmul.mubr.bf16.gmra.mxu0 %v4078
        %v5047 = vpop.f32.mrf.mxu0
        %v5048 = vadd.f32 %v4231, %v5047
        %v5049 = vpop.f32.mrf.mxu0
        %v5050 = vpop.f32.mrf.mxu0
        %v5051 = vadd.f32 %v4231, %v5050
        %v5052 = vpop.f32.mrf.mxu0
        %5053 = vmatprep.mubr.bf16.mxu0 %v4083
        %5054 = vmatmul.mubr.bf16.gmra.mxu0 %v4082
        %v5055 = vpop.f32.mrf.mxu0
        %v5056 = vadd.f32 %v4231, %v5055
        %v5057 = vpop.f32.mrf.mxu0
        %v5058 = vpop.f32.mrf.mxu0
        %v5059 = vadd.f32 %v4231, %v5058
        %v5060 = vpop.f32.mrf.mxu0
        %5061 = vmatprep.mubr.bf16.mxu0 %v4087
        %5062 = vmatmul.mubr.bf16.gmra.mxu0 %v4086
        %v5063 = vpop.f32.mrf.mxu0
        %v5064 = vadd.f32 %v4231, %v5063
        %v5065 = vpop.f32.mrf.mxu0
        %v5066 = vpop.f32.mrf.mxu0
        %v5067 = vadd.f32 %v4231, %v5066
        %v5068 = vpop.f32.mrf.mxu0
        %5069 = vdwg.mxu0
        %5070 = vmatprep.subr.bf16.mxu0 0
        %5071 = vmatpush1.bf16.msra.mxu0 %v4626
        %5072 = vmatprep.subr.bf16.mxu0 0
        %5073 = vmatpush1.bf16.msra.mxu0 %v4623
        %5074 = vmatprep.subr.bf16.mxu0 0
        %5075 = vmatpush1.bf16.msra.mxu0 %v4620
        %5076 = vmatprep.subr.bf16.mxu0 0
        %5077 = vmatpush1.bf16.msra.mxu0 %v4617
        %5078 = vmatprep.subr.bf16.mxu0 0
        %5079 = vmatpush1.bf16.msra.mxu0 %v4614
        %5080 = vmatprep.subr.bf16.mxu0 0
        %5081 = vmatpush1.bf16.msra.mxu0 %v4611
        %5082 = vmatprep.subr.bf16.mxu0 0
        %5083 = vmatpush1.bf16.msra.mxu0 %v4608
        %5084 = vmatprep.subr.bf16.mxu0 0
        %5085 = vmatpush1.bf16.msra.mxu0 %v4605
        %5086 = vmatprep.subr.bf16.mxu0 0
        %5087 = vmatpush2.bf16.msra.mxu0 %v4650
        %5088 = vmatprep.subr.bf16.mxu0 0
        %5089 = vmatpush2.bf16.msra.mxu0 %v4647
        %5090 = vmatprep.subr.bf16.mxu0 0
        %5091 = vmatpush2.bf16.msra.mxu0 %v4644
        %5092 = vmatprep.subr.bf16.mxu0 0
        %5093 = vmatpush2.bf16.msra.mxu0 %v4641
        %5094 = vmatprep.subr.bf16.mxu0 0
        %5095 = vmatpush2.bf16.msra.mxu0 %v4638
        %5096 = vmatprep.subr.bf16.mxu0 0
        %5097 = vmatpush2.bf16.msra.mxu0 %v4635
        %5098 = vmatprep.subr.bf16.mxu0 0
        %5099 = vmatpush2.bf16.msra.mxu0 %v4632
        %5100 = vmatprep.subr.bf16.mxu0 0
        %5101 = vmatpush2.bf16.msra.mxu0 %v4629
        %5102 = vmatprep.mubr.bf16.mxu0 %v4061
        %5103 = vmatmul.mubr.bf16.gmra.mxu0 %v4060
        %v5104 = vpop.f32.mrf.mxu0
        %v5105 = vadd.f32 %v5008, %v5104
        %v5106 = vpop.f32.mrf.mxu0
        %v5107 = vpop.f32.mrf.mxu0
        %v5108 = vadd.f32 %v5011, %v5107
        %v5109 = vpop.f32.mrf.mxu0
        %5110 = vmatprep.mubr.bf16.mxu0 %v4065
        %5111 = vmatmul.mubr.bf16.gmra.mxu0 %v4064
        %v5112 = vpop.f32.mrf.mxu0
        %v5113 = vadd.f32 %v5016, %v5112
        %v5114 = vpop.f32.mrf.mxu0
        %v5115 = vpop.f32.mrf.mxu0
        %v5116 = vadd.f32 %v5019, %v5115
        %v5117 = vpop.f32.mrf.mxu0
        %5118 = vmatprep.mubr.bf16.mxu0 %v4069
        %5119 = vmatmul.mubr.bf16.gmra.mxu0 %v4068
        %v5120 = vpop.f32.mrf.mxu0
        %v5121 = vadd.f32 %v5024, %v5120
        %v5122 = vpop.f32.mrf.mxu0
        %v5123 = vpop.f32.mrf.mxu0
        %v5124 = vadd.f32 %v5027, %v5123
        %v5125 = vpop.f32.mrf.mxu0
        %5126 = vmatprep.mubr.bf16.mxu0 %v4073
        %5127 = vmatmul.mubr.bf16.gmra.mxu0 %v4072
        %v5128 = vpop.f32.mrf.mxu0
        %v5129 = vadd.f32 %v5032, %v5128
        %v5130 = vpop.f32.mrf.mxu0
        %v5131 = vpop.f32.mrf.mxu0
        %v5132 = vadd.f32 %v5035, %v5131
        %v5133 = vpop.f32.mrf.mxu0
        %5134 = vmatprep.mubr.bf16.mxu0 %v4077
        %5135 = vmatmul.mubr.bf16.gmra.mxu0 %v4076
        %v5136 = vpop.f32.mrf.mxu0
        %v5137 = vadd.f32 %v5040, %v5136
        %v5138 = vpop.f32.mrf.mxu0
        %v5139 = vpop.f32.mrf.mxu0
        %v5140 = vadd.f32 %v5043, %v5139
        %v5141 = vpop.f32.mrf.mxu0
        %5142 = vmatprep.mubr.bf16.mxu0 %v4081
        %5143 = vmatmul.mubr.bf16.gmra.mxu0 %v4080
        %v5144 = vpop.f32.mrf.mxu0
        %v5145 = vadd.f32 %v5048, %v5144
        %v5146 = vpop.f32.mrf.mxu0
        %v5147 = vpop.f32.mrf.mxu0
        %v5148 = vadd.f32 %v5051, %v5147
        %v5149 = vpop.f32.mrf.mxu0
        %5150 = vmatprep.mubr.bf16.mxu0 %v4085
        %5151 = vmatmul.mubr.bf16.gmra.mxu0 %v4084
        %v5152 = vpop.f32.mrf.mxu0
        %v5153 = vadd.f32 %v5056, %v5152
        %v5154 = vpop.f32.mrf.mxu0
        %v5155 = vpop.f32.mrf.mxu0
        %v5156 = vadd.f32 %v5059, %v5155
        %v5157 = vpop.f32.mrf.mxu0
        %5158 = vmatprep.mubr.bf16.mxu0 %v4089
        %5159 = vmatmul.mubr.bf16.gmra.mxu0 %v4088
        %v5160 = vpop.f32.mrf.mxu0
        %v5161 = vadd.f32 %v5064, %v5160
        %v5162 = vpop.f32.mrf.mxu0
        %v5163 = vpop.f32.mrf.mxu0
        %v5164 = vadd.f32 %v5067, %v5163
        %v5165 = vpop.f32.mrf.mxu0
        %5166 = vdwg.mxu0
        %vm5167 = vcmp.gt.f32.partialorder %v4895, 0.0
        %vm5168 = vcmp.gt.f32.partialorder %v4897, 0.0
        %vm5169 = vcmp.gt.f32.partialorder %v5105, 0.0
        %vm5170 = vcmp.gt.f32.partialorder %v4899, 0.0
        %vm5171 = vcmp.gt.f32.partialorder %v4901, 0.0
        %vm5172 = vcmp.gt.f32.partialorder %v5108, 0.0
        %vm5173 = vcmp.gt.f32.partialorder %v4905, 0.0
        %vm5174 = vcmp.gt.f32.partialorder %v4907, 0.0
        %vm5175 = vcmp.gt.f32.partialorder %v5113, 0.0
        %vm5176 = vcmp.gt.f32.partialorder %v4909, 0.0
        %vm5177 = vcmp.gt.f32.partialorder %v4911, 0.0
        %vm5178 = vcmp.gt.f32.partialorder %v5116, 0.0
        %vm5179 = vcmp.gt.f32.partialorder %v4915, 0.0
        %vm5180 = vcmp.gt.f32.partialorder %v4917, 0.0
        %vm5181 = vcmp.gt.f32.partialorder %v5121, 0.0
        %vm5182 = vcmp.gt.f32.partialorder %v4919, 0.0
        %vm5183 = vcmp.gt.f32.partialorder %v4921, 0.0
        %vm5184 = vcmp.gt.f32.partialorder %v5124, 0.0
        %vm5185 = vcmp.gt.f32.partialorder %v4925, 0.0
        %vm5186 = vcmp.gt.f32.partialorder %v4927, 0.0
        %vm5187 = vcmp.gt.f32.partialorder %v5129, 0.0
        %vm5188 = vcmp.gt.f32.partialorder %v4929, 0.0
        %vm5189 = vcmp.gt.f32.partialorder %v4931, 0.0
        %vm5190 = vcmp.gt.f32.partialorder %v5132, 0.0
        %vm5191 = vcmp.gt.f32.partialorder %v4935, 0.0
        %vm5192 = vcmp.gt.f32.partialorder %v4937, 0.0
        %vm5193 = vcmp.gt.f32.partialorder %v5137, 0.0
        %vm5194 = vcmp.gt.f32.partialorder %v4939, 0.0
        %vm5195 = vcmp.gt.f32.partialorder %v4941, 0.0
        %vm5196 = vcmp.gt.f32.partialorder %v5140, 0.0
        %vm5197 = vcmp.gt.f32.partialorder %v4945, 0.0
        %vm5198 = vcmp.gt.f32.partialorder %v4947, 0.0
        %vm5199 = vcmp.gt.f32.partialorder %v5145, 0.0
        %vm5200 = vcmp.gt.f32.partialorder %v4949, 0.0
        %vm5201 = vcmp.gt.f32.partialorder %v4951, 0.0
        %vm5202 = vcmp.gt.f32.partialorder %v5148, 0.0
        %vm5203 = vcmp.gt.f32.partialorder %v4955, 0.0
        %vm5204 = vcmp.gt.f32.partialorder %v4957, 0.0
        %vm5205 = vcmp.gt.f32.partialorder %v5153, 0.0
        %vm5206 = vcmp.gt.f32.partialorder %v4959, 0.0
        %vm5207 = vcmp.gt.f32.partialorder %v4961, 0.0
        %vm5208 = vcmp.gt.f32.partialorder %v5156, 0.0
        %vm5209 = vcmp.gt.f32.partialorder %v4965, 0.0
        %vm5210 = vcmp.gt.f32.partialorder %v4967, 0.0
        %vm5211 = vcmp.gt.f32.partialorder %v5161, 0.0
        %vm5212 = vcmp.gt.f32.partialorder %v4969, 0.0
        %vm5213 = vcmp.gt.f32.partialorder %v4971, 0.0
        %vm5214 = vcmp.gt.f32.partialorder %v5164, 0.0
        %v5215 = vmul.f32 %v4895, 1.442695
        %v5216 = vpow.pop %v5215
        %v5217 = vmul.f32 %v4897, 1.442695
        %v5218 = vpow.pop %v5217
        %v5219 = vmul.f32 %v5105, 1.442695
        %v5220 = vpow.pop %v5219
        %v5221 = vmul.f32 %v4899, 1.442695
        %v5222 = vpow.pop %v5221
        %v5223 = vmul.f32 %v4901, 1.442695
        %v5224 = vpow.pop %v5223
        %v5225 = vmul.f32 %v5108, 1.442695
        %v5226 = vpow.pop %v5225
        %v5227 = vmul.f32 %v4905, 1.442695
        %v5228 = vpow.pop %v5227
        %v5229 = vmul.f32 %v4907, 1.442695
        %v5230 = vpow.pop %v5229
        %v5231 = vmul.f32 %v5113, 1.442695
        %v5232 = vpow.pop %v5231
        %v5233 = vmul.f32 %v4909, 1.442695
        %v5234 = vpow.pop %v5233
        %v5235 = vmul.f32 %v4911, 1.442695
        %v5236 = vpow.pop %v5235
        %v5237 = vmul.f32 %v5116, 1.442695
        %v5238 = vpow.pop %v5237
        %v5239 = vmul.f32 %v4915, 1.442695
        %v5240 = vpow.pop %v5239
        %v5241 = vmul.f32 %v4917, 1.442695
        %v5242 = vpow.pop %v5241
        %v5243 = vmul.f32 %v5121, 1.442695
        %v5244 = vpow.pop %v5243
        %v5245 = vmul.f32 %v4919, 1.442695
        %v5246 = vpow.pop %v5245
        %v5247 = vmul.f32 %v4921, 1.442695
        %v5248 = vpow.pop %v5247
        %v5249 = vmul.f32 %v5124, 1.442695
        %v5250 = vpow.pop %v5249
        %v5251 = vmul.f32 %v4925, 1.442695
        %v5252 = vpow.pop %v5251
        %v5253 = vmul.f32 %v4927, 1.442695
        %v5254 = vpow.pop %v5253
        %v5255 = vmul.f32 %v5129, 1.442695
        %v5256 = vpow.pop %v5255
        %v5257 = vmul.f32 %v4929, 1.442695
        %v5258 = vpow.pop %v5257
        %v5259 = vmul.f32 %v4931, 1.442695
        %v5260 = vpow.pop %v5259
        %v5261 = vmul.f32 %v5132, 1.442695
        %v5262 = vpow.pop %v5261
        %v5263 = vmul.f32 %v4935, 1.442695
        %v5264 = vpow.pop %v5263
        %v5265 = vmul.f32 %v4937, 1.442695
        %v5266 = vpow.pop %v5265
        %v5267 = vmul.f32 %v5137, 1.442695
        %v5268 = vpow.pop %v5267
        %v5269 = vmul.f32 %v4939, 1.442695
        %v5270 = vpow.pop %v5269
        %v5271 = vmul.f32 %v4941, 1.442695
        %v5272 = vpow.pop %v5271
        %v5273 = vmul.f32 %v5140, 1.442695
        %v5274 = vpow.pop %v5273
        %v5275 = vmul.f32 %v4945, 1.442695
        %v5276 = vpow.pop %v5275
        %v5277 = vmul.f32 %v4947, 1.442695
        %v5278 = vpow.pop %v5277
        %v5279 = vmul.f32 %v5145, 1.442695
        %v5280 = vpow.pop %v5279
        %v5281 = vmul.f32 %v4949, 1.442695
        %v5282 = vpow.pop %v5281
        %v5283 = vmul.f32 %v4951, 1.442695
        %v5284 = vpow.pop %v5283
        %v5285 = vmul.f32 %v5148, 1.442695
        %v5286 = vpow.pop %v5285
        %v5287 = vmul.f32 %v4955, 1.442695
        %v5288 = vpow.pop %v5287
        %v5289 = vmul.f32 %v4957, 1.442695
        %v5290 = vpow.pop %v5289
        %v5291 = vmul.f32 %v5153, 1.442695
        %v5292 = vpow.pop %v5291
        %v5293 = vmul.f32 %v4959, 1.442695
        %v5294 = vpow.pop %v5293
        %v5295 = vmul.f32 %v4961, 1.442695
        %v5296 = vpow.pop %v5295
        %v5297 = vmul.f32 %v5156, 1.442695
        %v5298 = vpow.pop %v5297
        %v5299 = vmul.f32 %v4965, 1.442695
        %v5300 = vpow.pop %v5299
        %v5301 = vmul.f32 %v4967, 1.442695
        %v5302 = vpow.pop %v5301
        %v5303 = vmul.f32 %v5161, 1.442695
        %v5304 = vpow.pop %v5303
        %v5305 = vmul.f32 %v4969, 1.442695
        %v5306 = vpow.pop %v5305
        %v5307 = vmul.f32 %v4971, 1.442695
        %v5308 = vpow.pop %v5307
        %v5309 = vmul.f32 %v5164, 1.442695
        %v5310 = vpow.pop %v5309
        %v5311 = vsub.f32 %v5216, 1.0
        %v5312 = vsub.f32 %v5218, 1.0
        %v5313 = vsub.f32 %v5220, 1.0
        %v5314 = vsub.f32 %v5222, 1.0
        %v5315 = vsub.f32 %v5224, 1.0
        %v5316 = vsub.f32 %v5226, 1.0
        %v5317 = vsub.f32 %v5228, 1.0
        %v5318 = vsub.f32 %v5230, 1.0
        %v5319 = vsub.f32 %v5232, 1.0
        %v5320 = vsub.f32 %v5234, 1.0
        %v5321 = vsub.f32 %v5236, 1.0
        %v5322 = vsub.f32 %v5238, 1.0
        %v5323 = vsub.f32 %v5240, 1.0
        %v5324 = vsub.f32 %v5242, 1.0
        %v5325 = vsub.f32 %v5244, 1.0
        %v5326 = vsub.f32 %v5246, 1.0
        %v5327 = vsub.f32 %v5248, 1.0
        %v5328 = vsub.f32 %v5250, 1.0
        %v5329 = vsub.f32 %v5252, 1.0
        %v5330 = vsub.f32 %v5254, 1.0
        %v5331 = vsub.f32 %v5256, 1.0
        %v5332 = vsub.f32 %v5258, 1.0
        %v5333 = vsub.f32 %v5260, 1.0
        %v5334 = vsub.f32 %v5262, 1.0
        %v5335 = vsub.f32 %v5264, 1.0
        %v5336 = vsub.f32 %v5266, 1.0
        %v5337 = vsub.f32 %v5268, 1.0
        %v5338 = vsub.f32 %v5270, 1.0
        %v5339 = vsub.f32 %v5272, 1.0
        %v5340 = vsub.f32 %v5274, 1.0
        %v5341 = vsub.f32 %v5276, 1.0
        %v5342 = vsub.f32 %v5278, 1.0
        %v5343 = vsub.f32 %v5280, 1.0
        %v5344 = vsub.f32 %v5282, 1.0
        %v5345 = vsub.f32 %v5284, 1.0
        %v5346 = vsub.f32 %v5286, 1.0
        %v5347 = vsub.f32 %v5288, 1.0
        %v5348 = vsub.f32 %v5290, 1.0
        %v5349 = vsub.f32 %v5292, 1.0
        %v5350 = vsub.f32 %v5294, 1.0
        %v5351 = vsub.f32 %v5296, 1.0
        %v5352 = vsub.f32 %v5298, 1.0
        %v5353 = vsub.f32 %v5300, 1.0
        %v5354 = vsub.f32 %v5302, 1.0
        %v5355 = vsub.f32 %v5304, 1.0
        %v5356 = vsub.f32 %v5306, 1.0
        %v5357 = vsub.f32 %v5308, 1.0
        %v5358 = vsub.f32 %v5310, 1.0
        %v5359 = vsel %vm5167, %v4895, %v5311
        %v5360 = vsel %vm5168, %v4897, %v5312
        %v5361 = vsel %vm5169, %v5105, %v5313
        %v5362 = vsel %vm5170, %v4899, %v5314
        %v5363 = vsel %vm5171, %v4901, %v5315
        %v5364 = vsel %vm5172, %v5108, %v5316
        %v5365 = vsel %vm5173, %v4905, %v5317
        %v5366 = vsel %vm5174, %v4907, %v5318
        %v5367 = vsel %vm5175, %v5113, %v5319
        %v5368 = vsel %vm5176, %v4909, %v5320
        %v5369 = vsel %vm5177, %v4911, %v5321
        %v5370 = vsel %vm5178, %v5116, %v5322
        %v5371 = vsel %vm5179, %v4915, %v5323
        %v5372 = vsel %vm5180, %v4917, %v5324
        %v5373 = vsel %vm5181, %v5121, %v5325
        %v5374 = vsel %vm5182, %v4919, %v5326
        %v5375 = vsel %vm5183, %v4921, %v5327
        %v5376 = vsel %vm5184, %v5124, %v5328
        %v5377 = vsel %vm5185, %v4925, %v5329
        %v5378 = vsel %vm5186, %v4927, %v5330
        %v5379 = vsel %vm5187, %v5129, %v5331
        %v5380 = vsel %vm5188, %v4929, %v5332
        %v5381 = vsel %vm5189, %v4931, %v5333
        %v5382 = vsel %vm5190, %v5132, %v5334
        %v5383 = vsel %vm5191, %v4935, %v5335
        %v5384 = vsel %vm5192, %v4937, %v5336
        %v5385 = vsel %vm5193, %v5137, %v5337
        %v5386 = vsel %vm5194, %v4939, %v5338
        %v5387 = vsel %vm5195, %v4941, %v5339
        %v5388 = vsel %vm5196, %v5140, %v5340
        %v5389 = vsel %vm5197, %v4945, %v5341
        %v5390 = vsel %vm5198, %v4947, %v5342
        %v5391 = vsel %vm5199, %v5145, %v5343
        %v5392 = vsel %vm5200, %v4949, %v5344
        %v5393 = vsel %vm5201, %v4951, %v5345
        %v5394 = vsel %vm5202, %v5148, %v5346
        %v5395 = vsel %vm5203, %v4955, %v5347
        %v5396 = vsel %vm5204, %v4957, %v5348
        %v5397 = vsel %vm5205, %v5153, %v5349
        %v5398 = vsel %vm5206, %v4959, %v5350
        %v5399 = vsel %vm5207, %v4961, %v5351
        %v5400 = vsel %vm5208, %v5156, %v5352
        %v5401 = vsel %vm5209, %v4965, %v5353
        %v5402 = vsel %vm5210, %v4967, %v5354
        %v5403 = vsel %vm5211, %v5161, %v5355
        %v5404 = vsel %vm5212, %v4969, %v5356
        %v5405 = vsel %vm5213, %v4971, %v5357
        %v5406 = vsel %vm5214, %v5164, %v5358
        %v5407 = vld [vmem:[%s11] sm:$0x7]
        %v5408 = vld [vmem:[%s12] sm:$0x7]
        %v5409 = vadd.f32 %v5359, %v5360
        %v5410 = vadd.f32 %v5409, %v5361
        %5411 = vadd.xlane.f32.xlu0 %v5410
        %v5412 = vpop.xlane.xlu0 %5411
        %v5413 = vadd.f32 %v5362, %v5363
        %v5414 = vadd.f32 %v5413, %v5364
        %5415 = vadd.xlane.f32.xlu0 %v5414
        %v5416 = vpop.xlane.xlu0 %5415
        %v5417 = vadd.f32 %v5365, %v5366
        %v5418 = vadd.f32 %v5417, %v5367
        %5419 = vadd.xlane.f32.xlu0 %v5418
        %v5420 = vpop.xlane.xlu0 %5419
        %v5421 = vadd.f32 %v5368, %v5369
        %v5422 = vadd.f32 %v5421, %v5370
        %5423 = vadd.xlane.f32.xlu0 %v5422
        %v5424 = vpop.xlane.xlu0 %5423
        %v5425 = vadd.f32 %v5371, %v5372
        %v5426 = vadd.f32 %v5425, %v5373
        %5427 = vadd.xlane.f32.xlu0 %v5426
        %v5428 = vpop.xlane.xlu0 %5427
        %v5429 = vadd.f32 %v5374, %v5375
        %v5430 = vadd.f32 %v5429, %v5376
        %5431 = vadd.xlane.f32.xlu0 %v5430
        %v5432 = vpop.xlane.xlu0 %5431
        %v5433 = vadd.f32 %v5377, %v5378
        %v5434 = vadd.f32 %v5433, %v5379
        %5435 = vadd.xlane.f32.xlu0 %v5434
        %v5436 = vpop.xlane.xlu0 %5435
        %v5437 = vadd.f32 %v5380, %v5381
        %v5438 = vadd.f32 %v5437, %v5382
        %5439 = vadd.xlane.f32.xlu0 %v5438
        %v5440 = vpop.xlane.xlu0 %5439
        %v5441 = vadd.f32 %v5383, %v5384
        %v5442 = vadd.f32 %v5441, %v5385
        %5443 = vadd.xlane.f32.xlu0 %v5442
        %v5444 = vpop.xlane.xlu0 %5443
        %v5445 = vadd.f32 %v5386, %v5387
        %v5446 = vadd.f32 %v5445, %v5388
        %5447 = vadd.xlane.f32.xlu0 %v5446
        %v5448 = vpop.xlane.xlu0 %5447
        %v5449 = vadd.f32 %v5389, %v5390
        %v5450 = vadd.f32 %v5449, %v5391
        %5451 = vadd.xlane.f32.xlu0 %v5450
        %v5452 = vpop.xlane.xlu0 %5451
        %v5453 = vadd.f32 %v5392, %v5393
        %v5454 = vadd.f32 %v5453, %v5394
        %5455 = vadd.xlane.f32.xlu0 %v5454
        %v5456 = vpop.xlane.xlu0 %5455
        %v5457 = vadd.f32 %v5395, %v5396
        %v5458 = vadd.f32 %v5457, %v5397
        %5459 = vadd.xlane.f32.xlu0 %v5458
        %v5460 = vpop.xlane.xlu0 %5459
        %v5461 = vadd.f32 %v5398, %v5399
        %v5462 = vadd.f32 %v5461, %v5400
        %5463 = vadd.xlane.f32.xlu0 %v5462
        %v5464 = vpop.xlane.xlu0 %5463
        %v5465 = vadd.f32 %v5401, %v5402
        %v5466 = vadd.f32 %v5465, %v5403
        %5467 = vadd.xlane.f32.xlu0 %v5466
        %v5468 = vpop.xlane.xlu0 %5467
        %v5469 = vadd.f32 %v5404, %v5405
        %v5470 = vadd.f32 %v5469, %v5406
        %5471 = vadd.xlane.f32.xlu0 %v5470
        %v5472 = vpop.xlane.xlu0 %5471
        %v5473 = vmul.f32 %v5412, 0.0033333334
        %v5474 = vmul.f32 %v5416, 0.0033333334
        %v5475 = vmul.f32 %v5420, 0.0033333334
        %v5476 = vmul.f32 %v5424, 0.0033333334
        %v5477 = vmul.f32 %v5428, 0.0033333334
        %v5478 = vmul.f32 %v5432, 0.0033333334
        %v5479 = vmul.f32 %v5436, 0.0033333334
        %v5480 = vmul.f32 %v5440, 0.0033333334
        %v5481 = vmul.f32 %v5444, 0.0033333334
        %v5482 = vmul.f32 %v5448, 0.0033333334
        %v5483 = vmul.f32 %v5452, 0.0033333334
        %v5484 = vmul.f32 %v5456, 0.0033333334
        %v5485 = vmul.f32 %v5460, 0.0033333334
        %v5486 = vmul.f32 %v5464, 0.0033333334
        %v5487 = vmul.f32 %v5468, 0.0033333334
        %v5488 = vmul.f32 %v5472, 0.0033333334
        %v5489 = vmul.f32 %v5359, %v5359
        %v5490 = vmul.f32 %v5360, %v5360
        %v5491 = vmul.f32 %v5361, %v5361
        %v5492 = vmul.f32 %v5362, %v5362
        %v5493 = vmul.f32 %v5363, %v5363
        %v5494 = vmul.f32 %v5364, %v5364
        %v5495 = vmul.f32 %v5365, %v5365
        %v5496 = vmul.f32 %v5366, %v5366
        %v5497 = vmul.f32 %v5367, %v5367
        %v5498 = vmul.f32 %v5368, %v5368
        %v5499 = vmul.f32 %v5369, %v5369
        %v5500 = vmul.f32 %v5370, %v5370
        %v5501 = vmul.f32 %v5371, %v5371
        %v5502 = vmul.f32 %v5372, %v5372
        %v5503 = vmul.f32 %v5373, %v5373
        %v5504 = vmul.f32 %v5374, %v5374
        %v5505 = vmul.f32 %v5375, %v5375
        %v5506 = vmul.f32 %v5376, %v5376
        %v5507 = vmul.f32 %v5377, %v5377
        %v5508 = vmul.f32 %v5378, %v5378
        %v5509 = vmul.f32 %v5379, %v5379
        %v5510 = vmul.f32 %v5380, %v5380
        %v5511 = vmul.f32 %v5381, %v5381
        %v5512 = vmul.f32 %v5382, %v5382
        %v5513 = vmul.f32 %v5383, %v5383
        %v5514 = vmul.f32 %v5384, %v5384
        %v5515 = vmul.f32 %v5385, %v5385
        %v5516 = vmul.f32 %v5386, %v5386
        %v5517 = vmul.f32 %v5387, %v5387
        %v5518 = vmul.f32 %v5388, %v5388
        %v5519 = vmul.f32 %v5389, %v5389
        %v5520 = vmul.f32 %v5390, %v5390
        %v5521 = vmul.f32 %v5391, %v5391
        %v5522 = vmul.f32 %v5392, %v5392
        %v5523 = vmul.f32 %v5393, %v5393
        %v5524 = vmul.f32 %v5394, %v5394
        %v5525 = vmul.f32 %v5395, %v5395
        %v5526 = vmul.f32 %v5396, %v5396
        %v5527 = vmul.f32 %v5397, %v5397
        %v5528 = vmul.f32 %v5398, %v5398
        %v5529 = vmul.f32 %v5399, %v5399
        %v5530 = vmul.f32 %v5400, %v5400
        %v5531 = vmul.f32 %v5401, %v5401
        %v5532 = vmul.f32 %v5402, %v5402
        %v5533 = vmul.f32 %v5403, %v5403
        %v5534 = vmul.f32 %v5404, %v5404
        %v5535 = vmul.f32 %v5405, %v5405
        %v5536 = vmul.f32 %v5406, %v5406
        %v5537 = vadd.f32 %v5489, %v5490
        %v5538 = vadd.f32 %v5537, %v5491
        %5539 = vadd.xlane.f32.xlu0 %v5538
        %v5540 = vpop.xlane.xlu0 %5539
        %v5541 = vadd.f32 %v5492, %v5493
        %v5542 = vadd.f32 %v5541, %v5494
        %5543 = vadd.xlane.f32.xlu0 %v5542
        %v5544 = vpop.xlane.xlu0 %5543
        %v5545 = vadd.f32 %v5495, %v5496
        %v5546 = vadd.f32 %v5545, %v5497
        %5547 = vadd.xlane.f32.xlu0 %v5546
        %v5548 = vpop.xlane.xlu0 %5547
        %v5549 = vadd.f32 %v5498, %v5499
        %v5550 = vadd.f32 %v5549, %v5500
        %5551 = vadd.xlane.f32.xlu0 %v5550
        %v5552 = vpop.xlane.xlu0 %5551
        %v5553 = vadd.f32 %v5501, %v5502
        %v5554 = vadd.f32 %v5553, %v5503
        %5555 = vadd.xlane.f32.xlu0 %v5554
        %v5556 = vpop.xlane.xlu0 %5555
        %v5557 = vadd.f32 %v5504, %v5505
        %v5558 = vadd.f32 %v5557, %v5506
        %5559 = vadd.xlane.f32.xlu0 %v5558
        %v5560 = vpop.xlane.xlu0 %5559
        %v5561 = vadd.f32 %v5507, %v5508
        %v5562 = vadd.f32 %v5561, %v5509
        %5563 = vadd.xlane.f32.xlu0 %v5562
        %v5564 = vpop.xlane.xlu0 %5563
        %v5565 = vadd.f32 %v5510, %v5511
        %v5566 = vadd.f32 %v5565, %v5512
        %5567 = vadd.xlane.f32.xlu0 %v5566
        %v5568 = vpop.xlane.xlu0 %5567
        %v5569 = vadd.f32 %v5513, %v5514
        %v5570 = vadd.f32 %v5569, %v5515
        %5571 = vadd.xlane.f32.xlu0 %v5570
        %v5572 = vpop.xlane.xlu0 %5571
        %v5573 = vadd.f32 %v5516, %v5517
        %v5574 = vadd.f32 %v5573, %v5518
        %5575 = vadd.xlane.f32.xlu0 %v5574
        %v5576 = vpop.xlane.xlu0 %5575
        %v5577 = vadd.f32 %v5519, %v5520
        %v5578 = vadd.f32 %v5577, %v5521
        %5579 = vadd.xlane.f32.xlu0 %v5578
        %v5580 = vpop.xlane.xlu0 %5579
        %v5581 = vadd.f32 %v5522, %v5523
        %v5582 = vadd.f32 %v5581, %v5524
        %5583 = vadd.xlane.f32.xlu0 %v5582
        %v5584 = vpop.xlane.xlu0 %5583
        %v5585 = vadd.f32 %v5525, %v5526
        %v5586 = vadd.f32 %v5585, %v5527
        %5587 = vadd.xlane.f32.xlu0 %v5586
        %v5588 = vpop.xlane.xlu0 %5587
        %v5589 = vadd.f32 %v5528, %v5529
        %v5590 = vadd.f32 %v5589, %v5530
        %5591 = vadd.xlane.f32.xlu0 %v5590
        %v5592 = vpop.xlane.xlu0 %5591
        %v5593 = vadd.f32 %v5531, %v5532
        %v5594 = vadd.f32 %v5593, %v5533
        %5595 = vadd.xlane.f32.xlu0 %v5594
        %v5596 = vpop.xlane.xlu0 %5595
        %v5597 = vadd.f32 %v5534, %v5535
        %v5598 = vadd.f32 %v5597, %v5536
        %5599 = vadd.xlane.f32.xlu0 %v5598
        %v5600 = vpop.xlane.xlu0 %5599
        %v5601 = vmul.f32 %v5540, 0.0033333334
        %v5602 = vmul.f32 %v5544, 0.0033333334
        %v5603 = vmul.f32 %v5548, 0.0033333334
        %v5604 = vmul.f32 %v5552, 0.0033333334
        %v5605 = vmul.f32 %v5556, 0.0033333334
        %v5606 = vmul.f32 %v5560, 0.0033333334
        %v5607 = vmul.f32 %v5564, 0.0033333334
        %v5608 = vmul.f32 %v5568, 0.0033333334
        %v5609 = vmul.f32 %v5572, 0.0033333334
        %v5610 = vmul.f32 %v5576, 0.0033333334
        %v5611 = vmul.f32 %v5580, 0.0033333334
        %v5612 = vmul.f32 %v5584, 0.0033333334
        %v5613 = vmul.f32 %v5588, 0.0033333334
        %v5614 = vmul.f32 %v5592, 0.0033333334
        %v5615 = vmul.f32 %v5596, 0.0033333334
        %v5616 = vmul.f32 %v5600, 0.0033333334
        %v5617 = vmul.f32 %v5473, %v5473
        %v5618 = vmul.f32 %v5474, %v5474
        %v5619 = vmul.f32 %v5475, %v5475
        %v5620 = vmul.f32 %v5476, %v5476
        %v5621 = vmul.f32 %v5477, %v5477
        %v5622 = vmul.f32 %v5478, %v5478
        %v5623 = vmul.f32 %v5479, %v5479
        %v5624 = vmul.f32 %v5480, %v5480
        %v5625 = vmul.f32 %v5481, %v5481
        %v5626 = vmul.f32 %v5482, %v5482
        %v5627 = vmul.f32 %v5483, %v5483
        %v5628 = vmul.f32 %v5484, %v5484
        %v5629 = vmul.f32 %v5485, %v5485
        %v5630 = vmul.f32 %v5486, %v5486
        %v5631 = vmul.f32 %v5487, %v5487
        %v5632 = vmul.f32 %v5488, %v5488
        %v5633 = vsub.f32 %v5601, %v5617
        %v5634 = vsub.f32 %v5602, %v5618
        %v5635 = vsub.f32 %v5603, %v5619
        %v5636 = vsub.f32 %v5604, %v5620
        %v5637 = vsub.f32 %v5605, %v5621
        %v5638 = vsub.f32 %v5606, %v5622
        %v5639 = vsub.f32 %v5607, %v5623
        %v5640 = vsub.f32 %v5608, %v5624
        %v5641 = vsub.f32 %v5609, %v5625
        %v5642 = vsub.f32 %v5610, %v5626
        %v5643 = vsub.f32 %v5611, %v5627
        %v5644 = vsub.f32 %v5612, %v5628
        %v5645 = vsub.f32 %v5613, %v5629
        %v5646 = vsub.f32 %v5614, %v5630
        %v5647 = vsub.f32 %v5615, %v5631
        %v5648 = vsub.f32 %v5616, %v5632
        %v5649 = vmax.f32 %v5633, 0.0
        %v5650 = vmax.f32 %v5634, 0.0
        %v5651 = vmax.f32 %v5635, 0.0
        %v5652 = vmax.f32 %v5636, 0.0
        %v5653 = vmax.f32 %v5637, 0.0
        %v5654 = vmax.f32 %v5638, 0.0
        %v5655 = vmax.f32 %v5639, 0.0
        %v5656 = vmax.f32 %v5640, 0.0
        %v5657 = vmax.f32 %v5641, 0.0
        %v5658 = vmax.f32 %v5642, 0.0
        %v5659 = vmax.f32 %v5643, 0.0
        %v5660 = vmax.f32 %v5644, 0.0
        %v5661 = vmax.f32 %v5645, 0.0
        %v5662 = vmax.f32 %v5646, 0.0
        %v5663 = vmax.f32 %v5647, 0.0
        %v5664 = vmax.f32 %v5648, 0.0
        %v5665 = vadd.f32 %v5649, 1e-05
        %v5666 = vadd.f32 %v5650, 1e-05
        %v5667 = vadd.f32 %v5651, 1e-05
        %v5668 = vadd.f32 %v5652, 1e-05
        %v5669 = vadd.f32 %v5653, 1e-05
        %v5670 = vadd.f32 %v5654, 1e-05
        %v5671 = vadd.f32 %v5655, 1e-05
        %v5672 = vadd.f32 %v5656, 1e-05
        %v5673 = vadd.f32 %v5657, 1e-05
        %v5674 = vadd.f32 %v5658, 1e-05
        %v5675 = vadd.f32 %v5659, 1e-05
        %v5676 = vadd.f32 %v5660, 1e-05
        %v5677 = vadd.f32 %v5661, 1e-05
        %v5678 = vadd.f32 %v5662, 1e-05
        %v5679 = vadd.f32 %v5663, 1e-05
        %v5680 = vadd.f32 %v5664, 1e-05
        %v5681 = vrsqrt.pop %v5665
        %v5682 = vrsqrt.pop %v5666
        %v5683 = vrsqrt.pop %v5667
        %v5684 = vrsqrt.pop %v5668
        %v5685 = vrsqrt.pop %v5669
        %v5686 = vrsqrt.pop %v5670
        %v5687 = vrsqrt.pop %v5671
        %v5688 = vrsqrt.pop %v5672
        %v5689 = vrsqrt.pop %v5673
        %v5690 = vrsqrt.pop %v5674
        %v5691 = vrsqrt.pop %v5675
        %v5692 = vrsqrt.pop %v5676
        %v5693 = vrsqrt.pop %v5677
        %v5694 = vrsqrt.pop %v5678
        %v5695 = vrsqrt.pop %v5679
        %v5696 = vrsqrt.pop %v5680
        %v5697 = vsub.f32 %v5359, %v5473
        %v5698 = vsub.f32 %v5360, %v5473
        %v5699 = vsub.f32 %v5361, %v5473
        %v5700 = vsub.f32 %v5362, %v5474
        %v5701 = vsub.f32 %v5363, %v5474
        %v5702 = vsub.f32 %v5364, %v5474
        %v5703 = vsub.f32 %v5365, %v5475
        %v5704 = vsub.f32 %v5366, %v5475
        %v5705 = vsub.f32 %v5367, %v5475
        %v5706 = vsub.f32 %v5368, %v5476
        %v5707 = vsub.f32 %v5369, %v5476
        %v5708 = vsub.f32 %v5370, %v5476
        %v5709 = vsub.f32 %v5371, %v5477
        %v5710 = vsub.f32 %v5372, %v5477
        %v5711 = vsub.f32 %v5373, %v5477
        %v5712 = vsub.f32 %v5374, %v5478
        %v5713 = vsub.f32 %v5375, %v5478
        %v5714 = vsub.f32 %v5376, %v5478
        %v5715 = vsub.f32 %v5377, %v5479
        %v5716 = vsub.f32 %v5378, %v5479
        %v5717 = vsub.f32 %v5379, %v5479
        %v5718 = vsub.f32 %v5380, %v5480
        %v5719 = vsub.f32 %v5381, %v5480
        %v5720 = vsub.f32 %v5382, %v5480
        %v5721 = vsub.f32 %v5383, %v5481
        %v5722 = vsub.f32 %v5384, %v5481
        %v5723 = vsub.f32 %v5385, %v5481
        %v5724 = vsub.f32 %v5386, %v5482
        %v5725 = vsub.f32 %v5387, %v5482
        %v5726 = vsub.f32 %v5388, %v5482
        %v5727 = vsub.f32 %v5389, %v5483
        %v5728 = vsub.f32 %v5390, %v5483
        %v5729 = vsub.f32 %v5391, %v5483
        %v5730 = vsub.f32 %v5392, %v5484
        %v5731 = vsub.f32 %v5393, %v5484
        %v5732 = vsub.f32 %v5394, %v5484
        %v5733 = vsub.f32 %v5395, %v5485
        %v5734 = vsub.f32 %v5396, %v5485
        %v5735 = vsub.f32 %v5397, %v5485
        %v5736 = vsub.f32 %v5398, %v5486
        %v5737 = vsub.f32 %v5399, %v5486
        %v5738 = vsub.f32 %v5400, %v5486
        %v5739 = vsub.f32 %v5401, %v5487
        %v5740 = vsub.f32 %v5402, %v5487
        %v5741 = vsub.f32 %v5403, %v5487
        %v5742 = vsub.f32 %v5404, %v5488
        %v5743 = vsub.f32 %v5405, %v5488
        %v5744 = vsub.f32 %v5406, %v5488
        %v5745 = vmul.f32 %v5697, %v5681
        %v5746 = vmul.f32 %v5698, %v5681
        %v5747 = vmul.f32 %v5699, %v5681
        %v5748 = vmul.f32 %v5700, %v5682
        %v5749 = vmul.f32 %v5701, %v5682
        %v5750 = vmul.f32 %v5702, %v5682
        %v5751 = vmul.f32 %v5703, %v5683
        %v5752 = vmul.f32 %v5704, %v5683
        %v5753 = vmul.f32 %v5705, %v5683
        %v5754 = vmul.f32 %v5706, %v5684
        %v5755 = vmul.f32 %v5707, %v5684
        %v5756 = vmul.f32 %v5708, %v5684
        %v5757 = vmul.f32 %v5709, %v5685
        %v5758 = vmul.f32 %v5710, %v5685
        %v5759 = vmul.f32 %v5711, %v5685
        %v5760 = vmul.f32 %v5712, %v5686
        %v5761 = vmul.f32 %v5713, %v5686
        %v5762 = vmul.f32 %v5714, %v5686
        %v5763 = vmul.f32 %v5715, %v5687
        %v5764 = vmul.f32 %v5716, %v5687
        %v5765 = vmul.f32 %v5717, %v5687
        %v5766 = vmul.f32 %v5718, %v5688
        %v5767 = vmul.f32 %v5719, %v5688
        %v5768 = vmul.f32 %v5720, %v5688
        %v5769 = vmul.f32 %v5721, %v5689
        %v5770 = vmul.f32 %v5722, %v5689
        %v5771 = vmul.f32 %v5723, %v5689
        %v5772 = vmul.f32 %v5724, %v5690
        %v5773 = vmul.f32 %v5725, %v5690
        %v5774 = vmul.f32 %v5726, %v5690
        %v5775 = vmul.f32 %v5727, %v5691
        %v5776 = vmul.f32 %v5728, %v5691
        %v5777 = vmul.f32 %v5729, %v5691
        %v5778 = vmul.f32 %v5730, %v5692
        %v5779 = vmul.f32 %v5731, %v5692
        %v5780 = vmul.f32 %v5732, %v5692
        %v5781 = vmul.f32 %v5733, %v5693
        %v5782 = vmul.f32 %v5734, %v5693
        %v5783 = vmul.f32 %v5735, %v5693
        %v5784 = vmul.f32 %v5736, %v5694
        %v5785 = vmul.f32 %v5737, %v5694
        %v5786 = vmul.f32 %v5738, %v5694
        %v5787 = vmul.f32 %v5739, %v5695
        %v5788 = vmul.f32 %v5740, %v5695
        %v5789 = vmul.f32 %v5741, %v5695
        %v5790 = vmul.f32 %v5742, %v5696
        %v5791 = vmul.f32 %v5743, %v5696
        %v5792 = vmul.f32 %v5744, %v5696
        %v5794 = vlaneseq
        %v5795 = vshrl.u32 %v5794, 7
        %v5796 = vsub.s32 0, %v5795
        %v5797 = vrot.slane %v5407, %v5796
        %v5798 = vlaneseq
        %v5799 = vshrl.u32 %v5798, 7
        %v5800 = vsub.s32 1, %v5799
        %v5801 = vrot.slane %v5407, %v5800
        %v5802 = vlaneseq
        %v5803 = vshrl.u32 %v5802, 7
        %v5804 = vsub.s32 2, %v5803
        %v5805 = vrot.slane %v5407, %v5804
        %v5809 = vmul.f32 %v5745, %v5797
        %v5810 = vmul.f32 %v5746, %v5801
        %v5811 = vmul.f32 %v5747, %v5805
        %v5812 = vmul.f32 %v5748, %v5797
        %v5813 = vmul.f32 %v5749, %v5801
        %v5814 = vmul.f32 %v5750, %v5805
        %v5815 = vmul.f32 %v5751, %v5797
        %v5816 = vmul.f32 %v5752, %v5801
        %v5817 = vmul.f32 %v5753, %v5805
        %v5818 = vmul.f32 %v5754, %v5797
        %v5819 = vmul.f32 %v5755, %v5801
        %v5820 = vmul.f32 %v5756, %v5805
        %v5821 = vmul.f32 %v5757, %v5797
        %v5822 = vmul.f32 %v5758, %v5801
        %v5823 = vmul.f32 %v5759, %v5805
        %v5824 = vmul.f32 %v5760, %v5797
        %v5825 = vmul.f32 %v5761, %v5801
        %v5826 = vmul.f32 %v5762, %v5805
        %v5827 = vmul.f32 %v5763, %v5797
        %v5828 = vmul.f32 %v5764, %v5801
        %v5829 = vmul.f32 %v5765, %v5805
        %v5830 = vmul.f32 %v5766, %v5797
        %v5831 = vmul.f32 %v5767, %v5801
        %v5832 = vmul.f32 %v5768, %v5805
        %v5833 = vmul.f32 %v5769, %v5797
        %v5834 = vmul.f32 %v5770, %v5801
        %v5835 = vmul.f32 %v5771, %v5805
        %v5836 = vmul.f32 %v5772, %v5797
        %v5837 = vmul.f32 %v5773, %v5801
        %v5838 = vmul.f32 %v5774, %v5805
        %v5839 = vmul.f32 %v5775, %v5797
        %v5840 = vmul.f32 %v5776, %v5801
        %v5841 = vmul.f32 %v5777, %v5805
        %v5842 = vmul.f32 %v5778, %v5797
        %v5843 = vmul.f32 %v5779, %v5801
        %v5844 = vmul.f32 %v5780, %v5805
        %v5845 = vmul.f32 %v5781, %v5797
        %v5846 = vmul.f32 %v5782, %v5801
        %v5847 = vmul.f32 %v5783, %v5805
        %v5848 = vmul.f32 %v5784, %v5797
        %v5849 = vmul.f32 %v5785, %v5801
        %v5850 = vmul.f32 %v5786, %v5805
        %v5851 = vmul.f32 %v5787, %v5797
        %v5852 = vmul.f32 %v5788, %v5801
        %v5853 = vmul.f32 %v5789, %v5805
        %v5854 = vmul.f32 %v5790, %v5797
        %v5855 = vmul.f32 %v5791, %v5801
        %v5856 = vmul.f32 %v5792, %v5805
        %v5858 = vlaneseq
        %v5859 = vshrl.u32 %v5858, 7
        %v5860 = vsub.s32 0, %v5859
        %v5861 = vrot.slane %v5408, %v5860
        %v5862 = vlaneseq
        %v5863 = vshrl.u32 %v5862, 7
        %v5864 = vsub.s32 1, %v5863
        %v5865 = vrot.slane %v5408, %v5864
        %v5866 = vlaneseq
        %v5867 = vshrl.u32 %v5866, 7
        %v5868 = vsub.s32 2, %v5867
        %v5869 = vrot.slane %v5408, %v5868
        %v5873 = vadd.f32 %v5809, %v5861
        %v5874 = vadd.f32 %v5810, %v5865
        %v5875 = vadd.f32 %v5811, %v5869
        %v5876 = vadd.f32 %v5812, %v5861
        %v5877 = vadd.f32 %v5813, %v5865
        %v5878 = vadd.f32 %v5814, %v5869
        %v5879 = vadd.f32 %v5815, %v5861
        %v5880 = vadd.f32 %v5816, %v5865
        %v5881 = vadd.f32 %v5817, %v5869
        %v5882 = vadd.f32 %v5818, %v5861
        %v5883 = vadd.f32 %v5819, %v5865
        %v5884 = vadd.f32 %v5820, %v5869
        %v5885 = vadd.f32 %v5821, %v5861
        %v5886 = vadd.f32 %v5822, %v5865
        %v5887 = vadd.f32 %v5823, %v5869
        %v5888 = vadd.f32 %v5824, %v5861
        %v5889 = vadd.f32 %v5825, %v5865
        %v5890 = vadd.f32 %v5826, %v5869
        %v5891 = vadd.f32 %v5827, %v5861
        %v5892 = vadd.f32 %v5828, %v5865
        %v5893 = vadd.f32 %v5829, %v5869
        %v5894 = vadd.f32 %v5830, %v5861
        %v5895 = vadd.f32 %v5831, %v5865
        %v5896 = vadd.f32 %v5832, %v5869
        %v5897 = vadd.f32 %v5833, %v5861
        %v5898 = vadd.f32 %v5834, %v5865
        %v5899 = vadd.f32 %v5835, %v5869
        %v5900 = vadd.f32 %v5836, %v5861
        %v5901 = vadd.f32 %v5837, %v5865
        %v5902 = vadd.f32 %v5838, %v5869
        %v5903 = vadd.f32 %v5839, %v5861
        %v5904 = vadd.f32 %v5840, %v5865
        %v5905 = vadd.f32 %v5841, %v5869
        %v5906 = vadd.f32 %v5842, %v5861
        %v5907 = vadd.f32 %v5843, %v5865
        %v5908 = vadd.f32 %v5844, %v5869
        %v5909 = vadd.f32 %v5845, %v5861
        %v5910 = vadd.f32 %v5846, %v5865
        %v5911 = vadd.f32 %v5847, %v5869
        %v5912 = vadd.f32 %v5848, %v5861
        %v5913 = vadd.f32 %v5849, %v5865
        %v5914 = vadd.f32 %v5850, %v5869
        %v5915 = vadd.f32 %v5851, %v5861
        %v5916 = vadd.f32 %v5852, %v5865
        %v5917 = vadd.f32 %v5853, %v5869
        %v5918 = vadd.f32 %v5854, %v5861
        %v5919 = vadd.f32 %v5855, %v5865
        %v5920 = vadd.f32 %v5856, %v5869
        %v5921 = vld [vmem:[%s13] sm:$0x7]
        %v5922 = vld [vmem:[#allocation2] sm:$0x1]
        %5924 = vset.pattern.permute.xlu0 0
        %5925 = vperm.xlu0 %5924, %v5922
        %v5926 = vpop.permute.xlu0 %5925
        %v5928 = vlaneseq
        %v5929 = vshrl.u32 %v5928, 7
        %v5930 = vsub.s32 0, %v5929
        %v5931 = vrot.slane %v5926, %v5930
        %v5933 = vlaneseq
        %v5934 = vshrl.u32 %v5933, 7
        %v5935 = vsub.s32 0, %v5934
        %v5936 = vrot.slane %v5921, %v5935
        %v5937 = vlaneseq
        %v5938 = vshrl.u32 %v5937, 7
        %v5939 = vsub.s32 1, %v5938
        %v5940 = vrot.slane %v5921, %v5939
        %v5941 = vlaneseq
        %v5942 = vshrl.u32 %v5941, 7
        %v5943 = vsub.s32 2, %v5942
        %v5944 = vrot.slane %v5921, %v5943
        %5948 = vmatprep.subr.mxu0 %v5919
        %5949 = vmatpush1.xpose.msra.mxu0 %v5918
        %5950 = vmatprep.subr.mxu0 %v5916
        %5951 = vmatpush1.xpose.msra.mxu0 %v5915
        %5952 = vmatprep.subr.mxu0 %v5913
        %5953 = vmatpush1.xpose.msra.mxu0 %v5912
        %5954 = vmatprep.subr.mxu0 %v5910
        %5955 = vmatpush1.xpose.msra.mxu0 %v5909
        %5956 = vmatprep.subr.mxu0 %v5907
        %5957 = vmatpush1.xpose.msra.mxu0 %v5906
        %5958 = vmatprep.subr.mxu0 %v5904
        %5959 = vmatpush1.xpose.msra.mxu0 %v5903
        %5960 = vmatprep.subr.mxu0 %v5901
        %5961 = vmatpush1.xpose.msra.mxu0 %v5900
        %5962 = vmatprep.subr.mxu0 %v5898
        %5963 = vmatpush1.xpose.msra.mxu0 %v5897
        %5964 = vmatprep.subr.mxu0 %v5895
        %5965 = vmatpush1.xpose.msra.mxu0 %v5894
        %5966 = vmatprep.subr.mxu0 %v5892
        %5967 = vmatpush1.xpose.msra.mxu0 %v5891
        %5968 = vmatprep.subr.mxu0 %v5889
        %5969 = vmatpush1.xpose.msra.mxu0 %v5888
        %5970 = vmatprep.subr.mxu0 %v5886
        %5971 = vmatpush1.xpose.msra.mxu0 %v5885
        %5972 = vmatprep.subr.mxu0 %v5883
        %5973 = vmatpush1.xpose.msra.mxu0 %v5882
        %5974 = vmatprep.subr.mxu0 %v5880
        %5975 = vmatpush1.xpose.msra.mxu0 %v5879
        %5976 = vmatprep.subr.mxu0 %v5877
        %5977 = vmatpush1.xpose.msra.mxu0 %v5876
        %5978 = vmatprep.subr.mxu0 %v5874
        %5979 = vmatpush1.xpose.msra.mxu0 %v5873
        %5980 = vmatprep.subr.mxu0 0.0
        %5981 = vmatpush2.xpose.msra.mxu0 0.0
        %5982 = vmatprep.subr.mxu0 0.0
        %5983 = vmatpush2.xpose.msra.mxu0 0.0
        %5984 = vmatprep.subr.mxu0 0.0
        %5985 = vmatpush2.xpose.msra.mxu0 0.0
        %5986 = vmatprep.subr.mxu0 0.0
        %5987 = vmatpush2.xpose.msra.mxu0 0.0
        %5988 = vmatprep.subr.mxu0 0.0
        %5989 = vmatpush2.xpose.msra.mxu0 0.0
        %5990 = vmatprep.subr.mxu0 0.0
        %5991 = vmatpush2.xpose.msra.mxu0 0.0
        %5992 = vmatprep.subr.mxu0 0.0
        %5993 = vmatpush2.xpose.msra.mxu0 0.0
        %5994 = vmatprep.subr.mxu0 0.0
        %5995 = vmatpush2.xpose.msra.mxu0 0.0
        %5996 = vmatprep.subr.mxu0 0.0
        %5997 = vmatpush2.xpose.msra.mxu0 0.0
        %5998 = vmatprep.subr.mxu0 0.0
        %5999 = vmatpush2.xpose.msra.mxu0 0.0
        %6000 = vmatprep.subr.mxu0 0.0
        %6001 = vmatpush2.xpose.msra.mxu0 0.0
        %6002 = vmatprep.subr.mxu0 0.0
        %6003 = vmatpush2.xpose.msra.mxu0 0.0
        %6004 = vmatprep.subr.mxu0 0.0
        %6005 = vmatpush2.xpose.msra.mxu0 0.0
        %6006 = vmatprep.subr.mxu0 0.0
        %6007 = vmatpush2.xpose.msra.mxu0 0.0
        %6008 = vmatprep.subr.mxu0 0.0
        %6009 = vmatpush2.xpose.msra.mxu0 0.0
        %6010 = vmatprep.subr.mxu0 0.0
        %6011 = vmatpush2.xpose.msra.mxu0 0.0
        %6012 = vmatprep.mubr.f32.mxu0 %v5940
        %6013 = vmatmul.mubr.f32.gmra.mxu0 %v5936
        %v6014 = vpop.f32.mrf.mxu0
        %v6015 = vadd.f32 %v5931, %v6014
        %v6016 = vpop.f32.mrf.mxu0
        %6017 = vdwg.mxu0
        %6018 = vmatprep.subr.mxu0 0.0
        %6019 = vmatpush1.xpose.msra.mxu0 %v5920
        %6020 = vmatprep.subr.mxu0 0.0
        %6021 = vmatpush1.xpose.msra.mxu0 %v5917
        %6022 = vmatprep.subr.mxu0 0.0
        %6023 = vmatpush1.xpose.msra.mxu0 %v5914
        %6024 = vmatprep.subr.mxu0 0.0
        %6025 = vmatpush1.xpose.msra.mxu0 %v5911
        %6026 = vmatprep.subr.mxu0 0.0
        %6027 = vmatpush1.xpose.msra.mxu0 %v5908
        %6028 = vmatprep.subr.mxu0 0.0
        %6029 = vmatpush1.xpose.msra.mxu0 %v5905
        %6030 = vmatprep.subr.mxu0 0.0
        %6031 = vmatpush1.xpose.msra.mxu0 %v5902
        %6032 = vmatprep.subr.mxu0 0.0
        %6033 = vmatpush1.xpose.msra.mxu0 %v5899
        %6034 = vmatprep.subr.mxu0 0.0
        %6035 = vmatpush1.xpose.msra.mxu0 %v5896
        %6036 = vmatprep.subr.mxu0 0.0
        %6037 = vmatpush1.xpose.msra.mxu0 %v5893
        %6038 = vmatprep.subr.mxu0 0.0
        %6039 = vmatpush1.xpose.msra.mxu0 %v5890
        %6040 = vmatprep.subr.mxu0 0.0
        %6041 = vmatpush1.xpose.msra.mxu0 %v5887
        %6042 = vmatprep.subr.mxu0 0.0
        %6043 = vmatpush1.xpose.msra.mxu0 %v5884
        %6044 = vmatprep.subr.mxu0 0.0
        %6045 = vmatpush1.xpose.msra.mxu0 %v5881
        %6046 = vmatprep.subr.mxu0 0.0
        %6047 = vmatpush1.xpose.msra.mxu0 %v5878
        %6048 = vmatprep.subr.mxu0 0.0
        %6049 = vmatpush1.xpose.msra.mxu0 %v5875
        %6050 = vmatprep.subr.mxu0 0.0
        %6051 = vmatpush2.xpose.msra.mxu0 0.0
        %6052 = vmatprep.subr.mxu0 0.0
        %6053 = vmatpush2.xpose.msra.mxu0 0.0
        %6054 = vmatprep.subr.mxu0 0.0
        %6055 = vmatpush2.xpose.msra.mxu0 0.0
        %6056 = vmatprep.subr.mxu0 0.0
        %6057 = vmatpush2.xpose.msra.mxu0 0.0
        %6058 = vmatprep.subr.mxu0 0.0
        %6059 = vmatpush2.xpose.msra.mxu0 0.0
        %6060 = vmatprep.subr.mxu0 0.0
        %6061 = vmatpush2.xpose.msra.mxu0 0.0
        %6062 = vmatprep.subr.mxu0 0.0
        %6063 = vmatpush2.xpose.msra.mxu0 0.0
        %6064 = vmatprep.subr.mxu0 0.0
        %6065 = vmatpush2.xpose.msra.mxu0 0.0
        %6066 = vmatprep.subr.mxu0 0.0
        %6067 = vmatpush2.xpose.msra.mxu0 0.0
        %6068 = vmatprep.subr.mxu0 0.0
        %6069 = vmatpush2.xpose.msra.mxu0 0.0
        %6070 = vmatprep.subr.mxu0 0.0
        %6071 = vmatpush2.xpose.msra.mxu0 0.0
        %6072 = vmatprep.subr.mxu0 0.0
        %6073 = vmatpush2.xpose.msra.mxu0 0.0
        %6074 = vmatprep.subr.mxu0 0.0
        %6075 = vmatpush2.xpose.msra.mxu0 0.0
        %6076 = vmatprep.subr.mxu0 0.0
        %6077 = vmatpush2.xpose.msra.mxu0 0.0
        %6078 = vmatprep.subr.mxu0 0.0
        %6079 = vmatpush2.xpose.msra.mxu0 0.0
        %6080 = vmatprep.subr.mxu0 0.0
        %6081 = vmatpush2.xpose.msra.mxu0 0.0
        %6082 = vmatprep.mubr.f32.mxu0 0.0
        %6083 = vmatmul.mubr.f32.gmra.mxu0 %v5944
        %v6084 = vpop.f32.mrf.mxu0
        %v6085 = vadd.f32 %v6015, %v6084
        %v6086 = vpop.f32.mrf.mxu0
        %6087 = vdwg.mxu0
        %6088 = vst [vmem:[%s519] sm:$0x1] %v6085
        %s6089 = sand.u32 %s361, 1
        %s6090 = scalar_lea.sflag [#allocation5], %s6089
        %s6091 = sand.u32 %s361, 1
        %s6092 = scalar_lea.vmem [#allocation8], %s6091
        // Predicated region
        $region89: #{tpu_custom_call.1} parent=79 // pred_check
          %p6093 = pneg %p371
        $region90: #{tpu_custom_call.1} parent=79 // pred_check_branch
          %6095 = sbr.rel (%p6093) target = $region92
        $region91: #{tpu_custom_call.1} parent=79 // pred_region
          %s6097 = ssub.s32 16, 16
          %6098 = vsyncadd %s6090, %s6097
          %s6099 = smul.addr %s33, 16
          %s6100 = scalar_lea.hbm %s15, %s6099
          %s6102 = sshll.u32 %s6092, 4
          %s6103 = int_to_ptr.vmem [resolvable:$true] %s6102
          %6105 = dma.vmem_to_hbm [thread:$0]  %s6103, 16, %s6100, %s6090
        $region92: #{tpu_custom_call.1} parent=79 // pred_fallthru
          _
      $region80: #{tpu_custom_call.1} parent=5 // pred_fallthru
        _
      %p6106 = scmp.le.s32.totalorder 2, %s28
      // Predicated region
      $region93: #{tpu_custom_call.1} parent=5 // pred_check
        %p6107 = pneg %p6106
      $region94: #{tpu_custom_call.1} parent=5 // pred_check_branch
        %6109 = sbr.rel (%p6107) target = $region96
      $region95: #{tpu_custom_call.1} parent=5 // pred_region
        %s6110 = ssub.s32 %s28, 2
        // Predicated region
        $region97: #{tpu_custom_call.1} parent=95 // pred_check
          %p6111 = pneg %p377
        $region98: #{tpu_custom_call.1} parent=95 // pred_check_branch
          %6113 = sbr.rel (%p6111) target = $region100
        $region99: #{tpu_custom_call.1} parent=95 // pred_region
          %s6114 = sand.u32 %s362, 1
          %s6115 = scalar_lea.sflag [#allocation5], %s6114
          %s6116 = sand.u32 %s362, 1
          %s6117 = scalar_lea.vmem [#allocation8], %s6116
          %6118 = dma.done %s6115, 16
        $region100: #{tpu_custom_call.1} parent=95 // pred_fallthru
          _
      $region96: #{tpu_custom_call.1} parent=5 // pred_fallthru
        _
    $region6: #{tpu_custom_call.1} parent=1 // loop_footer
      %s32 = sadd.s32 1, %s28
    $region7: #{tpu_custom_call.1} parent=1 // loop_footer_branch
      %27 = sbr.rel target = $region3
    $region8: #{tpu_custom_call.1} parent=1 // loop_exit
      _
    %6119 = vsyncpa [#allocation4], 1
    %s6120 = scalar_lea.sflag [#allocation4], 1
    %6121 = vsyncpa %s6120, 1
    %6122 = vsyncpa [#allocation7], 1
    %6123 = vsyncpa [#allocation5], 1
    %s6124 = scalar_lea.sflag [#allocation5], 1
    %6125 = vsyncpa %s6124, 1

</llo_original>
